<compile_context>
chip_gen: v7x
topology: tpu7x:2x2x1
jax: 0.10.0
libtpu: 0.0.40
codegen_flags: <defaults>
</compile_context>

<pallas_src>
import functools

import jax
import jax.numpy as jnp
from jax.experimental import pallas as pl
from jax.experimental.pallas import tpu as pltpu

# ----------------------------- model dims ---------------------------------
DIMS = [84, 512, 512, 256, 64, 16, 2]          # fc1..fc6 in/out chain (PyTorch spec)
PAD_DIMS = [max(d, 128) for d in DIMS]         # lane-align every narrow dim -> [128,512,512,256,128,128,128]
IN_DIM = DIMS[0]
OUT_DIM = DIMS[-1]
IN_PAD = PAD_DIMS[0]
OUT_PAD = PAD_DIMS[-1]


def _mlp_kernel(x_ref,
                w1, b1, w2, b2, w3, b3, w4, b4, w5, b5, w6, b6,
                o_ref):
    """Fused forward: 6 Linear layers, ReLU after fc1..fc5 (none after fc6).

    Inputs/weights are bf16; each matmul accumulates in f32 on the MXU; the f32
    result gets bias + ReLU, then is re-quantized to bf16 for the next layer.
    Padded columns/rows are exact zeros, so results match the unpadded model.
    """
    h = x_ref[...]  # bf16 tile (TB, IN_PAD)

    def layer(h, w_ref, b_ref, relu=True):
        y = jnp.dot(h, w_ref[...], preferred_element_type=jnp.float32) + b_ref[...]
        if relu:
            y = jnp.maximum(y, 0.0)
        return y

    # seq1: fc1 -> (dropout=id) -> ReLU -> fc2 -> ReLU -> fc3 -> ReLU -> fc4 -> ReLU
    h = layer(h, w1, b1).astype(jnp.bfloat16)
    h = layer(h, w2, b2).astype(jnp.bfloat16)
    h = layer(h, w3, b3).astype(jnp.bfloat16)
    h = layer(h, w4, b4).astype(jnp.bfloat16)
    # seq2: fc5 -> (dropout=id) -> ReLU -> fc6 (no final ReLU)
    h = layer(h, w5, b5).astype(jnp.bfloat16)
    y = layer(h, w6, b6, relu=False)

    o_ref[...] = y.astype(o_ref.dtype)  # lane-dense (TB, 128) store


@functools.partial(jax.jit, static_argnames=("tb",))
def net2512_forward(x, params, *, tb=128):
    """x: (B, 84) float32. params: list of (W (in,out) f32, b (1,out) f32) for fc1..fc6."""
    B = x.shape[0]
    n_tiles = pl.cdiv(B, tb)
    Bp = n_tiles * tb

    # Quantize weights to bf16; zero-pad every narrow in/out dim to its lane-aligned size.
    w_list, b_list = [], []
    for idx, (w, b) in enumerate(params):
        in_d, out_d = DIMS[idx], DIMS[idx + 1]
        in_p, out_p = PAD_DIMS[idx], PAD_DIMS[idx + 1]
        w = jnp.pad(w.astype(jnp.bfloat16), ((0, in_p - in_d), (0, out_p - out_d)))
        b = jnp.pad(b.astype(jnp.float32), ((0, 0), (0, out_p - out_d)))
        w_list.append(w)
        b_list.append(b)

    # Pad x: batch up to a tile multiple, features 84 -> 128 (zeros are inert vs zero w1 rows).
    x_pad = jnp.pad(x.astype(jnp.bfloat16),
                    ((0, Bp - B), (0, IN_PAD - IN_DIM)))

    flat = [x_pad]
    in_specs = [pl.BlockSpec((tb, IN_PAD), lambda i: (i, 0))]
    for w, b in zip(w_list, b_list):
        flat.append(w)
        in_specs.append(pl.BlockSpec(w.shape, lambda i: (0, 0)))   # VMEM-resident across tiles
        flat.append(b)
        in_specs.append(pl.BlockSpec(b.shape, lambda i: (0, 0)))

    out = pl.pallas_call(
        _mlp_kernel,
        out_shape=jax.ShapeDtypeStruct((Bp, OUT_PAD), jnp.float32),
        grid_spec=pltpu.PrefetchScalarGridSpec(
            num_scalar_prefetch=0,
            grid=(n_tiles,),
            in_specs=in_specs,
            out_specs=pl.BlockSpec((tb, OUT_PAD), lambda i: (i, 0)),
        ),
        compiler_params=pltpu.CompilerParams(
            dimension_semantics=("parallel",),   # batch tiles shard across TCs (v7x megacore)
            vmem_limit_bytes=32 << 20,           # <= v7x 64 MiB physical; actual need ~3 MiB
        ),
    )(*flat)

    return out[:B, :OUT_DIM]


def init_params(key):
    """PyTorch-style init: U(-1/sqrt(fan_in), 1/sqrt(fan_in)); weights in (in, out) layout."""
    params = []
    for i in range(len(DIMS) - 1):
        fan_in, fan_out = DIMS[i], DIMS[i + 1]
        key, kw, kb = jax.random.split(key, 3)
        bound = 1.0 / jnp.sqrt(jnp.float32(fan_in))
        w = jax.random.uniform(kw, (fan_in, fan_out), jnp.float32, -bound, bound)
        b = jax.random.uniform(kb, (1, fan_out), jnp.float32, -bound, bound)
        params.append((w, b))
    return params


def reference_forward(x, params):
    """Plain-JAX reference mirroring the kernel's bf16-weight / f32-accum math."""
    h = x.astype(jnp.bfloat16)
    for idx, (w, b) in enumerate(params):
        y = jnp.dot(h, w.astype(jnp.bfloat16),
                    preferred_element_type=jnp.float32) + b
        if idx < len(params) - 1:          # ReLU after fc1..fc5, not after fc6
            h = jnp.maximum(y, 0.0).astype(jnp.bfloat16)
        else:
            h = y
    return h


if __name__ == "__main__":
    key = jax.random.PRNGKey(0)
    k_params, k_x = jax.random.split(key)

    params = init_params(k_params)

    B = 256                       # 2 batch tiles of 128 -> exercises the pipelined grid
    x = jax.random.normal(k_x, (B, IN_DIM), jnp.float32)

    out = net2512_forward(x, params, tb=128)
    out = jax.block_until_ready(out)

    ref = reference_forward(x, params)
    assert out.shape == (B, OUT_DIM), out.shape
    assert jnp.allclose(out, ref, atol=1e-2, rtol=1e-2), "mismatch vs reference"

    print("KERNEL_OK")
</pallas_src>

<mosaic_0001>
module attributes {stable_mosaic.version = 11 : i64} {
  func.func @_mlp_kernel(%arg0: i32, %arg1: memref<128x128xbf16, #tpu.memory_space<vmem>>, %arg2: memref<128x512xbf16, #tpu.memory_space<vmem>>, %arg3: memref<1x512xf32, #tpu.memory_space<vmem>>, %arg4: memref<512x512xbf16, #tpu.memory_space<vmem>>, %arg5: memref<1x512xf32, #tpu.memory_space<vmem>>, %arg6: memref<512x256xbf16, #tpu.memory_space<vmem>>, %arg7: memref<1x256xf32, #tpu.memory_space<vmem>>, %arg8: memref<256x128xbf16, #tpu.memory_space<vmem>>, %arg9: memref<1x128xf32, #tpu.memory_space<vmem>>, %arg10: memref<128x128xbf16, #tpu.memory_space<vmem>>, %arg11: memref<1x128xf32, #tpu.memory_space<vmem>>, %arg12: memref<128x128xbf16, #tpu.memory_space<vmem>>, %arg13: memref<1x128xf32, #tpu.memory_space<vmem>>, %arg14: memref<128x128xf32, #tpu.memory_space<vmem>>) attributes {dimension_semantics = [#tpu.dimension_semantics<parallel>], iteration_bounds = array<i64: 2>, scalar_prefetch = 0 : i64, scratch_operands = 0 : i64, tpu.core_type = #tpu.core_type<tc>, window_params = [{transform_indices = @transform_0, window_bounds = array<i64: 128, 128>}, {pipeline_mode = #tpu.pipeline_mode<synchronous>, transform_indices = @transform_1, window_bounds = array<i64: 128, 512>}, {pipeline_mode = #tpu.pipeline_mode<synchronous>, transform_indices = @transform_2, window_bounds = array<i64: 1, 512>}, {pipeline_mode = #tpu.pipeline_mode<synchronous>, transform_indices = @transform_3, window_bounds = array<i64: 512, 512>}, {pipeline_mode = #tpu.pipeline_mode<synchronous>, transform_indices = @transform_4, window_bounds = array<i64: 1, 512>}, {pipeline_mode = #tpu.pipeline_mode<synchronous>, transform_indices = @transform_5, window_bounds = array<i64: 512, 256>}, {pipeline_mode = #tpu.pipeline_mode<synchronous>, transform_indices = @transform_6, window_bounds = array<i64: 1, 256>}, {pipeline_mode = #tpu.pipeline_mode<synchronous>, transform_indices = @transform_7, window_bounds = array<i64: 256, 128>}, {pipeline_mode = #tpu.pipeline_mode<synchronous>, transform_indices = @transform_8, window_bounds = array<i64: 1, 128>}, {pipeline_mode = #tpu.pipeline_mode<synchronous>, transform_indices = @transform_9, window_bounds = array<i64: 128, 128>}, {pipeline_mode = #tpu.pipeline_mode<synchronous>, transform_indices = @transform_10, window_bounds = array<i64: 1, 128>}, {pipeline_mode = #tpu.pipeline_mode<synchronous>, transform_indices = @transform_11, window_bounds = array<i64: 128, 128>}, {pipeline_mode = #tpu.pipeline_mode<synchronous>, transform_indices = @transform_12, window_bounds = array<i64: 1, 128>}, {transform_indices = @transform_13, window_bounds = array<i64: 128, 128>}]} {
    %c0 = arith.constant 0 : index
    %c0_0 = arith.constant 0 : index
    %0 = vector.load %arg1[%c0, %c0_0] : memref<128x128xbf16, #tpu.memory_space<vmem>>, vector<128x128xbf16>
    %c0_1 = arith.constant 0 : index
    %c0_2 = arith.constant 0 : index
    %1 = vector.load %arg2[%c0_1, %c0_2] : memref<128x512xbf16, #tpu.memory_space<vmem>>, vector<128x512xbf16>
    %cst = arith.constant dense<0.000000e+00> : vector<128x512xf32>
    %2 = tpu.matmul %0, %1, %cst {dimension_numbers = #tpu.dot_dimension_numbers<[1], [0], [0], [1], [0, 0, 1, 1], [], []>} : vector<128x128xbf16>, vector<128x512xbf16>, vector<128x512xf32> -> vector<128x512xf32>
    %c0_3 = arith.constant 0 : index
    %c0_4 = arith.constant 0 : index
    %3 = vector.load %arg3[%c0_3, %c0_4] : memref<1x512xf32, #tpu.memory_space<vmem>>, vector<1x512xf32>
    %4 = vector.broadcast %3 : vector<1x512xf32> to vector<128x512xf32>
    %5 = arith.addf %2, %4 : vector<128x512xf32>
    %cst_5 = arith.constant 0.000000e+00 : f32
    %6 = vector.broadcast %cst_5 : f32 to vector<128x512xf32>
    %7 = arith.maximumf %5, %6 : vector<128x512xf32>
    %8 = arith.truncf %7 : vector<128x512xf32> to vector<128x512xbf16>
    %c0_6 = arith.constant 0 : index
    %c0_7 = arith.constant 0 : index
    %9 = vector.load %arg4[%c0_6, %c0_7] : memref<512x512xbf16, #tpu.memory_space<vmem>>, vector<512x512xbf16>
    %cst_8 = arith.constant dense<0.000000e+00> : vector<128x512xf32>
    %10 = tpu.matmul %8, %9, %cst_8 {dimension_numbers = #tpu.dot_dimension_numbers<[1], [0], [0], [1], [0, 0, 1, 1], [], []>} : vector<128x512xbf16>, vector<512x512xbf16>, vector<128x512xf32> -> vector<128x512xf32>
    %c0_9 = arith.constant 0 : index
    %c0_10 = arith.constant 0 : index
    %11 = vector.load %arg5[%c0_9, %c0_10] : memref<1x512xf32, #tpu.memory_space<vmem>>, vector<1x512xf32>
    %12 = vector.broadcast %11 : vector<1x512xf32> to vector<128x512xf32>
    %13 = arith.addf %10, %12 : vector<128x512xf32>
    %cst_11 = arith.constant 0.000000e+00 : f32
    %14 = vector.broadcast %cst_11 : f32 to vector<128x512xf32>
    %15 = arith.maximumf %13, %14 : vector<128x512xf32>
    %16 = arith.truncf %15 : vector<128x512xf32> to vector<128x512xbf16>
    %c0_12 = arith.constant 0 : index
    %c0_13 = arith.constant 0 : index
    %17 = vector.load %arg6[%c0_12, %c0_13] : memref<512x256xbf16, #tpu.memory_space<vmem>>, vector<512x256xbf16>
    %cst_14 = arith.constant dense<0.000000e+00> : vector<128x256xf32>
    %18 = tpu.matmul %16, %17, %cst_14 {dimension_numbers = #tpu.dot_dimension_numbers<[1], [0], [0], [1], [0, 0, 1, 1], [], []>} : vector<128x512xbf16>, vector<512x256xbf16>, vector<128x256xf32> -> vector<128x256xf32>
    %c0_15 = arith.constant 0 : index
    %c0_16 = arith.constant 0 : index
    %19 = vector.load %arg7[%c0_15, %c0_16] : memref<1x256xf32, #tpu.memory_space<vmem>>, vector<1x256xf32>
    %20 = vector.broadcast %19 : vector<1x256xf32> to vector<128x256xf32>
    %21 = arith.addf %18, %20 : vector<128x256xf32>
    %cst_17 = arith.constant 0.000000e+00 : f32
    %22 = vector.broadcast %cst_17 : f32 to vector<128x256xf32>
    %23 = arith.maximumf %21, %22 : vector<128x256xf32>
    %24 = arith.truncf %23 : vector<128x256xf32> to vector<128x256xbf16>
    %c0_18 = arith.constant 0 : index
    %c0_19 = arith.constant 0 : index
    %25 = vector.load %arg8[%c0_18, %c0_19] : memref<256x128xbf16, #tpu.memory_space<vmem>>, vector<256x128xbf16>
    %cst_20 = arith.constant dense<0.000000e+00> : vector<128x128xf32>
    %26 = tpu.matmul %24, %25, %cst_20 {dimension_numbers = #tpu.dot_dimension_numbers<[1], [0], [0], [1], [0, 0, 1, 1], [], []>} : vector<128x256xbf16>, vector<256x128xbf16>, vector<128x128xf32> -> vector<128x128xf32>
    %c0_21 = arith.constant 0 : index
    %c0_22 = arith.constant 0 : index
    %27 = vector.load %arg9[%c0_21, %c0_22] : memref<1x128xf32, #tpu.memory_space<vmem>>, vector<1x128xf32>
    %28 = vector.broadcast %27 : vector<1x128xf32> to vector<128x128xf32>
    %29 = arith.addf %26, %28 : vector<128x128xf32>
    %cst_23 = arith.constant 0.000000e+00 : f32
    %30 = vector.broadcast %cst_23 : f32 to vector<128x128xf32>
    %31 = arith.maximumf %29, %30 : vector<128x128xf32>
    %32 = arith.truncf %31 : vector<128x128xf32> to vector<128x128xbf16>
    %c0_24 = arith.constant 0 : index
    %c0_25 = arith.constant 0 : index
    %33 = vector.load %arg10[%c0_24, %c0_25] : memref<128x128xbf16, #tpu.memory_space<vmem>>, vector<128x128xbf16>
    %cst_26 = arith.constant dense<0.000000e+00> : vector<128x128xf32>
    %34 = tpu.matmul %32, %33, %cst_26 {dimension_numbers = #tpu.dot_dimension_numbers<[1], [0], [0], [1], [0, 0, 1, 1], [], []>} : vector<128x128xbf16>, vector<128x128xbf16>, vector<128x128xf32> -> vector<128x128xf32>
    %c0_27 = arith.constant 0 : index
    %c0_28 = arith.constant 0 : index
    %35 = vector.load %arg11[%c0_27, %c0_28] : memref<1x128xf32, #tpu.memory_space<vmem>>, vector<1x128xf32>
    %36 = vector.broadcast %35 : vector<1x128xf32> to vector<128x128xf32>
    %37 = arith.addf %34, %36 : vector<128x128xf32>
    %cst_29 = arith.constant 0.000000e+00 : f32
    %38 = vector.broadcast %cst_29 : f32 to vector<128x128xf32>
    %39 = arith.maximumf %37, %38 : vector<128x128xf32>
    %40 = arith.truncf %39 : vector<128x128xf32> to vector<128x128xbf16>
    %c0_30 = arith.constant 0 : index
    %c0_31 = arith.constant 0 : index
    %41 = vector.load %arg12[%c0_30, %c0_31] : memref<128x128xbf16, #tpu.memory_space<vmem>>, vector<128x128xbf16>
    %cst_32 = arith.constant dense<0.000000e+00> : vector<128x128xf32>
    %42 = tpu.matmul %40, %41, %cst_32 {dimension_numbers = #tpu.dot_dimension_numbers<[1], [0], [0], [1], [0, 0, 1, 1], [], []>} : vector<128x128xbf16>, vector<128x128xbf16>, vector<128x128xf32> -> vector<128x128xf32>
    %c0_33 = arith.constant 0 : index
    %c0_34 = arith.constant 0 : index
    %43 = vector.load %arg13[%c0_33, %c0_34] : memref<1x128xf32, #tpu.memory_space<vmem>>, vector<1x128xf32>
    %44 = vector.broadcast %43 : vector<1x128xf32> to vector<128x128xf32>
    %45 = arith.addf %42, %44 : vector<128x128xf32>
    %c0_35 = arith.constant 0 : index
    %c0_36 = arith.constant 0 : index
    %46 = vector.load %arg14[%c0_35, %c0_36] : memref<128x128xf32, #tpu.memory_space<vmem>>, vector<128x128xf32>
    tpu.vector_store %arg14[%c0_35, %c0_36], %45 {strides = array<i32>} : memref<128x128xf32, #tpu.memory_space<vmem>>, vector<128x128xf32>,
    return
  }
  func.func @transform_0(%arg0: i32) -> (i32, i32) {
    %c0_i32 = arith.constant 0 : i32
    %c0_i32_0 = arith.constant 0 : i32
    return %arg0, %c0_i32 : i32, i32
  }
  func.func @transform_1(%arg0: i32) -> (i32, i32) {
    %c0_i32 = arith.constant 0 : i32
    %c0_i32_0 = arith.constant 0 : i32
    %c0_i32_1 = arith.constant 0 : i32
    return %c0_i32, %c0_i32_0 : i32, i32
  }
  func.func @transform_2(%arg0: i32) -> (i32, i32) {
    %c0_i32 = arith.constant 0 : i32
    %c0_i32_0 = arith.constant 0 : i32
    %c0_i32_1 = arith.constant 0 : i32
    return %c0_i32, %c0_i32_0 : i32, i32
  }
  func.func @transform_3(%arg0: i32) -> (i32, i32) {
    %c0_i32 = arith.constant 0 : i32
    %c0_i32_0 = arith.constant 0 : i32
    %c0_i32_1 = arith.constant 0 : i32
    return %c0_i32, %c0_i32_0 : i32, i32
  }
  func.func @transform_4(%arg0: i32) -> (i32, i32) {
    %c0_i32 = arith.constant 0 : i32
    %c0_i32_0 = arith.constant 0 : i32
    %c0_i32_1 = arith.constant 0 : i32
    return %c0_i32, %c0_i32_0 : i32, i32
  }
  func.func @transform_5(%arg0: i32) -> (i32, i32) {
    %c0_i32 = arith.constant 0 : i32
    %c0_i32_0 = arith.constant 0 : i32
    %c0_i32_1 = arith.constant 0 : i32
    return %c0_i32, %c0_i32_0 : i32, i32
  }
  func.func @transform_6(%arg0: i32) -> (i32, i32) {
    %c0_i32 = arith.constant 0 : i32
    %c0_i32_0 = arith.constant 0 : i32
    %c0_i32_1 = arith.constant 0 : i32
    return %c0_i32, %c0_i32_0 : i32, i32
  }
  func.func @transform_7(%arg0: i32) -> (i32, i32) {
    %c0_i32 = arith.constant 0 : i32
    %c0_i32_0 = arith.constant 0 : i32
    %c0_i32_1 = arith.constant 0 : i32
    return %c0_i32, %c0_i32_0 : i32, i32
  }
  func.func @transform_8(%arg0: i32) -> (i32, i32) {
    %c0_i32 = arith.constant 0 : i32
    %c0_i32_0 = arith.constant 0 : i32
    %c0_i32_1 = arith.constant 0 : i32
    return %c0_i32, %c0_i32_0 : i32, i32
  }
  func.func @transform_9(%arg0: i32) -> (i32, i32) {
    %c0_i32 = arith.constant 0 : i32
    %c0_i32_0 = arith.constant 0 : i32
    %c0_i32_1 = arith.constant 0 : i32
    return %c0_i32, %c0_i32_0 : i32, i32
  }
  func.func @transform_10(%arg0: i32) -> (i32, i32) {
    %c0_i32 = arith.constant 0 : i32
    %c0_i32_0 = arith.constant 0 : i32
    %c0_i32_1 = arith.constant 0 : i32
    return %c0_i32, %c0_i32_0 : i32, i32
  }
  func.func @transform_11(%arg0: i32) -> (i32, i32) {
    %c0_i32 = arith.constant 0 : i32
    %c0_i32_0 = arith.constant 0 : i32
    %c0_i32_1 = arith.constant 0 : i32
    return %c0_i32, %c0_i32_0 : i32, i32
  }
  func.func @transform_12(%arg0: i32) -> (i32, i32) {
    %c0_i32 = arith.constant 0 : i32
    %c0_i32_0 = arith.constant 0 : i32
    %c0_i32_1 = arith.constant 0 : i32
    return %c0_i32, %c0_i32_0 : i32, i32
  }
  func.func @transform_13(%arg0: i32) -> (i32, i32) {
    %c0_i32 = arith.constant 0 : i32
    %c0_i32_0 = arith.constant 0 : i32
    return %arg0, %c0_i32 : i32, i32
  }
}

</mosaic_0001>

<llo_original>
// kernel: net2512_forward.1
$region0: #{net2512_forward.1}
  #allocation0 [shape = 'u32[]', space=smem, size = 0x4, offset = 0x4, fixed_abs, tag = 'smem constant byte address 0x4 - core index']
  #allocation1 [shape = 'u32[144,128]{1,0:T(1,128)}', space=vmem, size = 0x12000, scoped, tag = 'internal scratch']
  %s0 = inlined_call_operand.vmem [shape: bf16[256,128], index: 0, kind: input, shape index: {}]
  %s1 = inlined_call_operand.vmem [shape: bf16[128,512], index: 1, kind: input, shape index: {}]
  %s2 = inlined_call_operand.vmem [shape: f32[1,512], index: 2, kind: input, shape index: {}]
  %s3 = inlined_call_operand.vmem [shape: bf16[512,512], index: 3, kind: input, shape index: {}]
  %s4 = inlined_call_operand.vmem [shape: f32[1,512], index: 4, kind: input, shape index: {}]
  %s5 = inlined_call_operand.vmem [shape: bf16[512,256], index: 5, kind: input, shape index: {}]
  %s6 = inlined_call_operand.vmem [shape: f32[1,256], index: 6, kind: input, shape index: {}]
  %s7 = inlined_call_operand.vmem [shape: bf16[256,128], index: 7, kind: input, shape index: {}]
  %s8 = inlined_call_operand.vmem [shape: f32[1,128], index: 8, kind: input, shape index: {}]
  %s9 = inlined_call_operand.vmem [shape: bf16[128,128], index: 9, kind: input, shape index: {}]
  %s10 = inlined_call_operand.vmem [shape: f32[1,128], index: 10, kind: input, shape index: {}]
  %s11 = inlined_call_operand.vmem [shape: bf16[128,128], index: 11, kind: input, shape index: {}]
  %s12 = inlined_call_operand.vmem [shape: f32[1,128], index: 12, kind: input, shape index: {}]
  %s13 = inlined_call_operand.vmem [shape: f32[256,128], index: 13, kind: output, shape index: {}]
  %s14 = sld [smem:[#allocation0]]
  $region85: #{net2512_forward.1} parent=0
    _
  %s16 = ssub.s32 1, %s14
  %s17 = scalar_select 0, %s16, %s14
  loop: start=0, step=1, limit=4
  $region2: #{net2512_forward.1} parent=0 // loop_pre_header
    _
  $region3: #{net2512_forward.1} parent=0 // loop_header
    %s19 = sphi 0, %s23
    %p20 = scmp.ge.s32.totalorder %s19, 4
    %s29 = sphi 0, %s31
    %s32 = sphi 0, %s29
    %s33 = sphi 0, %s32
    %s49 = sphi 0, %s33
    %s53 = sphi 0, %s53
    %s55 = sphi 0, %s53
    %s56 = sphi 0, %s55
    %s70 = sphi 0, %s56
    %s74 = sphi 0, %s74
    %s76 = sphi 0, %s74
    %s77 = sphi 0, %s76
    %s91 = sphi 0, %s77
    %s95 = sphi 0, %s95
    %s97 = sphi 0, %s95
    %s98 = sphi 0, %s97
    %s112 = sphi 0, %s98
    %s116 = sphi 0, %s116
    %s118 = sphi 0, %s116
    %s119 = sphi 0, %s118
    %s133 = sphi 0, %s119
    %s137 = sphi 0, %s137
    %s139 = sphi 0, %s137
    %s140 = sphi 0, %s139
    %s154 = sphi 0, %s140
    %s158 = sphi 0, %s158
    %s160 = sphi 0, %s158
    %s161 = sphi 0, %s160
    %s175 = sphi 0, %s161
    %s179 = sphi 0, %s179
    %s181 = sphi 0, %s179
    %s182 = sphi 0, %s181
    %s196 = sphi 0, %s182
    %s200 = sphi 0, %s200
    %s202 = sphi 0, %s200
    %s203 = sphi 0, %s202
    %s217 = sphi 0, %s203
    %s221 = sphi 0, %s221
    %s223 = sphi 0, %s221
    %s224 = sphi 0, %s223
    %s238 = sphi 0, %s224
    %s242 = sphi 0, %s242
    %s244 = sphi 0, %s242
    %s245 = sphi 0, %s244
    %s259 = sphi 0, %s245
    %s263 = sphi 0, %s263
    %s265 = sphi 0, %s263
    %s266 = sphi 0, %s265
    %s280 = sphi 0, %s266
    %s284 = sphi 0, %s284
    %s286 = sphi 0, %s284
    %s287 = sphi 0, %s286
    %s301 = sphi 0, %s287
    %s307 = sphi 0, %s309
    %s310 = sphi 0, %s307
    %s311 = sphi 0, %s310
    %s327 = sphi 0, %s311
  $region4: #{net2512_forward.1} parent=0 // loop_header_branch
    %22 = sbr.rel (%p20) target = $region8
  $region5: #{net2512_forward.1} parent=0 // loop_body
    %s24 = ssub.s32 %s19, 1
    %s25 = ssub.s32 %s19, 2
    %s26 = sadd.s32 %s19, 1
    %s27 = ssub.s32 %s19, %s26
    %p28 = scmp.eq.s32.totalorder %s27, 0
    %s30 = sadd.s32 %s29, 1
    %s31 = scalar_select %p28, %s29, %s30
    %p34 = pneg %p28
    %p35 = scmp.eq.s32.totalorder %s19, 1
    %p36 = por %p34, %p35
    %p37 = scmp.ne.s32.totalorder %s29, %s32
    %p38 = scmp.eq.s32.totalorder %s19, 0
    %p39 = por %p37, %p38
    %p40 = scmp.ne.s32.totalorder %s29, %s32
    %p41 = scmp.eq.s32.totalorder %s24, 1
    %p42 = por %p40, %p41
    %p43 = scmp.ne.s32.totalorder %s32, %s33
    %p44 = scmp.eq.s32.totalorder %s24, 0
    %p45 = por %p43, %p44
    %p46 = scmp.ne.s32.totalorder %s32, %s33
    %p47 = scmp.eq.s32.totalorder %s25, 1
    %p48 = por %p46, %p47
    %p50 = scmp.ne.s32.totalorder %s33, %s49
    %p51 = scmp.eq.s32.totalorder %s25, 0
    %p52 = por %p50, %p51
    %s54 = sadd.s32 %s53, 1
    %p57 = scmp.eq.s32.totalorder %s19, 1
    %p58 = scmp.ne.s32.totalorder %s53, %s55
    %p59 = scmp.eq.s32.totalorder %s19, 0
    %p60 = por %p58, %p59
    %p61 = scmp.ne.s32.totalorder %s53, %s55
    %p62 = scmp.eq.s32.totalorder %s24, 1
    %p63 = por %p61, %p62
    %p64 = scmp.ne.s32.totalorder %s55, %s56
    %p65 = scmp.eq.s32.totalorder %s24, 0
    %p66 = por %p64, %p65
    %p67 = scmp.ne.s32.totalorder %s55, %s56
    %p68 = scmp.eq.s32.totalorder %s25, 1
    %p69 = por %p67, %p68
    %p71 = scmp.ne.s32.totalorder %s56, %s70
    %p72 = scmp.eq.s32.totalorder %s25, 0
    %p73 = por %p71, %p72
    %s75 = sadd.s32 %s74, 1
    %p78 = scmp.eq.s32.totalorder %s19, 1
    %p79 = scmp.ne.s32.totalorder %s74, %s76
    %p80 = scmp.eq.s32.totalorder %s19, 0
    %p81 = por %p79, %p80
    %p82 = scmp.ne.s32.totalorder %s74, %s76
    %p83 = scmp.eq.s32.totalorder %s24, 1
    %p84 = por %p82, %p83
    %p85 = scmp.ne.s32.totalorder %s76, %s77
    %p86 = scmp.eq.s32.totalorder %s24, 0
    %p87 = por %p85, %p86
    %p88 = scmp.ne.s32.totalorder %s76, %s77
    %p89 = scmp.eq.s32.totalorder %s25, 1
    %p90 = por %p88, %p89
    %p92 = scmp.ne.s32.totalorder %s77, %s91
    %p93 = scmp.eq.s32.totalorder %s25, 0
    %p94 = por %p92, %p93
    %s96 = sadd.s32 %s95, 1
    %p99 = scmp.eq.s32.totalorder %s19, 1
    %p100 = scmp.ne.s32.totalorder %s95, %s97
    %p101 = scmp.eq.s32.totalorder %s19, 0
    %p102 = por %p100, %p101
    %p103 = scmp.ne.s32.totalorder %s95, %s97
    %p104 = scmp.eq.s32.totalorder %s24, 1
    %p105 = por %p103, %p104
    %p106 = scmp.ne.s32.totalorder %s97, %s98
    %p107 = scmp.eq.s32.totalorder %s24, 0
    %p108 = por %p106, %p107
    %p109 = scmp.ne.s32.totalorder %s97, %s98
    %p110 = scmp.eq.s32.totalorder %s25, 1
    %p111 = por %p109, %p110
    %p113 = scmp.ne.s32.totalorder %s98, %s112
    %p114 = scmp.eq.s32.totalorder %s25, 0
    %p115 = por %p113, %p114
    %s117 = sadd.s32 %s116, 1
    %p120 = scmp.eq.s32.totalorder %s19, 1
    %p121 = scmp.ne.s32.totalorder %s116, %s118
    %p122 = scmp.eq.s32.totalorder %s19, 0
    %p123 = por %p121, %p122
    %p124 = scmp.ne.s32.totalorder %s116, %s118
    %p125 = scmp.eq.s32.totalorder %s24, 1
    %p126 = por %p124, %p125
    %p127 = scmp.ne.s32.totalorder %s118, %s119
    %p128 = scmp.eq.s32.totalorder %s24, 0
    %p129 = por %p127, %p128
    %p130 = scmp.ne.s32.totalorder %s118, %s119
    %p131 = scmp.eq.s32.totalorder %s25, 1
    %p132 = por %p130, %p131
    %p134 = scmp.ne.s32.totalorder %s119, %s133
    %p135 = scmp.eq.s32.totalorder %s25, 0
    %p136 = por %p134, %p135
    %s138 = sadd.s32 %s137, 1
    %p141 = scmp.eq.s32.totalorder %s19, 1
    %p142 = scmp.ne.s32.totalorder %s137, %s139
    %p143 = scmp.eq.s32.totalorder %s19, 0
    %p144 = por %p142, %p143
    %p145 = scmp.ne.s32.totalorder %s137, %s139
    %p146 = scmp.eq.s32.totalorder %s24, 1
    %p147 = por %p145, %p146
    %p148 = scmp.ne.s32.totalorder %s139, %s140
    %p149 = scmp.eq.s32.totalorder %s24, 0
    %p150 = por %p148, %p149
    %p151 = scmp.ne.s32.totalorder %s139, %s140
    %p152 = scmp.eq.s32.totalorder %s25, 1
    %p153 = por %p151, %p152
    %p155 = scmp.ne.s32.totalorder %s140, %s154
    %p156 = scmp.eq.s32.totalorder %s25, 0
    %p157 = por %p155, %p156
    %s159 = sadd.s32 %s158, 1
    %p162 = scmp.eq.s32.totalorder %s19, 1
    %p163 = scmp.ne.s32.totalorder %s158, %s160
    %p164 = scmp.eq.s32.totalorder %s19, 0
    %p165 = por %p163, %p164
    %p166 = scmp.ne.s32.totalorder %s158, %s160
    %p167 = scmp.eq.s32.totalorder %s24, 1
    %p168 = por %p166, %p167
    %p169 = scmp.ne.s32.totalorder %s160, %s161
    %p170 = scmp.eq.s32.totalorder %s24, 0
    %p171 = por %p169, %p170
    %p172 = scmp.ne.s32.totalorder %s160, %s161
    %p173 = scmp.eq.s32.totalorder %s25, 1
    %p174 = por %p172, %p173
    %p176 = scmp.ne.s32.totalorder %s161, %s175
    %p177 = scmp.eq.s32.totalorder %s25, 0
    %p178 = por %p176, %p177
    %s180 = sadd.s32 %s179, 1
    %p183 = scmp.eq.s32.totalorder %s19, 1
    %p184 = scmp.ne.s32.totalorder %s179, %s181
    %p185 = scmp.eq.s32.totalorder %s19, 0
    %p186 = por %p184, %p185
    %p187 = scmp.ne.s32.totalorder %s179, %s181
    %p188 = scmp.eq.s32.totalorder %s24, 1
    %p189 = por %p187, %p188
    %p190 = scmp.ne.s32.totalorder %s181, %s182
    %p191 = scmp.eq.s32.totalorder %s24, 0
    %p192 = por %p190, %p191
    %p193 = scmp.ne.s32.totalorder %s181, %s182
    %p194 = scmp.eq.s32.totalorder %s25, 1
    %p195 = por %p193, %p194
    %p197 = scmp.ne.s32.totalorder %s182, %s196
    %p198 = scmp.eq.s32.totalorder %s25, 0
    %p199 = por %p197, %p198
    %s201 = sadd.s32 %s200, 1
    %p204 = scmp.eq.s32.totalorder %s19, 1
    %p205 = scmp.ne.s32.totalorder %s200, %s202
    %p206 = scmp.eq.s32.totalorder %s19, 0
    %p207 = por %p205, %p206
    %p208 = scmp.ne.s32.totalorder %s200, %s202
    %p209 = scmp.eq.s32.totalorder %s24, 1
    %p210 = por %p208, %p209
    %p211 = scmp.ne.s32.totalorder %s202, %s203
    %p212 = scmp.eq.s32.totalorder %s24, 0
    %p213 = por %p211, %p212
    %p214 = scmp.ne.s32.totalorder %s202, %s203
    %p215 = scmp.eq.s32.totalorder %s25, 1
    %p216 = por %p214, %p215
    %p218 = scmp.ne.s32.totalorder %s203, %s217
    %p219 = scmp.eq.s32.totalorder %s25, 0
    %p220 = por %p218, %p219
    %s222 = sadd.s32 %s221, 1
    %p225 = scmp.eq.s32.totalorder %s19, 1
    %p226 = scmp.ne.s32.totalorder %s221, %s223
    %p227 = scmp.eq.s32.totalorder %s19, 0
    %p228 = por %p226, %p227
    %p229 = scmp.ne.s32.totalorder %s221, %s223
    %p230 = scmp.eq.s32.totalorder %s24, 1
    %p231 = por %p229, %p230
    %p232 = scmp.ne.s32.totalorder %s223, %s224
    %p233 = scmp.eq.s32.totalorder %s24, 0
    %p234 = por %p232, %p233
    %p235 = scmp.ne.s32.totalorder %s223, %s224
    %p236 = scmp.eq.s32.totalorder %s25, 1
    %p237 = por %p235, %p236
    %p239 = scmp.ne.s32.totalorder %s224, %s238
    %p240 = scmp.eq.s32.totalorder %s25, 0
    %p241 = por %p239, %p240
    %s243 = sadd.s32 %s242, 1
    %p246 = scmp.eq.s32.totalorder %s19, 1
    %p247 = scmp.ne.s32.totalorder %s242, %s244
    %p248 = scmp.eq.s32.totalorder %s19, 0
    %p249 = por %p247, %p248
    %p250 = scmp.ne.s32.totalorder %s242, %s244
    %p251 = scmp.eq.s32.totalorder %s24, 1
    %p252 = por %p250, %p251
    %p253 = scmp.ne.s32.totalorder %s244, %s245
    %p254 = scmp.eq.s32.totalorder %s24, 0
    %p255 = por %p253, %p254
    %p256 = scmp.ne.s32.totalorder %s244, %s245
    %p257 = scmp.eq.s32.totalorder %s25, 1
    %p258 = por %p256, %p257
    %p260 = scmp.ne.s32.totalorder %s245, %s259
    %p261 = scmp.eq.s32.totalorder %s25, 0
    %p262 = por %p260, %p261
    %s264 = sadd.s32 %s263, 1
    %p267 = scmp.eq.s32.totalorder %s19, 1
    %p268 = scmp.ne.s32.totalorder %s263, %s265
    %p269 = scmp.eq.s32.totalorder %s19, 0
    %p270 = por %p268, %p269
    %p271 = scmp.ne.s32.totalorder %s263, %s265
    %p272 = scmp.eq.s32.totalorder %s24, 1
    %p273 = por %p271, %p272
    %p274 = scmp.ne.s32.totalorder %s265, %s266
    %p275 = scmp.eq.s32.totalorder %s24, 0
    %p276 = por %p274, %p275
    %p277 = scmp.ne.s32.totalorder %s265, %s266
    %p278 = scmp.eq.s32.totalorder %s25, 1
    %p279 = por %p277, %p278
    %p281 = scmp.ne.s32.totalorder %s266, %s280
    %p282 = scmp.eq.s32.totalorder %s25, 0
    %p283 = por %p281, %p282
    %s285 = sadd.s32 %s284, 1
    %p288 = scmp.eq.s32.totalorder %s19, 1
    %p289 = scmp.ne.s32.totalorder %s284, %s286
    %p290 = scmp.eq.s32.totalorder %s19, 0
    %p291 = por %p289, %p290
    %p292 = scmp.ne.s32.totalorder %s284, %s286
    %p293 = scmp.eq.s32.totalorder %s24, 1
    %p294 = por %p292, %p293
    %p295 = scmp.ne.s32.totalorder %s286, %s287
    %p296 = scmp.eq.s32.totalorder %s24, 0
    %p297 = por %p295, %p296
    %p298 = scmp.ne.s32.totalorder %s286, %s287
    %p299 = scmp.eq.s32.totalorder %s25, 1
    %p300 = por %p298, %p299
    %p302 = scmp.ne.s32.totalorder %s287, %s301
    %p303 = scmp.eq.s32.totalorder %s25, 0
    %p304 = por %p302, %p303
    %s305 = ssub.s32 %s19, %s26
    %p306 = scmp.eq.s32.totalorder %s305, 0
    %s308 = sadd.s32 %s307, 1
    %s309 = scalar_select %p306, %s307, %s308
    %p312 = pneg %p306
    %p313 = scmp.eq.s32.totalorder %s19, 1
    %p314 = por %p312, %p313
    %p315 = scmp.ne.s32.totalorder %s307, %s310
    %p316 = scmp.eq.s32.totalorder %s19, 0
    %p317 = por %p315, %p316
    %p318 = scmp.ne.s32.totalorder %s307, %s310
    %p319 = scmp.eq.s32.totalorder %s24, 1
    %p320 = por %p318, %p319
    %p321 = scmp.ne.s32.totalorder %s310, %s311
    %p322 = scmp.eq.s32.totalorder %s24, 0
    %p323 = por %p321, %p322
    %p324 = scmp.ne.s32.totalorder %s310, %s311
    %p325 = scmp.eq.s32.totalorder %s25, 1
    %p326 = por %p324, %p325
    %p328 = scmp.ne.s32.totalorder %s311, %s327
    %p329 = scmp.eq.s32.totalorder %s25, 0
    %p330 = por %p328, %p329
    %p331 = scmp.le.s32.totalorder 1, %s19
    %p332 = scmp.lt.s32.totalorder %s19, 3
    %p333 = pnand %p331, %p332
    %p334 = pneg %p333
    // Predicated region
    $region9: #{net2512_forward.1} parent=5 // pred_check
      _
    $region10: #{net2512_forward.1} parent=5 // pred_check_branch
      %336 = sbr.rel (%p333) target = $region12
    $region11: #{net2512_forward.1} parent=5 // pred_region
      %s337 = ssub.s32 %s19, 1
      // Predicated region
      $region13: #{net2512_forward.1} parent=11 // pred_check
        %p338 = pneg %p66
      $region14: #{net2512_forward.1} parent=11 // pred_check_branch
        %340 = sbr.rel (%p338) target = $region16
      $region15: #{net2512_forward.1} parent=11 // pred_region
        _
      $region16: #{net2512_forward.1} parent=11 // pred_fallthru
        _
      // Predicated region
      $region17: #{net2512_forward.1} parent=11 // pred_check
        %p341 = pneg %p87
      $region18: #{net2512_forward.1} parent=11 // pred_check_branch
        %343 = sbr.rel (%p341) target = $region20
      $region19: #{net2512_forward.1} parent=11 // pred_region
        _
      $region20: #{net2512_forward.1} parent=11 // pred_fallthru
        _
      // Predicated region
      $region21: #{net2512_forward.1} parent=11 // pred_check
        %p344 = pneg %p108
      $region22: #{net2512_forward.1} parent=11 // pred_check_branch
        %346 = sbr.rel (%p344) target = $region24
      $region23: #{net2512_forward.1} parent=11 // pred_region
        _
      $region24: #{net2512_forward.1} parent=11 // pred_fallthru
        _
      // Predicated region
      $region25: #{net2512_forward.1} parent=11 // pred_check
        %p347 = pneg %p129
      $region26: #{net2512_forward.1} parent=11 // pred_check_branch
        %349 = sbr.rel (%p347) target = $region28
      $region27: #{net2512_forward.1} parent=11 // pred_region
        _
      $region28: #{net2512_forward.1} parent=11 // pred_fallthru
        _
      // Predicated region
      $region29: #{net2512_forward.1} parent=11 // pred_check
        %p350 = pneg %p150
      $region30: #{net2512_forward.1} parent=11 // pred_check_branch
        %352 = sbr.rel (%p350) target = $region32
      $region31: #{net2512_forward.1} parent=11 // pred_region
        _
      $region32: #{net2512_forward.1} parent=11 // pred_fallthru
        _
      // Predicated region
      $region33: #{net2512_forward.1} parent=11 // pred_check
        %p353 = pneg %p171
      $region34: #{net2512_forward.1} parent=11 // pred_check_branch
        %355 = sbr.rel (%p353) target = $region36
      $region35: #{net2512_forward.1} parent=11 // pred_region
        _
      $region36: #{net2512_forward.1} parent=11 // pred_fallthru
        _
      // Predicated region
      $region37: #{net2512_forward.1} parent=11 // pred_check
        %p356 = pneg %p192
      $region38: #{net2512_forward.1} parent=11 // pred_check_branch
        %358 = sbr.rel (%p356) target = $region40
      $region39: #{net2512_forward.1} parent=11 // pred_region
        _
      $region40: #{net2512_forward.1} parent=11 // pred_fallthru
        _
      // Predicated region
      $region41: #{net2512_forward.1} parent=11 // pred_check
        %p359 = pneg %p213
      $region42: #{net2512_forward.1} parent=11 // pred_check_branch
        %361 = sbr.rel (%p359) target = $region44
      $region43: #{net2512_forward.1} parent=11 // pred_region
        _
      $region44: #{net2512_forward.1} parent=11 // pred_fallthru
        _
      // Predicated region
      $region45: #{net2512_forward.1} parent=11 // pred_check
        %p362 = pneg %p234
      $region46: #{net2512_forward.1} parent=11 // pred_check_branch
        %364 = sbr.rel (%p362) target = $region48
      $region47: #{net2512_forward.1} parent=11 // pred_region
        _
      $region48: #{net2512_forward.1} parent=11 // pred_fallthru
        _
      // Predicated region
      $region49: #{net2512_forward.1} parent=11 // pred_check
        %p365 = pneg %p255
      $region50: #{net2512_forward.1} parent=11 // pred_check_branch
        %367 = sbr.rel (%p365) target = $region52
      $region51: #{net2512_forward.1} parent=11 // pred_region
        _
      $region52: #{net2512_forward.1} parent=11 // pred_fallthru
        _
      // Predicated region
      $region53: #{net2512_forward.1} parent=11 // pred_check
        %p368 = pneg %p276
      $region54: #{net2512_forward.1} parent=11 // pred_check_branch
        %370 = sbr.rel (%p368) target = $region56
      $region55: #{net2512_forward.1} parent=11 // pred_region
        _
      $region56: #{net2512_forward.1} parent=11 // pred_fallthru
        _
      // Predicated region
      $region57: #{net2512_forward.1} parent=11 // pred_check
        %p371 = pneg %p297
      $region58: #{net2512_forward.1} parent=11 // pred_check_branch
        %373 = sbr.rel (%p371) target = $region60
      $region59: #{net2512_forward.1} parent=11 // pred_region
        _
      $region60: #{net2512_forward.1} parent=11 // pred_fallthru
        _
    $region12: #{net2512_forward.1} parent=5 // pred_fallthru
      _
    %p374 = scmp.lt.s32.totalorder %s19, 2
    // Predicated region
    $region61: #{net2512_forward.1} parent=5 // pred_check
      %p375 = pneg %p374
    $region62: #{net2512_forward.1} parent=5 // pred_check_branch
      %377 = sbr.rel (%p375) target = $region64
    $region63: #{net2512_forward.1} parent=5 // pred_region
      // Predicated region
      $region65: #{net2512_forward.1} parent=63 // pred_check
        %p378 = pneg %p39
      $region66: #{net2512_forward.1} parent=63 // pred_check_branch
        %380 = sbr.rel (%p378) target = $region68
      $region67: #{net2512_forward.1} parent=63 // pred_region
        %s381 = smul.u32 16, %s19
        %p382 = scmp.lt.s32.totalorder %s381, 31
        %s383 = scalar_select %p382, %s381, 31
        %s384 = smul.addr %s383, 4
        %s385 = scalar_lea.vmem %s0, %s384
        %s386 = smul.u32 16, %s19
      $region68: #{net2512_forward.1} parent=63 // pred_fallthru
        _
    $region64: #{net2512_forward.1} parent=5 // pred_fallthru
      _
    %p387 = scmp.le.s32.totalorder 1, %s19
    %p388 = scmp.lt.s32.totalorder %s19, 3
    %p389 = pnand %p387, %p388
    %p390 = pneg %p389
    // Predicated region
    $region69: #{net2512_forward.1} parent=5 // pred_check
      _
    $region70: #{net2512_forward.1} parent=5 // pred_check_branch
      %392 = sbr.rel (%p389) target = $region72
    $region71: #{net2512_forward.1} parent=5 // pred_region
      %s393 = ssub.s32 %s19, 1
      %s394 = smul.u32 16, %s24
      %p395 = scmp.lt.s32.totalorder %s394, 31
      %s396 = scalar_select %p395, %s394, 31
      %s397 = smul.addr %s396, 4
      %s398 = scalar_lea.vmem %s0, %s397
      %p399 = pneg %p45
      %p400 = pneg %p42
      %p401 = pneg %p66
      %p402 = pneg %p63
      %p403 = pneg %p87
      %p404 = pneg %p84
      %p405 = pneg %p108
      %p406 = pneg %p105
      %p407 = pneg %p129
      %p408 = pneg %p126
      %p409 = pneg %p150
      %p410 = pneg %p147
      %p411 = pneg %p171
      %p412 = pneg %p168
      %p413 = pneg %p192
      %p414 = pneg %p189
      %p415 = pneg %p213
      %p416 = pneg %p210
      %p417 = pneg %p234
      %p418 = pneg %p231
      %p419 = pneg %p255
      %p420 = pneg %p252
      %p421 = pneg %p276
      %p422 = pneg %p273
      %p423 = pneg %p297
      %p424 = pneg %p294
      %p425 = pneg %p323
      %p426 = pneg %p320
      %s427 = smul.u32 16, %s24
      %p428 = scmp.lt.s32.totalorder %s427, 31
      %s429 = scalar_select %p428, %s427, 31
      %s430 = smul.addr %s429, 8
      %s431 = scalar_lea.vmem %s13, %s430
      %s432 = smul.u32 16, %s24
      %p433 = scmp.lt.s32.totalorder %s432, 31
      %s434 = scalar_select %p433, %s432, 31
      %s435 = smul.addr %s434, 4
      %s436 = scalar_lea.vmem %s0, %s435
      %s437 = smul.u32 16, %s24
      %s438 = smul.u32 16, %s24
      %p439 = scmp.lt.s32.totalorder %s438, 31
      %s440 = scalar_select %p439, %s438, 31
      %s441 = smul.addr %s440, 8
      %s442 = scalar_lea.vmem %s13, %s441
      %s443 = smul.u32 16, %s24
      %v445 = vld [vmem:[%s436] sm:$0xf]
      %v446 = vld [vmem:[%s436 + $0x4] sm:$0xf]
      %v447 = vld [vmem:[%s436 + $0x8] sm:$0xf]
      %v448 = vld [vmem:[%s436 + $0xc] sm:$0xf]
      %v449 = vld [vmem:[%s436 + $0x10] sm:$0xf]
      %v450 = vld [vmem:[%s436 + $0x14] sm:$0xf]
      %v451 = vld [vmem:[%s436 + $0x18] sm:$0xf]
      %v452 = vld [vmem:[%s436 + $0x1c] sm:$0xf]
      %v453 = vld [vmem:[%s436 + $0x20] sm:$0xf]
      %v454 = vld [vmem:[%s436 + $0x24] sm:$0xf]
      %v455 = vld [vmem:[%s436 + $0x28] sm:$0xf]
      %v456 = vld [vmem:[%s436 + $0x2c] sm:$0xf]
      %v457 = vld [vmem:[%s436 + $0x30] sm:$0xf]
      %v458 = vld [vmem:[%s436 + $0x34] sm:$0xf]
      %v459 = vld [vmem:[%s436 + $0x38] sm:$0xf]
      %v460 = vld [vmem:[%s436 + $0x3c] sm:$0xf]
      %v461 = vld [vmem:[%s1] sm:$0xff]
      %v462 = vld [vmem:[%s1 + $0x8] sm:$0xff]
      %v463 = vld [vmem:[%s1 + $0x10] sm:$0xff]
      %v464 = vld [vmem:[%s1 + $0x18] sm:$0xff]
      %v465 = vld [vmem:[%s1 + $0x20] sm:$0xff]
      %v466 = vld [vmem:[%s1 + $0x28] sm:$0xff]
      %v467 = vld [vmem:[%s1 + $0x30] sm:$0xff]
      %v468 = vld [vmem:[%s1 + $0x38] sm:$0xff]
      %v469 = vld [vmem:[%s1 + $0x40] sm:$0xff]
      %v470 = vld [vmem:[%s1 + $0x48] sm:$0xff]
      %v471 = vld [vmem:[%s1 + $0x50] sm:$0xff]
      %v472 = vld [vmem:[%s1 + $0x58] sm:$0xff]
      %v473 = vld [vmem:[%s1 + $0x60] sm:$0xff]
      %v474 = vld [vmem:[%s1 + $0x68] sm:$0xff]
      %v475 = vld [vmem:[%s1 + $0x70] sm:$0xff]
      %v476 = vld [vmem:[%s1 + $0x78] sm:$0xff]
      %v477 = vld [vmem:[%s1 + $0x80] sm:$0xff]
      %v478 = vld [vmem:[%s1 + $0x88] sm:$0xff]
      %v479 = vld [vmem:[%s1 + $0x90] sm:$0xff]
      %v480 = vld [vmem:[%s1 + $0x98] sm:$0xff]
      %v481 = vld [vmem:[%s1 + $0xa0] sm:$0xff]
      %v482 = vld [vmem:[%s1 + $0xa8] sm:$0xff]
      %v483 = vld [vmem:[%s1 + $0xb0] sm:$0xff]
      %v484 = vld [vmem:[%s1 + $0xb8] sm:$0xff]
      %v485 = vld [vmem:[%s1 + $0xc0] sm:$0xff]
      %v486 = vld [vmem:[%s1 + $0xc8] sm:$0xff]
      %v487 = vld [vmem:[%s1 + $0xd0] sm:$0xff]
      %v488 = vld [vmem:[%s1 + $0xd8] sm:$0xff]
      %v489 = vld [vmem:[%s1 + $0xe0] sm:$0xff]
      %v490 = vld [vmem:[%s1 + $0xe8] sm:$0xff]
      %v491 = vld [vmem:[%s1 + $0xf0] sm:$0xff]
      %v492 = vld [vmem:[%s1 + $0xf8] sm:$0xff]
      %v493 = vld [vmem:[%s2] sm:$0xf]
      %v495 = vlaneseq
      %v496 = vshrl.u32 %v495, 7
      %v497 = vsub.s32 0, %v496
      %v498 = vrot.slane %v493, %v497
      %v499 = vlaneseq
      %v500 = vshrl.u32 %v499, 7
      %v501 = vsub.s32 1, %v500
      %v502 = vrot.slane %v493, %v501
      %v503 = vlaneseq
      %v504 = vshrl.u32 %v503, 7
      %v505 = vsub.s32 2, %v504
      %v506 = vrot.slane %v493, %v505
      %v507 = vlaneseq
      %v508 = vshrl.u32 %v507, 7
      %v509 = vsub.s32 3, %v508
      %v510 = vrot.slane %v493, %v509
      %v531 = vunpack.c.l.b16 %v445
      %v532 = vunpack.c.l.b16 %v446
      %v533 = vunpack.c.l.b16 %v447
      %v534 = vunpack.c.l.b16 %v448
      %v535 = vunpack.c.l.b16 %v449
      %v536 = vunpack.c.l.b16 %v450
      %v537 = vunpack.c.l.b16 %v451
      %v538 = vunpack.c.l.b16 %v452
      %v539 = vunpack.c.l.b16 %v453
      %v540 = vunpack.c.l.b16 %v454
      %v541 = vunpack.c.l.b16 %v455
      %v542 = vunpack.c.l.b16 %v456
      %v543 = vunpack.c.l.b16 %v457
      %v544 = vunpack.c.l.b16 %v458
      %v545 = vunpack.c.l.b16 %v459
      %v546 = vunpack.c.l.b16 %v460
      %v547 = vpack.c.b16 %v532, %v531
      %v548 = vpack.c.b16 %v534, %v533
      %v549 = vpack.c.b16 %v536, %v535
      %v550 = vpack.c.b16 %v538, %v537
      %v551 = vpack.c.b16 %v540, %v539
      %v552 = vpack.c.b16 %v542, %v541
      %v553 = vpack.c.b16 %v544, %v543
      %v554 = vpack.c.b16 %v546, %v545
      %v595 = vunpack.c.l.b16 %v461
      %v596 = vunpack.c.h.b16 %v461
      %v597 = vunpack.c.l.b16 %v462
      %v598 = vunpack.c.h.b16 %v462
      %v599 = vunpack.c.l.b16 %v463
      %v600 = vunpack.c.h.b16 %v463
      %v601 = vunpack.c.l.b16 %v464
      %v602 = vunpack.c.h.b16 %v464
      %v603 = vunpack.c.l.b16 %v465
      %v604 = vunpack.c.h.b16 %v465
      %v605 = vunpack.c.l.b16 %v466
      %v606 = vunpack.c.h.b16 %v466
      %v607 = vunpack.c.l.b16 %v467
      %v608 = vunpack.c.h.b16 %v467
      %v609 = vunpack.c.l.b16 %v468
      %v610 = vunpack.c.h.b16 %v468
      %v611 = vunpack.c.l.b16 %v469
      %v612 = vunpack.c.h.b16 %v469
      %v613 = vunpack.c.l.b16 %v470
      %v614 = vunpack.c.h.b16 %v470
      %v615 = vunpack.c.l.b16 %v471
      %v616 = vunpack.c.h.b16 %v471
      %v617 = vunpack.c.l.b16 %v472
      %v618 = vunpack.c.h.b16 %v472
      %v619 = vunpack.c.l.b16 %v473
      %v620 = vunpack.c.h.b16 %v473
      %v621 = vunpack.c.l.b16 %v474
      %v622 = vunpack.c.h.b16 %v474
      %v623 = vunpack.c.l.b16 %v475
      %v624 = vunpack.c.h.b16 %v475
      %v625 = vunpack.c.l.b16 %v476
      %v626 = vunpack.c.h.b16 %v476
      %v627 = vunpack.c.l.b16 %v477
      %v628 = vunpack.c.h.b16 %v477
      %v629 = vunpack.c.l.b16 %v478
      %v630 = vunpack.c.h.b16 %v478
      %v631 = vunpack.c.l.b16 %v479
      %v632 = vunpack.c.h.b16 %v479
      %v633 = vunpack.c.l.b16 %v480
      %v634 = vunpack.c.h.b16 %v480
      %v635 = vunpack.c.l.b16 %v481
      %v636 = vunpack.c.h.b16 %v481
      %v637 = vunpack.c.l.b16 %v482
      %v638 = vunpack.c.h.b16 %v482
      %v639 = vunpack.c.l.b16 %v483
      %v640 = vunpack.c.h.b16 %v483
      %v641 = vunpack.c.l.b16 %v484
      %v642 = vunpack.c.h.b16 %v484
      %v643 = vunpack.c.l.b16 %v485
      %v644 = vunpack.c.h.b16 %v485
      %v645 = vunpack.c.l.b16 %v486
      %v646 = vunpack.c.h.b16 %v486
      %v647 = vunpack.c.l.b16 %v487
      %v648 = vunpack.c.h.b16 %v487
      %v649 = vunpack.c.l.b16 %v488
      %v650 = vunpack.c.h.b16 %v488
      %v651 = vunpack.c.l.b16 %v489
      %v652 = vunpack.c.h.b16 %v489
      %v653 = vunpack.c.l.b16 %v490
      %v654 = vunpack.c.h.b16 %v490
      %v655 = vunpack.c.l.b16 %v491
      %v656 = vunpack.c.h.b16 %v491
      %v657 = vunpack.c.l.b16 %v492
      %v658 = vunpack.c.h.b16 %v492
      %v659 = vpack.c.b16 %v599, %v595
      %v660 = vpack.c.b16 %v600, %v596
      %v661 = vpack.c.b16 %v601, %v597
      %v662 = vpack.c.b16 %v602, %v598
      %v663 = vpack.c.b16 %v607, %v603
      %v664 = vpack.c.b16 %v608, %v604
      %v665 = vpack.c.b16 %v609, %v605
      %v666 = vpack.c.b16 %v610, %v606
      %v667 = vpack.c.b16 %v615, %v611
      %v668 = vpack.c.b16 %v616, %v612
      %v669 = vpack.c.b16 %v617, %v613
      %v670 = vpack.c.b16 %v618, %v614
      %v671 = vpack.c.b16 %v623, %v619
      %v672 = vpack.c.b16 %v624, %v620
      %v673 = vpack.c.b16 %v625, %v621
      %v674 = vpack.c.b16 %v626, %v622
      %v675 = vpack.c.b16 %v631, %v627
      %v676 = vpack.c.b16 %v632, %v628
      %v677 = vpack.c.b16 %v633, %v629
      %v678 = vpack.c.b16 %v634, %v630
      %v679 = vpack.c.b16 %v639, %v635
      %v680 = vpack.c.b16 %v640, %v636
      %v681 = vpack.c.b16 %v641, %v637
      %v682 = vpack.c.b16 %v642, %v638
      %v683 = vpack.c.b16 %v647, %v643
      %v684 = vpack.c.b16 %v648, %v644
      %v685 = vpack.c.b16 %v649, %v645
      %v686 = vpack.c.b16 %v650, %v646
      %v687 = vpack.c.b16 %v655, %v651
      %v688 = vpack.c.b16 %v656, %v652
      %v689 = vpack.c.b16 %v657, %v653
      %v690 = vpack.c.b16 %v658, %v654
      %723 = vmatprep.subr.bf16.mxu0 %v660
      %724 = vmatpush1.bf16.msra.mxu0 %v659
      %725 = vmatprep.subr.bf16.mxu0 %v664
      %726 = vmatpush1.bf16.msra.mxu0 %v663
      %727 = vmatprep.subr.bf16.mxu0 %v668
      %728 = vmatpush1.bf16.msra.mxu0 %v667
      %729 = vmatprep.subr.bf16.mxu0 %v672
      %730 = vmatpush1.bf16.msra.mxu0 %v671
      %731 = vmatprep.subr.bf16.mxu0 %v676
      %732 = vmatpush1.bf16.msra.mxu0 %v675
      %733 = vmatprep.subr.bf16.mxu0 %v680
      %734 = vmatpush1.bf16.msra.mxu0 %v679
      %735 = vmatprep.subr.bf16.mxu0 %v684
      %736 = vmatpush1.bf16.msra.mxu0 %v683
      %737 = vmatprep.subr.bf16.mxu0 %v688
      %738 = vmatpush1.bf16.msra.mxu0 %v687
      %739 = vmatprep.subr.bf16.mxu0 0
      %740 = vmatpush1.bf16.msra.mxu0 0
      %741 = vmatprep.subr.bf16.mxu0 0
      %742 = vmatpush1.bf16.msra.mxu0 0
      %743 = vmatprep.subr.bf16.mxu0 0
      %744 = vmatpush1.bf16.msra.mxu0 0
      %745 = vmatprep.subr.bf16.mxu0 0
      %746 = vmatpush1.bf16.msra.mxu0 0
      %747 = vmatprep.subr.bf16.mxu0 0
      %748 = vmatpush1.bf16.msra.mxu0 0
      %749 = vmatprep.subr.bf16.mxu0 0
      %750 = vmatpush1.bf16.msra.mxu0 0
      %751 = vmatprep.subr.bf16.mxu0 0
      %752 = vmatpush1.bf16.msra.mxu0 0
      %753 = vmatprep.subr.bf16.mxu0 0
      %754 = vmatpush1.bf16.msra.mxu0 0
      %755 = vmatprep.mubr.bf16.mxu0 0
      %756 = vmatmul.mubr.bf16.gmra.mrb[0].mxu0 %v547
      %v757 = vpop.f32.mrb[0].mxu0
      %v758 = vadd.f32 %v498, %v757
      %v759 = vpop.f32.mrb[0].mxu0
      %v760 = vadd.f32 %v502, %v759
      %v761 = vpop.f32.mrb[0].mxu0
      %v762 = vadd.f32 %v498, %v761
      %v763 = vpop.f32.mrb[0].mxu0
      %v764 = vadd.f32 %v502, %v763
      %765 = vmatprep.mubr.bf16.mxu0 0
      %766 = vmatmul.mubr.bf16.gmra.mrb[0].mxu0 %v548
      %v767 = vpop.f32.mrb[0].mxu0
      %v768 = vadd.f32 %v498, %v767
      %v769 = vpop.f32.mrb[0].mxu0
      %v770 = vadd.f32 %v502, %v769
      %v771 = vpop.f32.mrb[0].mxu0
      %v772 = vadd.f32 %v498, %v771
      %v773 = vpop.f32.mrb[0].mxu0
      %v774 = vadd.f32 %v502, %v773
      %775 = vmatprep.mubr.bf16.mxu0 0
      %776 = vmatmul.mubr.bf16.gmra.mrb[0].mxu0 %v549
      %v777 = vpop.f32.mrb[0].mxu0
      %v778 = vadd.f32 %v498, %v777
      %v779 = vpop.f32.mrb[0].mxu0
      %v780 = vadd.f32 %v502, %v779
      %v781 = vpop.f32.mrb[0].mxu0
      %v782 = vadd.f32 %v498, %v781
      %v783 = vpop.f32.mrb[0].mxu0
      %v784 = vadd.f32 %v502, %v783
      %785 = vmatprep.mubr.bf16.mxu0 0
      %786 = vmatmul.mubr.bf16.gmra.mrb[0].mxu0 %v550
      %v787 = vpop.f32.mrb[0].mxu0
      %v788 = vadd.f32 %v498, %v787
      %v789 = vpop.f32.mrb[0].mxu0
      %v790 = vadd.f32 %v502, %v789
      %v791 = vpop.f32.mrb[0].mxu0
      %v792 = vadd.f32 %v498, %v791
      %v793 = vpop.f32.mrb[0].mxu0
      %v794 = vadd.f32 %v502, %v793
      %795 = vmatprep.mubr.bf16.mxu0 0
      %796 = vmatmul.mubr.bf16.gmra.mrb[0].mxu0 %v551
      %v797 = vpop.f32.mrb[0].mxu0
      %v798 = vadd.f32 %v498, %v797
      %v799 = vpop.f32.mrb[0].mxu0
      %v800 = vadd.f32 %v502, %v799
      %v801 = vpop.f32.mrb[0].mxu0
      %v802 = vadd.f32 %v498, %v801
      %v803 = vpop.f32.mrb[0].mxu0
      %v804 = vadd.f32 %v502, %v803
      %805 = vmatprep.mubr.bf16.mxu0 0
      %806 = vmatmul.mubr.bf16.gmra.mrb[0].mxu0 %v552
      %v807 = vpop.f32.mrb[0].mxu0
      %v808 = vadd.f32 %v498, %v807
      %v809 = vpop.f32.mrb[0].mxu0
      %v810 = vadd.f32 %v502, %v809
      %v811 = vpop.f32.mrb[0].mxu0
      %v812 = vadd.f32 %v498, %v811
      %v813 = vpop.f32.mrb[0].mxu0
      %v814 = vadd.f32 %v502, %v813
      %815 = vmatprep.mubr.bf16.mxu0 0
      %816 = vmatmul.mubr.bf16.gmra.mrb[0].mxu0 %v553
      %v817 = vpop.f32.mrb[0].mxu0
      %v818 = vadd.f32 %v498, %v817
      %v819 = vpop.f32.mrb[0].mxu0
      %v820 = vadd.f32 %v502, %v819
      %v821 = vpop.f32.mrb[0].mxu0
      %v822 = vadd.f32 %v498, %v821
      %v823 = vpop.f32.mrb[0].mxu0
      %v824 = vadd.f32 %v502, %v823
      %825 = vmatprep.mubr.bf16.mxu0 0
      %826 = vmatmul.mubr.bf16.gmra.mrb[0].mxu0 %v554
      %v827 = vpop.f32.mrb[0].mxu0
      %v828 = vadd.f32 %v498, %v827
      %v829 = vpop.f32.mrb[0].mxu0
      %v830 = vadd.f32 %v502, %v829
      %v831 = vpop.f32.mrb[0].mxu0
      %v832 = vadd.f32 %v498, %v831
      %v833 = vpop.f32.mrb[0].mxu0
      %v834 = vadd.f32 %v502, %v833
      %835 = vdwg.mxu0
      %836 = vmatprep.subr.bf16.mxu0 %v662
      %837 = vmatpush1.bf16.msra.mxu0 %v661
      %838 = vmatprep.subr.bf16.mxu0 %v666
      %839 = vmatpush1.bf16.msra.mxu0 %v665
      %840 = vmatprep.subr.bf16.mxu0 %v670
      %841 = vmatpush1.bf16.msra.mxu0 %v669
      %842 = vmatprep.subr.bf16.mxu0 %v674
      %843 = vmatpush1.bf16.msra.mxu0 %v673
      %844 = vmatprep.subr.bf16.mxu0 %v678
      %845 = vmatpush1.bf16.msra.mxu0 %v677
      %846 = vmatprep.subr.bf16.mxu0 %v682
      %847 = vmatpush1.bf16.msra.mxu0 %v681
      %848 = vmatprep.subr.bf16.mxu0 %v686
      %849 = vmatpush1.bf16.msra.mxu0 %v685
      %850 = vmatprep.subr.bf16.mxu0 %v690
      %851 = vmatpush1.bf16.msra.mxu0 %v689
      %852 = vmatprep.subr.bf16.mxu0 0
      %853 = vmatpush1.bf16.msra.mxu0 0
      %854 = vmatprep.subr.bf16.mxu0 0
      %855 = vmatpush1.bf16.msra.mxu0 0
      %856 = vmatprep.subr.bf16.mxu0 0
      %857 = vmatpush1.bf16.msra.mxu0 0
      %858 = vmatprep.subr.bf16.mxu0 0
      %859 = vmatpush1.bf16.msra.mxu0 0
      %860 = vmatprep.subr.bf16.mxu0 0
      %861 = vmatpush1.bf16.msra.mxu0 0
      %862 = vmatprep.subr.bf16.mxu0 0
      %863 = vmatpush1.bf16.msra.mxu0 0
      %864 = vmatprep.subr.bf16.mxu0 0
      %865 = vmatpush1.bf16.msra.mxu0 0
      %866 = vmatprep.subr.bf16.mxu0 0
      %867 = vmatpush1.bf16.msra.mxu0 0
      %868 = vmatprep.mubr.bf16.mxu0 0
      %869 = vmatmul.mubr.bf16.gmra.mrb[0].mxu0 %v547
      %v870 = vpop.f32.mrb[0].mxu0
      %v871 = vadd.f32 %v506, %v870
      %v872 = vpop.f32.mrb[0].mxu0
      %v873 = vadd.f32 %v510, %v872
      %v874 = vpop.f32.mrb[0].mxu0
      %v875 = vadd.f32 %v506, %v874
      %v876 = vpop.f32.mrb[0].mxu0
      %v877 = vadd.f32 %v510, %v876
      %878 = vmatprep.mubr.bf16.mxu0 0
      %879 = vmatmul.mubr.bf16.gmra.mrb[0].mxu0 %v548
      %v880 = vpop.f32.mrb[0].mxu0
      %v881 = vadd.f32 %v506, %v880
      %v882 = vpop.f32.mrb[0].mxu0
      %v883 = vadd.f32 %v510, %v882
      %v884 = vpop.f32.mrb[0].mxu0
      %v885 = vadd.f32 %v506, %v884
      %v886 = vpop.f32.mrb[0].mxu0
      %v887 = vadd.f32 %v510, %v886
      %888 = vmatprep.mubr.bf16.mxu0 0
      %889 = vmatmul.mubr.bf16.gmra.mrb[0].mxu0 %v549
      %v890 = vpop.f32.mrb[0].mxu0
      %v891 = vadd.f32 %v506, %v890
      %v892 = vpop.f32.mrb[0].mxu0
      %v893 = vadd.f32 %v510, %v892
      %v894 = vpop.f32.mrb[0].mxu0
      %v895 = vadd.f32 %v506, %v894
      %v896 = vpop.f32.mrb[0].mxu0
      %v897 = vadd.f32 %v510, %v896
      %898 = vmatprep.mubr.bf16.mxu0 0
      %899 = vmatmul.mubr.bf16.gmra.mrb[0].mxu0 %v550
      %v900 = vpop.f32.mrb[0].mxu0
      %v901 = vadd.f32 %v506, %v900
      %v902 = vpop.f32.mrb[0].mxu0
      %v903 = vadd.f32 %v510, %v902
      %v904 = vpop.f32.mrb[0].mxu0
      %v905 = vadd.f32 %v506, %v904
      %v906 = vpop.f32.mrb[0].mxu0
      %v907 = vadd.f32 %v510, %v906
      %908 = vmatprep.mubr.bf16.mxu0 0
      %909 = vmatmul.mubr.bf16.gmra.mrb[0].mxu0 %v551
      %v910 = vpop.f32.mrb[0].mxu0
      %v911 = vadd.f32 %v506, %v910
      %v912 = vpop.f32.mrb[0].mxu0
      %v913 = vadd.f32 %v510, %v912
      %v914 = vpop.f32.mrb[0].mxu0
      %v915 = vadd.f32 %v506, %v914
      %v916 = vpop.f32.mrb[0].mxu0
      %v917 = vadd.f32 %v510, %v916
      %918 = vmatprep.mubr.bf16.mxu0 0
      %919 = vmatmul.mubr.bf16.gmra.mrb[0].mxu0 %v552
      %v920 = vpop.f32.mrb[0].mxu0
      %v921 = vadd.f32 %v506, %v920
      %v922 = vpop.f32.mrb[0].mxu0
      %v923 = vadd.f32 %v510, %v922
      %v924 = vpop.f32.mrb[0].mxu0
      %v925 = vadd.f32 %v506, %v924
      %v926 = vpop.f32.mrb[0].mxu0
      %v927 = vadd.f32 %v510, %v926
      %928 = vmatprep.mubr.bf16.mxu0 0
      %929 = vmatmul.mubr.bf16.gmra.mrb[0].mxu0 %v553
      %v930 = vpop.f32.mrb[0].mxu0
      %v931 = vadd.f32 %v506, %v930
      %v932 = vpop.f32.mrb[0].mxu0
      %v933 = vadd.f32 %v510, %v932
      %v934 = vpop.f32.mrb[0].mxu0
      %v935 = vadd.f32 %v506, %v934
      %v936 = vpop.f32.mrb[0].mxu0
      %v937 = vadd.f32 %v510, %v936
      %938 = vmatprep.mubr.bf16.mxu0 0
      %939 = vmatmul.mubr.bf16.gmra.mrb[0].mxu0 %v554
      %v940 = vpop.f32.mrb[0].mxu0
      %v941 = vadd.f32 %v506, %v940
      %v942 = vpop.f32.mrb[0].mxu0
      %v943 = vadd.f32 %v510, %v942
      %v944 = vpop.f32.mrb[0].mxu0
      %v945 = vadd.f32 %v506, %v944
      %v946 = vpop.f32.mrb[0].mxu0
      %v947 = vadd.f32 %v510, %v946
      %948 = vdwg.mxu0
      %v949 = vmax.f32 %v758, 0.0
      %v950 = vmax.f32 %v760, 0.0
      %v951 = vmax.f32 %v871, 0.0
      %v952 = vmax.f32 %v873, 0.0
      %v953 = vmax.f32 %v762, 0.0
      %v954 = vmax.f32 %v764, 0.0
      %v955 = vmax.f32 %v875, 0.0
      %v956 = vmax.f32 %v877, 0.0
      %v957 = vmax.f32 %v768, 0.0
      %v958 = vmax.f32 %v770, 0.0
      %v959 = vmax.f32 %v881, 0.0
      %v960 = vmax.f32 %v883, 0.0
      %v961 = vmax.f32 %v772, 0.0
      %v962 = vmax.f32 %v774, 0.0
      %v963 = vmax.f32 %v885, 0.0
      %v964 = vmax.f32 %v887, 0.0
      %v965 = vmax.f32 %v778, 0.0
      %v966 = vmax.f32 %v780, 0.0
      %v967 = vmax.f32 %v891, 0.0
      %v968 = vmax.f32 %v893, 0.0
      %v969 = vmax.f32 %v782, 0.0
      %v970 = vmax.f32 %v784, 0.0
      %v971 = vmax.f32 %v895, 0.0
      %v972 = vmax.f32 %v897, 0.0
      %v973 = vmax.f32 %v788, 0.0
      %v974 = vmax.f32 %v790, 0.0
      %v975 = vmax.f32 %v901, 0.0
      %v976 = vmax.f32 %v903, 0.0
      %v977 = vmax.f32 %v792, 0.0
      %v978 = vmax.f32 %v794, 0.0
      %v979 = vmax.f32 %v905, 0.0
      %v980 = vmax.f32 %v907, 0.0
      %v981 = vmax.f32 %v798, 0.0
      %v982 = vmax.f32 %v800, 0.0
      %v983 = vmax.f32 %v911, 0.0
      %v984 = vmax.f32 %v913, 0.0
      %v985 = vmax.f32 %v802, 0.0
      %v986 = vmax.f32 %v804, 0.0
      %v987 = vmax.f32 %v915, 0.0
      %v988 = vmax.f32 %v917, 0.0
      %v989 = vmax.f32 %v808, 0.0
      %v990 = vmax.f32 %v810, 0.0
      %v991 = vmax.f32 %v921, 0.0
      %v992 = vmax.f32 %v923, 0.0
      %v993 = vmax.f32 %v812, 0.0
      %v994 = vmax.f32 %v814, 0.0
      %v995 = vmax.f32 %v925, 0.0
      %v996 = vmax.f32 %v927, 0.0
      %v997 = vmax.f32 %v818, 0.0
      %v998 = vmax.f32 %v820, 0.0
      %v999 = vmax.f32 %v931, 0.0
      %v1000 = vmax.f32 %v933, 0.0
      %v1001 = vmax.f32 %v822, 0.0
      %v1002 = vmax.f32 %v824, 0.0
      %v1003 = vmax.f32 %v935, 0.0
      %v1004 = vmax.f32 %v937, 0.0
      %v1005 = vmax.f32 %v828, 0.0
      %v1006 = vmax.f32 %v830, 0.0
      %v1007 = vmax.f32 %v941, 0.0
      %v1008 = vmax.f32 %v943, 0.0
      %v1009 = vmax.f32 %v832, 0.0
      %v1010 = vmax.f32 %v834, 0.0
      %v1011 = vmax.f32 %v945, 0.0
      %v1012 = vmax.f32 %v947, 0.0
      %v1013 = vpack.c.bf16 %v953, %v949
      %v1014 = vpack.c.bf16 %v954, %v950
      %v1015 = vpack.c.bf16 %v955, %v951
      %v1016 = vpack.c.bf16 %v956, %v952
      %v1017 = vpack.c.bf16 %v961, %v957
      %v1018 = vpack.c.bf16 %v962, %v958
      %v1019 = vpack.c.bf16 %v963, %v959
      %v1020 = vpack.c.bf16 %v964, %v960
      %v1021 = vpack.c.bf16 %v969, %v965
      %v1022 = vpack.c.bf16 %v970, %v966
      %v1023 = vpack.c.bf16 %v971, %v967
      %v1024 = vpack.c.bf16 %v972, %v968
      %v1025 = vpack.c.bf16 %v977, %v973
      %v1026 = vpack.c.bf16 %v978, %v974
      %v1027 = vpack.c.bf16 %v979, %v975
      %v1028 = vpack.c.bf16 %v980, %v976
      %v1029 = vpack.c.bf16 %v985, %v981
      %v1030 = vpack.c.bf16 %v986, %v982
      %v1031 = vpack.c.bf16 %v987, %v983
      %v1032 = vpack.c.bf16 %v988, %v984
      %v1033 = vpack.c.bf16 %v993, %v989
      %v1034 = vpack.c.bf16 %v994, %v990
      %v1035 = vpack.c.bf16 %v995, %v991
      %v1036 = vpack.c.bf16 %v996, %v992
      %v1037 = vpack.c.bf16 %v1001, %v997
      %v1038 = vpack.c.bf16 %v1002, %v998
      %v1039 = vpack.c.bf16 %v1003, %v999
      %v1040 = vpack.c.bf16 %v1004, %v1000
      %v1041 = vpack.c.bf16 %v1009, %v1005
      %v1042 = vpack.c.bf16 %v1010, %v1006
      %v1043 = vpack.c.bf16 %v1011, %v1007
      %v1044 = vpack.c.bf16 %v1012, %v1008
      %v1045 = vld [vmem:[%s3] sm:$0xff]
      %v1046 = vld [vmem:[%s3 + $0x8] sm:$0xff]
      %v1047 = vld [vmem:[%s3 + $0x10] sm:$0xff]
      %v1048 = vld [vmem:[%s3 + $0x18] sm:$0xff]
      %v1049 = vld [vmem:[%s3 + $0x20] sm:$0xff]
      %v1050 = vld [vmem:[%s3 + $0x28] sm:$0xff]
      %v1051 = vld [vmem:[%s3 + $0x30] sm:$0xff]
      %v1052 = vld [vmem:[%s3 + $0x38] sm:$0xff]
      %v1053 = vld [vmem:[%s3 + $0x40] sm:$0xff]
      %v1054 = vld [vmem:[%s3 + $0x48] sm:$0xff]
      %v1055 = vld [vmem:[%s3 + $0x50] sm:$0xff]
      %v1056 = vld [vmem:[%s3 + $0x58] sm:$0xff]
      %v1057 = vld [vmem:[%s3 + $0x60] sm:$0xff]
      %v1058 = vld [vmem:[%s3 + $0x68] sm:$0xff]
      %v1059 = vld [vmem:[%s3 + $0x70] sm:$0xff]
      %v1060 = vld [vmem:[%s3 + $0x78] sm:$0xff]
      %v1061 = vld [vmem:[%s3 + $0x80] sm:$0xff]
      %v1062 = vld [vmem:[%s3 + $0x88] sm:$0xff]
      %v1063 = vld [vmem:[%s3 + $0x90] sm:$0xff]
      %v1064 = vld [vmem:[%s3 + $0x98] sm:$0xff]
      %v1065 = vld [vmem:[%s3 + $0xa0] sm:$0xff]
      %v1066 = vld [vmem:[%s3 + $0xa8] sm:$0xff]
      %v1067 = vld [vmem:[%s3 + $0xb0] sm:$0xff]
      %v1068 = vld [vmem:[%s3 + $0xb8] sm:$0xff]
      %v1069 = vld [vmem:[%s3 + $0xc0] sm:$0xff]
      %v1070 = vld [vmem:[%s3 + $0xc8] sm:$0xff]
      %v1071 = vld [vmem:[%s3 + $0xd0] sm:$0xff]
      %v1072 = vld [vmem:[%s3 + $0xd8] sm:$0xff]
      %v1073 = vld [vmem:[%s3 + $0xe0] sm:$0xff]
      %v1074 = vld [vmem:[%s3 + $0xe8] sm:$0xff]
      %v1075 = vld [vmem:[%s3 + $0xf0] sm:$0xff]
      %v1076 = vld [vmem:[%s3 + $0xf8] sm:$0xff]
      %v1077 = vld [vmem:[%s3 + $0x100] sm:$0xff]
      %v1078 = vld [vmem:[%s3 + $0x108] sm:$0xff]
      %v1079 = vld [vmem:[%s3 + $0x110] sm:$0xff]
      %v1080 = vld [vmem:[%s3 + $0x118] sm:$0xff]
      %v1081 = vld [vmem:[%s3 + $0x120] sm:$0xff]
      %v1082 = vld [vmem:[%s3 + $0x128] sm:$0xff]
      %v1083 = vld [vmem:[%s3 + $0x130] sm:$0xff]
      %v1084 = vld [vmem:[%s3 + $0x138] sm:$0xff]
      %v1085 = vld [vmem:[%s3 + $0x140] sm:$0xff]
      %v1086 = vld [vmem:[%s3 + $0x148] sm:$0xff]
      %v1087 = vld [vmem:[%s3 + $0x150] sm:$0xff]
      %v1088 = vld [vmem:[%s3 + $0x158] sm:$0xff]
      %v1089 = vld [vmem:[%s3 + $0x160] sm:$0xff]
      %v1090 = vld [vmem:[%s3 + $0x168] sm:$0xff]
      %v1091 = vld [vmem:[%s3 + $0x170] sm:$0xff]
      %v1092 = vld [vmem:[%s3 + $0x178] sm:$0xff]
      %v1093 = vld [vmem:[%s3 + $0x180] sm:$0xff]
      %v1094 = vld [vmem:[%s3 + $0x188] sm:$0xff]
      %v1095 = vld [vmem:[%s3 + $0x190] sm:$0xff]
      %v1096 = vld [vmem:[%s3 + $0x198] sm:$0xff]
      %v1097 = vld [vmem:[%s3 + $0x1a0] sm:$0xff]
      %v1098 = vld [vmem:[%s3 + $0x1a8] sm:$0xff]
      %v1099 = vld [vmem:[%s3 + $0x1b0] sm:$0xff]
      %v1100 = vld [vmem:[%s3 + $0x1b8] sm:$0xff]
      %v1101 = vld [vmem:[%s3 + $0x1c0] sm:$0xff]
      %v1102 = vld [vmem:[%s3 + $0x1c8] sm:$0xff]
      %v1103 = vld [vmem:[%s3 + $0x1d0] sm:$0xff]
      %v1104 = vld [vmem:[%s3 + $0x1d8] sm:$0xff]
      %v1105 = vld [vmem:[%s3 + $0x1e0] sm:$0xff]
      %v1106 = vld [vmem:[%s3 + $0x1e8] sm:$0xff]
      %v1107 = vld [vmem:[%s3 + $0x1f0] sm:$0xff]
      %v1108 = vld [vmem:[%s3 + $0x1f8] sm:$0xff]
      %v1109 = vld [vmem:[%s3 + $0x200] sm:$0xff]
      %v1110 = vld [vmem:[%s3 + $0x208] sm:$0xff]
      %v1111 = vld [vmem:[%s3 + $0x210] sm:$0xff]
      %v1112 = vld [vmem:[%s3 + $0x218] sm:$0xff]
      %v1113 = vld [vmem:[%s3 + $0x220] sm:$0xff]
      %v1114 = vld [vmem:[%s3 + $0x228] sm:$0xff]
      %v1115 = vld [vmem:[%s3 + $0x230] sm:$0xff]
      %v1116 = vld [vmem:[%s3 + $0x238] sm:$0xff]
      %v1117 = vld [vmem:[%s3 + $0x240] sm:$0xff]
      %v1118 = vld [vmem:[%s3 + $0x248] sm:$0xff]
      %v1119 = vld [vmem:[%s3 + $0x250] sm:$0xff]
      %v1120 = vld [vmem:[%s3 + $0x258] sm:$0xff]
      %v1121 = vld [vmem:[%s3 + $0x260] sm:$0xff]
      %v1122 = vld [vmem:[%s3 + $0x268] sm:$0xff]
      %v1123 = vld [vmem:[%s3 + $0x270] sm:$0xff]
      %v1124 = vld [vmem:[%s3 + $0x278] sm:$0xff]
      %v1125 = vld [vmem:[%s3 + $0x280] sm:$0xff]
      %v1126 = vld [vmem:[%s3 + $0x288] sm:$0xff]
      %v1127 = vld [vmem:[%s3 + $0x290] sm:$0xff]
      %v1128 = vld [vmem:[%s3 + $0x298] sm:$0xff]
      %v1129 = vld [vmem:[%s3 + $0x2a0] sm:$0xff]
      %v1130 = vld [vmem:[%s3 + $0x2a8] sm:$0xff]
      %v1131 = vld [vmem:[%s3 + $0x2b0] sm:$0xff]
      %v1132 = vld [vmem:[%s3 + $0x2b8] sm:$0xff]
      %v1133 = vld [vmem:[%s3 + $0x2c0] sm:$0xff]
      %v1134 = vld [vmem:[%s3 + $0x2c8] sm:$0xff]
      %v1135 = vld [vmem:[%s3 + $0x2d0] sm:$0xff]
      %v1136 = vld [vmem:[%s3 + $0x2d8] sm:$0xff]
      %v1137 = vld [vmem:[%s3 + $0x2e0] sm:$0xff]
      %v1138 = vld [vmem:[%s3 + $0x2e8] sm:$0xff]
      %v1139 = vld [vmem:[%s3 + $0x2f0] sm:$0xff]
      %v1140 = vld [vmem:[%s3 + $0x2f8] sm:$0xff]
      %v1141 = vld [vmem:[%s3 + $0x300] sm:$0xff]
      %v1142 = vld [vmem:[%s3 + $0x308] sm:$0xff]
      %v1143 = vld [vmem:[%s3 + $0x310] sm:$0xff]
      %v1144 = vld [vmem:[%s3 + $0x318] sm:$0xff]
      %v1145 = vld [vmem:[%s3 + $0x320] sm:$0xff]
      %v1146 = vld [vmem:[%s3 + $0x328] sm:$0xff]
      %v1147 = vld [vmem:[%s3 + $0x330] sm:$0xff]
      %v1148 = vld [vmem:[%s3 + $0x338] sm:$0xff]
      %v1149 = vld [vmem:[%s3 + $0x340] sm:$0xff]
      %v1150 = vld [vmem:[%s3 + $0x348] sm:$0xff]
      %v1151 = vld [vmem:[%s3 + $0x350] sm:$0xff]
      %v1152 = vld [vmem:[%s3 + $0x358] sm:$0xff]
      %v1153 = vld [vmem:[%s3 + $0x360] sm:$0xff]
      %v1154 = vld [vmem:[%s3 + $0x368] sm:$0xff]
      %v1155 = vld [vmem:[%s3 + $0x370] sm:$0xff]
      %v1156 = vld [vmem:[%s3 + $0x378] sm:$0xff]
      %v1157 = vld [vmem:[%s3 + $0x380] sm:$0xff]
      %v1158 = vld [vmem:[%s3 + $0x388] sm:$0xff]
      %v1159 = vld [vmem:[%s3 + $0x390] sm:$0xff]
      %v1160 = vld [vmem:[%s3 + $0x398] sm:$0xff]
      %v1161 = vld [vmem:[%s3 + $0x3a0] sm:$0xff]
      %v1162 = vld [vmem:[%s3 + $0x3a8] sm:$0xff]
      %v1163 = vld [vmem:[%s3 + $0x3b0] sm:$0xff]
      %v1164 = vld [vmem:[%s3 + $0x3b8] sm:$0xff]
      %v1165 = vld [vmem:[%s3 + $0x3c0] sm:$0xff]
      %v1166 = vld [vmem:[%s3 + $0x3c8] sm:$0xff]
      %v1167 = vld [vmem:[%s3 + $0x3d0] sm:$0xff]
      %v1168 = vld [vmem:[%s3 + $0x3d8] sm:$0xff]
      %v1169 = vld [vmem:[%s3 + $0x3e0] sm:$0xff]
      %v1170 = vld [vmem:[%s3 + $0x3e8] sm:$0xff]
      %v1171 = vld [vmem:[%s3 + $0x3f0] sm:$0xff]
      %v1172 = vld [vmem:[%s3 + $0x3f8] sm:$0xff]
      %v1173 = vld [vmem:[%s4] sm:$0xf]
      %v1175 = vlaneseq
      %v1176 = vshrl.u32 %v1175, 7
      %v1177 = vsub.s32 0, %v1176
      %v1178 = vrot.slane %v1173, %v1177
      %v1179 = vlaneseq
      %v1180 = vshrl.u32 %v1179, 7
      %v1181 = vsub.s32 1, %v1180
      %v1182 = vrot.slane %v1173, %v1181
      %v1183 = vlaneseq
      %v1184 = vshrl.u32 %v1183, 7
      %v1185 = vsub.s32 2, %v1184
      %v1186 = vrot.slane %v1173, %v1185
      %v1187 = vlaneseq
      %v1188 = vshrl.u32 %v1187, 7
      %v1189 = vsub.s32 3, %v1188
      %v1190 = vrot.slane %v1173, %v1189
      %v1323 = vunpack.c.l.b16 %v1045
      %v1324 = vunpack.c.h.b16 %v1045
      %v1325 = vunpack.c.l.b16 %v1046
      %v1326 = vunpack.c.h.b16 %v1046
      %v1327 = vunpack.c.l.b16 %v1047
      %v1328 = vunpack.c.h.b16 %v1047
      %v1329 = vunpack.c.l.b16 %v1048
      %v1330 = vunpack.c.h.b16 %v1048
      %v1331 = vunpack.c.l.b16 %v1049
      %v1332 = vunpack.c.h.b16 %v1049
      %v1333 = vunpack.c.l.b16 %v1050
      %v1334 = vunpack.c.h.b16 %v1050
      %v1335 = vunpack.c.l.b16 %v1051
      %v1336 = vunpack.c.h.b16 %v1051
      %v1337 = vunpack.c.l.b16 %v1052
      %v1338 = vunpack.c.h.b16 %v1052
      %v1339 = vunpack.c.l.b16 %v1053
      %v1340 = vunpack.c.h.b16 %v1053
      %v1341 = vunpack.c.l.b16 %v1054
      %v1342 = vunpack.c.h.b16 %v1054
      %v1343 = vunpack.c.l.b16 %v1055
      %v1344 = vunpack.c.h.b16 %v1055
      %v1345 = vunpack.c.l.b16 %v1056
      %v1346 = vunpack.c.h.b16 %v1056
      %v1347 = vunpack.c.l.b16 %v1057
      %v1348 = vunpack.c.h.b16 %v1057
      %v1349 = vunpack.c.l.b16 %v1058
      %v1350 = vunpack.c.h.b16 %v1058
      %v1351 = vunpack.c.l.b16 %v1059
      %v1352 = vunpack.c.h.b16 %v1059
      %v1353 = vunpack.c.l.b16 %v1060
      %v1354 = vunpack.c.h.b16 %v1060
      %v1355 = vunpack.c.l.b16 %v1061
      %v1356 = vunpack.c.h.b16 %v1061
      %v1357 = vunpack.c.l.b16 %v1062
      %v1358 = vunpack.c.h.b16 %v1062
      %v1359 = vunpack.c.l.b16 %v1063
      %v1360 = vunpack.c.h.b16 %v1063
      %v1361 = vunpack.c.l.b16 %v1064
      %v1362 = vunpack.c.h.b16 %v1064
      %v1363 = vunpack.c.l.b16 %v1065
      %v1364 = vunpack.c.h.b16 %v1065
      %v1365 = vunpack.c.l.b16 %v1066
      %v1366 = vunpack.c.h.b16 %v1066
      %v1367 = vunpack.c.l.b16 %v1067
      %v1368 = vunpack.c.h.b16 %v1067
      %v1369 = vunpack.c.l.b16 %v1068
      %v1370 = vunpack.c.h.b16 %v1068
      %v1371 = vunpack.c.l.b16 %v1069
      %v1372 = vunpack.c.h.b16 %v1069
      %v1373 = vunpack.c.l.b16 %v1070
      %v1374 = vunpack.c.h.b16 %v1070
      %v1375 = vunpack.c.l.b16 %v1071
      %v1376 = vunpack.c.h.b16 %v1071
      %v1377 = vunpack.c.l.b16 %v1072
      %v1378 = vunpack.c.h.b16 %v1072
      %v1379 = vunpack.c.l.b16 %v1073
      %v1380 = vunpack.c.h.b16 %v1073
      %v1381 = vunpack.c.l.b16 %v1074
      %v1382 = vunpack.c.h.b16 %v1074
      %v1383 = vunpack.c.l.b16 %v1075
      %v1384 = vunpack.c.h.b16 %v1075
      %v1385 = vunpack.c.l.b16 %v1076
      %v1386 = vunpack.c.h.b16 %v1076
      %v1387 = vunpack.c.l.b16 %v1077
      %v1388 = vunpack.c.h.b16 %v1077
      %v1389 = vunpack.c.l.b16 %v1078
      %v1390 = vunpack.c.h.b16 %v1078
      %v1391 = vunpack.c.l.b16 %v1079
      %v1392 = vunpack.c.h.b16 %v1079
      %v1393 = vunpack.c.l.b16 %v1080
      %v1394 = vunpack.c.h.b16 %v1080
      %v1395 = vunpack.c.l.b16 %v1081
      %v1396 = vunpack.c.h.b16 %v1081
      %v1397 = vunpack.c.l.b16 %v1082
      %v1398 = vunpack.c.h.b16 %v1082
      %v1399 = vunpack.c.l.b16 %v1083
      %v1400 = vunpack.c.h.b16 %v1083
      %v1401 = vunpack.c.l.b16 %v1084
      %v1402 = vunpack.c.h.b16 %v1084
      %v1403 = vunpack.c.l.b16 %v1085
      %v1404 = vunpack.c.h.b16 %v1085
      %v1405 = vunpack.c.l.b16 %v1086
      %v1406 = vunpack.c.h.b16 %v1086
      %v1407 = vunpack.c.l.b16 %v1087
      %v1408 = vunpack.c.h.b16 %v1087
      %v1409 = vunpack.c.l.b16 %v1088
      %v1410 = vunpack.c.h.b16 %v1088
      %v1411 = vunpack.c.l.b16 %v1089
      %v1412 = vunpack.c.h.b16 %v1089
      %v1413 = vunpack.c.l.b16 %v1090
      %v1414 = vunpack.c.h.b16 %v1090
      %v1415 = vunpack.c.l.b16 %v1091
      %v1416 = vunpack.c.h.b16 %v1091
      %v1417 = vunpack.c.l.b16 %v1092
      %v1418 = vunpack.c.h.b16 %v1092
      %v1419 = vunpack.c.l.b16 %v1093
      %v1420 = vunpack.c.h.b16 %v1093
      %v1421 = vunpack.c.l.b16 %v1094
      %v1422 = vunpack.c.h.b16 %v1094
      %v1423 = vunpack.c.l.b16 %v1095
      %v1424 = vunpack.c.h.b16 %v1095
      %v1425 = vunpack.c.l.b16 %v1096
      %v1426 = vunpack.c.h.b16 %v1096
      %v1427 = vunpack.c.l.b16 %v1097
      %v1428 = vunpack.c.h.b16 %v1097
      %v1429 = vunpack.c.l.b16 %v1098
      %v1430 = vunpack.c.h.b16 %v1098
      %v1431 = vunpack.c.l.b16 %v1099
      %v1432 = vunpack.c.h.b16 %v1099
      %v1433 = vunpack.c.l.b16 %v1100
      %v1434 = vunpack.c.h.b16 %v1100
      %v1435 = vunpack.c.l.b16 %v1101
      %v1436 = vunpack.c.h.b16 %v1101
      %v1437 = vunpack.c.l.b16 %v1102
      %v1438 = vunpack.c.h.b16 %v1102
      %v1439 = vunpack.c.l.b16 %v1103
      %v1440 = vunpack.c.h.b16 %v1103
      %v1441 = vunpack.c.l.b16 %v1104
      %v1442 = vunpack.c.h.b16 %v1104
      %v1443 = vunpack.c.l.b16 %v1105
      %v1444 = vunpack.c.h.b16 %v1105
      %v1445 = vunpack.c.l.b16 %v1106
      %v1446 = vunpack.c.h.b16 %v1106
      %v1447 = vunpack.c.l.b16 %v1107
      %v1448 = vunpack.c.h.b16 %v1107
      %v1449 = vunpack.c.l.b16 %v1108
      %v1450 = vunpack.c.h.b16 %v1108
      %v1451 = vunpack.c.l.b16 %v1109
      %v1452 = vunpack.c.h.b16 %v1109
      %v1453 = vunpack.c.l.b16 %v1110
      %v1454 = vunpack.c.h.b16 %v1110
      %v1455 = vunpack.c.l.b16 %v1111
      %v1456 = vunpack.c.h.b16 %v1111
      %v1457 = vunpack.c.l.b16 %v1112
      %v1458 = vunpack.c.h.b16 %v1112
      %v1459 = vunpack.c.l.b16 %v1113
      %v1460 = vunpack.c.h.b16 %v1113
      %v1461 = vunpack.c.l.b16 %v1114
      %v1462 = vunpack.c.h.b16 %v1114
      %v1463 = vunpack.c.l.b16 %v1115
      %v1464 = vunpack.c.h.b16 %v1115
      %v1465 = vunpack.c.l.b16 %v1116
      %v1466 = vunpack.c.h.b16 %v1116
      %v1467 = vunpack.c.l.b16 %v1117
      %v1468 = vunpack.c.h.b16 %v1117
      %v1469 = vunpack.c.l.b16 %v1118
      %v1470 = vunpack.c.h.b16 %v1118
      %v1471 = vunpack.c.l.b16 %v1119
      %v1472 = vunpack.c.h.b16 %v1119
      %v1473 = vunpack.c.l.b16 %v1120
      %v1474 = vunpack.c.h.b16 %v1120
      %v1475 = vunpack.c.l.b16 %v1121
      %v1476 = vunpack.c.h.b16 %v1121
      %v1477 = vunpack.c.l.b16 %v1122
      %v1478 = vunpack.c.h.b16 %v1122
      %v1479 = vunpack.c.l.b16 %v1123
      %v1480 = vunpack.c.h.b16 %v1123
      %v1481 = vunpack.c.l.b16 %v1124
      %v1482 = vunpack.c.h.b16 %v1124
      %v1483 = vunpack.c.l.b16 %v1125
      %v1484 = vunpack.c.h.b16 %v1125
      %v1485 = vunpack.c.l.b16 %v1126
      %v1486 = vunpack.c.h.b16 %v1126
      %v1487 = vunpack.c.l.b16 %v1127
      %v1488 = vunpack.c.h.b16 %v1127
      %v1489 = vunpack.c.l.b16 %v1128
      %v1490 = vunpack.c.h.b16 %v1128
      %v1491 = vunpack.c.l.b16 %v1129
      %v1492 = vunpack.c.h.b16 %v1129
      %v1493 = vunpack.c.l.b16 %v1130
      %v1494 = vunpack.c.h.b16 %v1130
      %v1495 = vunpack.c.l.b16 %v1131
      %v1496 = vunpack.c.h.b16 %v1131
      %v1497 = vunpack.c.l.b16 %v1132
      %v1498 = vunpack.c.h.b16 %v1132
      %v1499 = vunpack.c.l.b16 %v1133
      %v1500 = vunpack.c.h.b16 %v1133
      %v1501 = vunpack.c.l.b16 %v1134
      %v1502 = vunpack.c.h.b16 %v1134
      %v1503 = vunpack.c.l.b16 %v1135
      %v1504 = vunpack.c.h.b16 %v1135
      %v1505 = vunpack.c.l.b16 %v1136
      %v1506 = vunpack.c.h.b16 %v1136
      %v1507 = vunpack.c.l.b16 %v1137
      %v1508 = vunpack.c.h.b16 %v1137
      %v1509 = vunpack.c.l.b16 %v1138
      %v1510 = vunpack.c.h.b16 %v1138
      %v1511 = vunpack.c.l.b16 %v1139
      %v1512 = vunpack.c.h.b16 %v1139
      %v1513 = vunpack.c.l.b16 %v1140
      %v1514 = vunpack.c.h.b16 %v1140
      %v1515 = vunpack.c.l.b16 %v1141
      %v1516 = vunpack.c.h.b16 %v1141
      %v1517 = vunpack.c.l.b16 %v1142
      %v1518 = vunpack.c.h.b16 %v1142
      %v1519 = vunpack.c.l.b16 %v1143
      %v1520 = vunpack.c.h.b16 %v1143
      %v1521 = vunpack.c.l.b16 %v1144
      %v1522 = vunpack.c.h.b16 %v1144
      %v1523 = vunpack.c.l.b16 %v1145
      %v1524 = vunpack.c.h.b16 %v1145
      %v1525 = vunpack.c.l.b16 %v1146
      %v1526 = vunpack.c.h.b16 %v1146
      %v1527 = vunpack.c.l.b16 %v1147
      %v1528 = vunpack.c.h.b16 %v1147
      %v1529 = vunpack.c.l.b16 %v1148
      %v1530 = vunpack.c.h.b16 %v1148
      %v1531 = vunpack.c.l.b16 %v1149
      %v1532 = vunpack.c.h.b16 %v1149
      %v1533 = vunpack.c.l.b16 %v1150
      %v1534 = vunpack.c.h.b16 %v1150
      %v1535 = vunpack.c.l.b16 %v1151
      %v1536 = vunpack.c.h.b16 %v1151
      %v1537 = vunpack.c.l.b16 %v1152
      %v1538 = vunpack.c.h.b16 %v1152
      %v1539 = vunpack.c.l.b16 %v1153
      %v1540 = vunpack.c.h.b16 %v1153
      %v1541 = vunpack.c.l.b16 %v1154
      %v1542 = vunpack.c.h.b16 %v1154
      %v1543 = vunpack.c.l.b16 %v1155
      %v1544 = vunpack.c.h.b16 %v1155
      %v1545 = vunpack.c.l.b16 %v1156
      %v1546 = vunpack.c.h.b16 %v1156
      %v1547 = vunpack.c.l.b16 %v1157
      %v1548 = vunpack.c.h.b16 %v1157
      %v1549 = vunpack.c.l.b16 %v1158
      %v1550 = vunpack.c.h.b16 %v1158
      %v1551 = vunpack.c.l.b16 %v1159
      %v1552 = vunpack.c.h.b16 %v1159
      %v1553 = vunpack.c.l.b16 %v1160
      %v1554 = vunpack.c.h.b16 %v1160
      %v1555 = vunpack.c.l.b16 %v1161
      %v1556 = vunpack.c.h.b16 %v1161
      %v1557 = vunpack.c.l.b16 %v1162
      %v1558 = vunpack.c.h.b16 %v1162
      %v1559 = vunpack.c.l.b16 %v1163
      %v1560 = vunpack.c.h.b16 %v1163
      %v1561 = vunpack.c.l.b16 %v1164
      %v1562 = vunpack.c.h.b16 %v1164
      %v1563 = vunpack.c.l.b16 %v1165
      %v1564 = vunpack.c.h.b16 %v1165
      %v1565 = vunpack.c.l.b16 %v1166
      %v1566 = vunpack.c.h.b16 %v1166
      %v1567 = vunpack.c.l.b16 %v1167
      %v1568 = vunpack.c.h.b16 %v1167
      %v1569 = vunpack.c.l.b16 %v1168
      %v1570 = vunpack.c.h.b16 %v1168
      %v1571 = vunpack.c.l.b16 %v1169
      %v1572 = vunpack.c.h.b16 %v1169
      %v1573 = vunpack.c.l.b16 %v1170
      %v1574 = vunpack.c.h.b16 %v1170
      %v1575 = vunpack.c.l.b16 %v1171
      %v1576 = vunpack.c.h.b16 %v1171
      %v1577 = vunpack.c.l.b16 %v1172
      %v1578 = vunpack.c.h.b16 %v1172
      %v1579 = vpack.c.b16 %v1327, %v1323
      %v1580 = vpack.c.b16 %v1328, %v1324
      %v1581 = vpack.c.b16 %v1329, %v1325
      %v1582 = vpack.c.b16 %v1330, %v1326
      %v1583 = vpack.c.b16 %v1335, %v1331
      %v1584 = vpack.c.b16 %v1336, %v1332
      %v1585 = vpack.c.b16 %v1337, %v1333
      %v1586 = vpack.c.b16 %v1338, %v1334
      %v1587 = vpack.c.b16 %v1343, %v1339
      %v1588 = vpack.c.b16 %v1344, %v1340
      %v1589 = vpack.c.b16 %v1345, %v1341
      %v1590 = vpack.c.b16 %v1346, %v1342
      %v1591 = vpack.c.b16 %v1351, %v1347
      %v1592 = vpack.c.b16 %v1352, %v1348
      %v1593 = vpack.c.b16 %v1353, %v1349
      %v1594 = vpack.c.b16 %v1354, %v1350
      %v1595 = vpack.c.b16 %v1359, %v1355
      %v1596 = vpack.c.b16 %v1360, %v1356
      %v1597 = vpack.c.b16 %v1361, %v1357
      %v1598 = vpack.c.b16 %v1362, %v1358
      %v1599 = vpack.c.b16 %v1367, %v1363
      %v1600 = vpack.c.b16 %v1368, %v1364
      %v1601 = vpack.c.b16 %v1369, %v1365
      %v1602 = vpack.c.b16 %v1370, %v1366
      %v1603 = vpack.c.b16 %v1375, %v1371
      %v1604 = vpack.c.b16 %v1376, %v1372
      %v1605 = vpack.c.b16 %v1377, %v1373
      %v1606 = vpack.c.b16 %v1378, %v1374
      %v1607 = vpack.c.b16 %v1383, %v1379
      %v1608 = vpack.c.b16 %v1384, %v1380
      %v1609 = vpack.c.b16 %v1385, %v1381
      %v1610 = vpack.c.b16 %v1386, %v1382
      %v1611 = vpack.c.b16 %v1391, %v1387
      %v1612 = vpack.c.b16 %v1392, %v1388
      %v1613 = vpack.c.b16 %v1393, %v1389
      %v1614 = vpack.c.b16 %v1394, %v1390
      %v1615 = vpack.c.b16 %v1399, %v1395
      %v1616 = vpack.c.b16 %v1400, %v1396
      %v1617 = vpack.c.b16 %v1401, %v1397
      %v1618 = vpack.c.b16 %v1402, %v1398
      %v1619 = vpack.c.b16 %v1407, %v1403
      %v1620 = vpack.c.b16 %v1408, %v1404
      %v1621 = vpack.c.b16 %v1409, %v1405
      %v1622 = vpack.c.b16 %v1410, %v1406
      %v1623 = vpack.c.b16 %v1415, %v1411
      %v1624 = vpack.c.b16 %v1416, %v1412
      %v1625 = vpack.c.b16 %v1417, %v1413
      %v1626 = vpack.c.b16 %v1418, %v1414
      %v1627 = vpack.c.b16 %v1423, %v1419
      %v1628 = vpack.c.b16 %v1424, %v1420
      %v1629 = vpack.c.b16 %v1425, %v1421
      %v1630 = vpack.c.b16 %v1426, %v1422
      %v1631 = vpack.c.b16 %v1431, %v1427
      %v1632 = vpack.c.b16 %v1432, %v1428
      %v1633 = vpack.c.b16 %v1433, %v1429
      %v1634 = vpack.c.b16 %v1434, %v1430
      %v1635 = vpack.c.b16 %v1439, %v1435
      %v1636 = vpack.c.b16 %v1440, %v1436
      %v1637 = vpack.c.b16 %v1441, %v1437
      %v1638 = vpack.c.b16 %v1442, %v1438
      %v1639 = vpack.c.b16 %v1447, %v1443
      %v1640 = vpack.c.b16 %v1448, %v1444
      %v1641 = vpack.c.b16 %v1449, %v1445
      %v1642 = vpack.c.b16 %v1450, %v1446
      %v1643 = vpack.c.b16 %v1455, %v1451
      %v1644 = vpack.c.b16 %v1456, %v1452
      %v1645 = vpack.c.b16 %v1457, %v1453
      %v1646 = vpack.c.b16 %v1458, %v1454
      %v1647 = vpack.c.b16 %v1463, %v1459
      %v1648 = vpack.c.b16 %v1464, %v1460
      %v1649 = vpack.c.b16 %v1465, %v1461
      %v1650 = vpack.c.b16 %v1466, %v1462
      %v1651 = vpack.c.b16 %v1471, %v1467
      %v1652 = vpack.c.b16 %v1472, %v1468
      %v1653 = vpack.c.b16 %v1473, %v1469
      %v1654 = vpack.c.b16 %v1474, %v1470
      %v1655 = vpack.c.b16 %v1479, %v1475
      %v1656 = vpack.c.b16 %v1480, %v1476
      %v1657 = vpack.c.b16 %v1481, %v1477
      %v1658 = vpack.c.b16 %v1482, %v1478
      %v1659 = vpack.c.b16 %v1487, %v1483
      %v1660 = vpack.c.b16 %v1488, %v1484
      %v1661 = vpack.c.b16 %v1489, %v1485
      %v1662 = vpack.c.b16 %v1490, %v1486
      %v1663 = vpack.c.b16 %v1495, %v1491
      %v1664 = vpack.c.b16 %v1496, %v1492
      %v1665 = vpack.c.b16 %v1497, %v1493
      %v1666 = vpack.c.b16 %v1498, %v1494
      %v1667 = vpack.c.b16 %v1503, %v1499
      %v1668 = vpack.c.b16 %v1504, %v1500
      %v1669 = vpack.c.b16 %v1505, %v1501
      %v1670 = vpack.c.b16 %v1506, %v1502
      %v1671 = vpack.c.b16 %v1511, %v1507
      %v1672 = vpack.c.b16 %v1512, %v1508
      %v1673 = vpack.c.b16 %v1513, %v1509
      %v1674 = vpack.c.b16 %v1514, %v1510
      %v1675 = vpack.c.b16 %v1519, %v1515
      %v1676 = vpack.c.b16 %v1520, %v1516
      %v1677 = vpack.c.b16 %v1521, %v1517
      %v1678 = vpack.c.b16 %v1522, %v1518
      %v1679 = vpack.c.b16 %v1527, %v1523
      %v1680 = vpack.c.b16 %v1528, %v1524
      %v1681 = vpack.c.b16 %v1529, %v1525
      %v1682 = vpack.c.b16 %v1530, %v1526
      %v1683 = vpack.c.b16 %v1535, %v1531
      %v1684 = vpack.c.b16 %v1536, %v1532
      %v1685 = vpack.c.b16 %v1537, %v1533
      %v1686 = vpack.c.b16 %v1538, %v1534
      %v1687 = vpack.c.b16 %v1543, %v1539
      %v1688 = vpack.c.b16 %v1544, %v1540
      %v1689 = vpack.c.b16 %v1545, %v1541
      %v1690 = vpack.c.b16 %v1546, %v1542
      %v1691 = vpack.c.b16 %v1551, %v1547
      %v1692 = vpack.c.b16 %v1552, %v1548
      %v1693 = vpack.c.b16 %v1553, %v1549
      %v1694 = vpack.c.b16 %v1554, %v1550
      %v1695 = vpack.c.b16 %v1559, %v1555
      %v1696 = vpack.c.b16 %v1560, %v1556
      %v1697 = vpack.c.b16 %v1561, %v1557
      %v1698 = vpack.c.b16 %v1562, %v1558
      %v1699 = vpack.c.b16 %v1567, %v1563
      %v1700 = vpack.c.b16 %v1568, %v1564
      %v1701 = vpack.c.b16 %v1569, %v1565
      %v1702 = vpack.c.b16 %v1570, %v1566
      %v1703 = vpack.c.b16 %v1575, %v1571
      %v1704 = vpack.c.b16 %v1576, %v1572
      %v1705 = vpack.c.b16 %v1577, %v1573
      %v1706 = vpack.c.b16 %v1578, %v1574
      %1835 = vmatprep.subr.bf16.mxu0 %v1580
      %1836 = vmatpush1.bf16.msra.mxu0 %v1579
      %1837 = vmatprep.subr.bf16.mxu0 %v1584
      %1838 = vmatpush1.bf16.msra.mxu0 %v1583
      %1839 = vmatprep.subr.bf16.mxu0 %v1588
      %1840 = vmatpush1.bf16.msra.mxu0 %v1587
      %1841 = vmatprep.subr.bf16.mxu0 %v1592
      %1842 = vmatpush1.bf16.msra.mxu0 %v1591
      %1843 = vmatprep.subr.bf16.mxu0 %v1596
      %1844 = vmatpush1.bf16.msra.mxu0 %v1595
      %1845 = vmatprep.subr.bf16.mxu0 %v1600
      %1846 = vmatpush1.bf16.msra.mxu0 %v1599
      %1847 = vmatprep.subr.bf16.mxu0 %v1604
      %1848 = vmatpush1.bf16.msra.mxu0 %v1603
      %1849 = vmatprep.subr.bf16.mxu0 %v1608
      %1850 = vmatpush1.bf16.msra.mxu0 %v1607
      %1851 = vmatprep.subr.bf16.mxu0 %v1612
      %1852 = vmatpush1.bf16.msra.mxu0 %v1611
      %1853 = vmatprep.subr.bf16.mxu0 %v1616
      %1854 = vmatpush1.bf16.msra.mxu0 %v1615
      %1855 = vmatprep.subr.bf16.mxu0 %v1620
      %1856 = vmatpush1.bf16.msra.mxu0 %v1619
      %1857 = vmatprep.subr.bf16.mxu0 %v1624
      %1858 = vmatpush1.bf16.msra.mxu0 %v1623
      %1859 = vmatprep.subr.bf16.mxu0 %v1628
      %1860 = vmatpush1.bf16.msra.mxu0 %v1627
      %1861 = vmatprep.subr.bf16.mxu0 %v1632
      %1862 = vmatpush1.bf16.msra.mxu0 %v1631
      %1863 = vmatprep.subr.bf16.mxu0 %v1636
      %1864 = vmatpush1.bf16.msra.mxu0 %v1635
      %1865 = vmatprep.subr.bf16.mxu0 %v1640
      %1866 = vmatpush1.bf16.msra.mxu0 %v1639
      %1867 = vmatprep.mubr.bf16.mxu0 %v1014
      %1868 = vmatmul.mubr.bf16.gmra.mrb[0].mxu0 %v1013
      %v1869 = vpop.f32.mrb[0].mxu0
      %v1870 = vadd.f32 %v1178, %v1869
      %v1871 = vpop.f32.mrb[0].mxu0
      %v1872 = vadd.f32 %v1182, %v1871
      %v1873 = vpop.f32.mrb[0].mxu0
      %v1874 = vadd.f32 %v1178, %v1873
      %v1875 = vpop.f32.mrb[0].mxu0
      %v1876 = vadd.f32 %v1182, %v1875
      %1877 = vmatprep.mubr.bf16.mxu0 %v1018
      %1878 = vmatmul.mubr.bf16.gmra.mrb[0].mxu0 %v1017
      %v1879 = vpop.f32.mrb[0].mxu0
      %v1880 = vadd.f32 %v1178, %v1879
      %v1881 = vpop.f32.mrb[0].mxu0
      %v1882 = vadd.f32 %v1182, %v1881
      %v1883 = vpop.f32.mrb[0].mxu0
      %v1884 = vadd.f32 %v1178, %v1883
      %v1885 = vpop.f32.mrb[0].mxu0
      %v1886 = vadd.f32 %v1182, %v1885
      %1887 = vmatprep.mubr.bf16.mxu0 %v1022
      %1888 = vmatmul.mubr.bf16.gmra.mrb[0].mxu0 %v1021
      %v1889 = vpop.f32.mrb[0].mxu0
      %v1890 = vadd.f32 %v1178, %v1889
      %v1891 = vpop.f32.mrb[0].mxu0
      %v1892 = vadd.f32 %v1182, %v1891
      %v1893 = vpop.f32.mrb[0].mxu0
      %v1894 = vadd.f32 %v1178, %v1893
      %v1895 = vpop.f32.mrb[0].mxu0
      %v1896 = vadd.f32 %v1182, %v1895
      %1897 = vmatprep.mubr.bf16.mxu0 %v1026
      %1898 = vmatmul.mubr.bf16.gmra.mrb[0].mxu0 %v1025
      %v1899 = vpop.f32.mrb[0].mxu0
      %v1900 = vadd.f32 %v1178, %v1899
      %v1901 = vpop.f32.mrb[0].mxu0
      %v1902 = vadd.f32 %v1182, %v1901
      %v1903 = vpop.f32.mrb[0].mxu0
      %v1904 = vadd.f32 %v1178, %v1903
      %v1905 = vpop.f32.mrb[0].mxu0
      %v1906 = vadd.f32 %v1182, %v1905
      %1907 = vmatprep.mubr.bf16.mxu0 %v1030
      %1908 = vmatmul.mubr.bf16.gmra.mrb[0].mxu0 %v1029
      %v1909 = vpop.f32.mrb[0].mxu0
      %v1910 = vadd.f32 %v1178, %v1909
      %v1911 = vpop.f32.mrb[0].mxu0
      %v1912 = vadd.f32 %v1182, %v1911
      %v1913 = vpop.f32.mrb[0].mxu0
      %v1914 = vadd.f32 %v1178, %v1913
      %v1915 = vpop.f32.mrb[0].mxu0
      %v1916 = vadd.f32 %v1182, %v1915
      %1917 = vmatprep.mubr.bf16.mxu0 %v1034
      %1918 = vmatmul.mubr.bf16.gmra.mrb[0].mxu0 %v1033
      %v1919 = vpop.f32.mrb[0].mxu0
      %v1920 = vadd.f32 %v1178, %v1919
      %v1921 = vpop.f32.mrb[0].mxu0
      %v1922 = vadd.f32 %v1182, %v1921
      %v1923 = vpop.f32.mrb[0].mxu0
      %v1924 = vadd.f32 %v1178, %v1923
      %v1925 = vpop.f32.mrb[0].mxu0
      %v1926 = vadd.f32 %v1182, %v1925
      %1927 = vmatprep.mubr.bf16.mxu0 %v1038
      %1928 = vmatmul.mubr.bf16.gmra.mrb[0].mxu0 %v1037
      %v1929 = vpop.f32.mrb[0].mxu0
      %v1930 = vadd.f32 %v1178, %v1929
      %v1931 = vpop.f32.mrb[0].mxu0
      %v1932 = vadd.f32 %v1182, %v1931
      %v1933 = vpop.f32.mrb[0].mxu0
      %v1934 = vadd.f32 %v1178, %v1933
      %v1935 = vpop.f32.mrb[0].mxu0
      %v1936 = vadd.f32 %v1182, %v1935
      %1937 = vmatprep.mubr.bf16.mxu0 %v1042
      %1938 = vmatmul.mubr.bf16.gmra.mrb[0].mxu0 %v1041
      %v1939 = vpop.f32.mrb[0].mxu0
      %v1940 = vadd.f32 %v1178, %v1939
      %v1941 = vpop.f32.mrb[0].mxu0
      %v1942 = vadd.f32 %v1182, %v1941
      %v1943 = vpop.f32.mrb[0].mxu0
      %v1944 = vadd.f32 %v1178, %v1943
      %v1945 = vpop.f32.mrb[0].mxu0
      %v1946 = vadd.f32 %v1182, %v1945
      %1947 = vdwg.mxu0
      %1948 = vmatprep.subr.bf16.mxu0 %v1644
      %1949 = vmatpush1.bf16.msra.mxu0 %v1643
      %1950 = vmatprep.subr.bf16.mxu0 %v1648
      %1951 = vmatpush1.bf16.msra.mxu0 %v1647
      %1952 = vmatprep.subr.bf16.mxu0 %v1652
      %1953 = vmatpush1.bf16.msra.mxu0 %v1651
      %1954 = vmatprep.subr.bf16.mxu0 %v1656
      %1955 = vmatpush1.bf16.msra.mxu0 %v1655
      %1956 = vmatprep.subr.bf16.mxu0 %v1660
      %1957 = vmatpush1.bf16.msra.mxu0 %v1659
      %1958 = vmatprep.subr.bf16.mxu0 %v1664
      %1959 = vmatpush1.bf16.msra.mxu0 %v1663
      %1960 = vmatprep.subr.bf16.mxu0 %v1668
      %1961 = vmatpush1.bf16.msra.mxu0 %v1667
      %1962 = vmatprep.subr.bf16.mxu0 %v1672
      %1963 = vmatpush1.bf16.msra.mxu0 %v1671
      %1964 = vmatprep.subr.bf16.mxu0 %v1676
      %1965 = vmatpush1.bf16.msra.mxu0 %v1675
      %1966 = vmatprep.subr.bf16.mxu0 %v1680
      %1967 = vmatpush1.bf16.msra.mxu0 %v1679
      %1968 = vmatprep.subr.bf16.mxu0 %v1684
      %1969 = vmatpush1.bf16.msra.mxu0 %v1683
      %1970 = vmatprep.subr.bf16.mxu0 %v1688
      %1971 = vmatpush1.bf16.msra.mxu0 %v1687
      %1972 = vmatprep.subr.bf16.mxu0 %v1692
      %1973 = vmatpush1.bf16.msra.mxu0 %v1691
      %1974 = vmatprep.subr.bf16.mxu0 %v1696
      %1975 = vmatpush1.bf16.msra.mxu0 %v1695
      %1976 = vmatprep.subr.bf16.mxu0 %v1700
      %1977 = vmatpush1.bf16.msra.mxu0 %v1699
      %1978 = vmatprep.subr.bf16.mxu0 %v1704
      %1979 = vmatpush1.bf16.msra.mxu0 %v1703
      %1980 = vmatprep.mubr.bf16.mxu0 %v1016
      %1981 = vmatmul.mubr.bf16.gmra.mrb[0].mxu0 %v1015
      %v1982 = vpop.f32.mrb[0].mxu0
      %v1983 = vadd.f32 %v1870, %v1982
      %v1984 = vpop.f32.mrb[0].mxu0
      %v1985 = vadd.f32 %v1872, %v1984
      %v1986 = vpop.f32.mrb[0].mxu0
      %v1987 = vadd.f32 %v1874, %v1986
      %v1988 = vpop.f32.mrb[0].mxu0
      %v1989 = vadd.f32 %v1876, %v1988
      %1990 = vmatprep.mubr.bf16.mxu0 %v1020
      %1991 = vmatmul.mubr.bf16.gmra.mrb[0].mxu0 %v1019
      %v1992 = vpop.f32.mrb[0].mxu0
      %v1993 = vadd.f32 %v1880, %v1992
      %v1994 = vpop.f32.mrb[0].mxu0
      %v1995 = vadd.f32 %v1882, %v1994
      %v1996 = vpop.f32.mrb[0].mxu0
      %v1997 = vadd.f32 %v1884, %v1996
      %v1998 = vpop.f32.mrb[0].mxu0
      %v1999 = vadd.f32 %v1886, %v1998
      %2000 = vmatprep.mubr.bf16.mxu0 %v1024
      %2001 = vmatmul.mubr.bf16.gmra.mrb[0].mxu0 %v1023
      %v2002 = vpop.f32.mrb[0].mxu0
      %v2003 = vadd.f32 %v1890, %v2002
      %v2004 = vpop.f32.mrb[0].mxu0
      %v2005 = vadd.f32 %v1892, %v2004
      %v2006 = vpop.f32.mrb[0].mxu0
      %v2007 = vadd.f32 %v1894, %v2006
      %v2008 = vpop.f32.mrb[0].mxu0
      %v2009 = vadd.f32 %v1896, %v2008
      %2010 = vmatprep.mubr.bf16.mxu0 %v1028
      %2011 = vmatmul.mubr.bf16.gmra.mrb[0].mxu0 %v1027
      %v2012 = vpop.f32.mrb[0].mxu0
      %v2013 = vadd.f32 %v1900, %v2012
      %v2014 = vpop.f32.mrb[0].mxu0
      %v2015 = vadd.f32 %v1902, %v2014
      %v2016 = vpop.f32.mrb[0].mxu0
      %v2017 = vadd.f32 %v1904, %v2016
      %v2018 = vpop.f32.mrb[0].mxu0
      %v2019 = vadd.f32 %v1906, %v2018
      %2020 = vmatprep.mubr.bf16.mxu0 %v1032
      %2021 = vmatmul.mubr.bf16.gmra.mrb[0].mxu0 %v1031
      %v2022 = vpop.f32.mrb[0].mxu0
      %v2023 = vadd.f32 %v1910, %v2022
      %v2024 = vpop.f32.mrb[0].mxu0
      %v2025 = vadd.f32 %v1912, %v2024
      %v2026 = vpop.f32.mrb[0].mxu0
      %v2027 = vadd.f32 %v1914, %v2026
      %v2028 = vpop.f32.mrb[0].mxu0
      %v2029 = vadd.f32 %v1916, %v2028
      %2030 = vmatprep.mubr.bf16.mxu0 %v1036
      %2031 = vmatmul.mubr.bf16.gmra.mrb[0].mxu0 %v1035
      %v2032 = vpop.f32.mrb[0].mxu0
      %v2033 = vadd.f32 %v1920, %v2032
      %v2034 = vpop.f32.mrb[0].mxu0
      %v2035 = vadd.f32 %v1922, %v2034
      %v2036 = vpop.f32.mrb[0].mxu0
      %v2037 = vadd.f32 %v1924, %v2036
      %v2038 = vpop.f32.mrb[0].mxu0
      %v2039 = vadd.f32 %v1926, %v2038
      %2040 = vmatprep.mubr.bf16.mxu0 %v1040
      %2041 = vmatmul.mubr.bf16.gmra.mrb[0].mxu0 %v1039
      %v2042 = vpop.f32.mrb[0].mxu0
      %v2043 = vadd.f32 %v1930, %v2042
      %v2044 = vpop.f32.mrb[0].mxu0
      %v2045 = vadd.f32 %v1932, %v2044
      %v2046 = vpop.f32.mrb[0].mxu0
      %v2047 = vadd.f32 %v1934, %v2046
      %v2048 = vpop.f32.mrb[0].mxu0
      %v2049 = vadd.f32 %v1936, %v2048
      %2050 = vmatprep.mubr.bf16.mxu0 %v1044
      %2051 = vmatmul.mubr.bf16.gmra.mrb[0].mxu0 %v1043
      %v2052 = vpop.f32.mrb[0].mxu0
      %v2053 = vadd.f32 %v1940, %v2052
      %v2054 = vpop.f32.mrb[0].mxu0
      %v2055 = vadd.f32 %v1942, %v2054
      %v2056 = vpop.f32.mrb[0].mxu0
      %v2057 = vadd.f32 %v1944, %v2056
      %v2058 = vpop.f32.mrb[0].mxu0
      %v2059 = vadd.f32 %v1946, %v2058
      %2060 = vdwg.mxu0
      %2061 = vmatprep.subr.bf16.mxu0 %v1582
      %2062 = vmatpush1.bf16.msra.mxu0 %v1581
      %2063 = vmatprep.subr.bf16.mxu0 %v1586
      %2064 = vmatpush1.bf16.msra.mxu0 %v1585
      %2065 = vmatprep.subr.bf16.mxu0 %v1590
      %2066 = vmatpush1.bf16.msra.mxu0 %v1589
      %2067 = vmatprep.subr.bf16.mxu0 %v1594
      %2068 = vmatpush1.bf16.msra.mxu0 %v1593
      %2069 = vmatprep.subr.bf16.mxu0 %v1598
      %2070 = vmatpush1.bf16.msra.mxu0 %v1597
      %2071 = vmatprep.subr.bf16.mxu0 %v1602
      %2072 = vmatpush1.bf16.msra.mxu0 %v1601
      %2073 = vmatprep.subr.bf16.mxu0 %v1606
      %2074 = vmatpush1.bf16.msra.mxu0 %v1605
      %2075 = vmatprep.subr.bf16.mxu0 %v1610
      %2076 = vmatpush1.bf16.msra.mxu0 %v1609
      %2077 = vmatprep.subr.bf16.mxu0 %v1614
      %2078 = vmatpush1.bf16.msra.mxu0 %v1613
      %2079 = vmatprep.subr.bf16.mxu0 %v1618
      %2080 = vmatpush1.bf16.msra.mxu0 %v1617
      %2081 = vmatprep.subr.bf16.mxu0 %v1622
      %2082 = vmatpush1.bf16.msra.mxu0 %v1621
      %2083 = vmatprep.subr.bf16.mxu0 %v1626
      %2084 = vmatpush1.bf16.msra.mxu0 %v1625
      %2085 = vmatprep.subr.bf16.mxu0 %v1630
      %2086 = vmatpush1.bf16.msra.mxu0 %v1629
      %2087 = vmatprep.subr.bf16.mxu0 %v1634
      %2088 = vmatpush1.bf16.msra.mxu0 %v1633
      %2089 = vmatprep.subr.bf16.mxu0 %v1638
      %2090 = vmatpush1.bf16.msra.mxu0 %v1637
      %2091 = vmatprep.subr.bf16.mxu0 %v1642
      %2092 = vmatpush1.bf16.msra.mxu0 %v1641
      %2093 = vmatprep.mubr.bf16.mxu0 %v1014
      %2094 = vmatmul.mubr.bf16.gmra.mrb[0].mxu0 %v1013
      %v2095 = vpop.f32.mrb[0].mxu0
      %v2096 = vadd.f32 %v1186, %v2095
      %v2097 = vpop.f32.mrb[0].mxu0
      %v2098 = vadd.f32 %v1190, %v2097
      %v2099 = vpop.f32.mrb[0].mxu0
      %v2100 = vadd.f32 %v1186, %v2099
      %v2101 = vpop.f32.mrb[0].mxu0
      %v2102 = vadd.f32 %v1190, %v2101
      %2103 = vmatprep.mubr.bf16.mxu0 %v1018
      %2104 = vmatmul.mubr.bf16.gmra.mrb[0].mxu0 %v1017
      %v2105 = vpop.f32.mrb[0].mxu0
      %v2106 = vadd.f32 %v1186, %v2105
      %v2107 = vpop.f32.mrb[0].mxu0
      %v2108 = vadd.f32 %v1190, %v2107
      %v2109 = vpop.f32.mrb[0].mxu0
      %v2110 = vadd.f32 %v1186, %v2109
      %v2111 = vpop.f32.mrb[0].mxu0
      %v2112 = vadd.f32 %v1190, %v2111
      %2113 = vmatprep.mubr.bf16.mxu0 %v1022
      %2114 = vmatmul.mubr.bf16.gmra.mrb[0].mxu0 %v1021
      %v2115 = vpop.f32.mrb[0].mxu0
      %v2116 = vadd.f32 %v1186, %v2115
      %v2117 = vpop.f32.mrb[0].mxu0
      %v2118 = vadd.f32 %v1190, %v2117
      %v2119 = vpop.f32.mrb[0].mxu0
      %v2120 = vadd.f32 %v1186, %v2119
      %v2121 = vpop.f32.mrb[0].mxu0
      %v2122 = vadd.f32 %v1190, %v2121
      %2123 = vmatprep.mubr.bf16.mxu0 %v1026
      %2124 = vmatmul.mubr.bf16.gmra.mrb[0].mxu0 %v1025
      %v2125 = vpop.f32.mrb[0].mxu0
      %v2126 = vadd.f32 %v1186, %v2125
      %v2127 = vpop.f32.mrb[0].mxu0
      %v2128 = vadd.f32 %v1190, %v2127
      %v2129 = vpop.f32.mrb[0].mxu0
      %v2130 = vadd.f32 %v1186, %v2129
      %v2131 = vpop.f32.mrb[0].mxu0
      %v2132 = vadd.f32 %v1190, %v2131
      %2133 = vmatprep.mubr.bf16.mxu0 %v1030
      %2134 = vmatmul.mubr.bf16.gmra.mrb[0].mxu0 %v1029
      %v2135 = vpop.f32.mrb[0].mxu0
      %v2136 = vadd.f32 %v1186, %v2135
      %v2137 = vpop.f32.mrb[0].mxu0
      %v2138 = vadd.f32 %v1190, %v2137
      %v2139 = vpop.f32.mrb[0].mxu0
      %v2140 = vadd.f32 %v1186, %v2139
      %v2141 = vpop.f32.mrb[0].mxu0
      %v2142 = vadd.f32 %v1190, %v2141
      %2143 = vmatprep.mubr.bf16.mxu0 %v1034
      %2144 = vmatmul.mubr.bf16.gmra.mrb[0].mxu0 %v1033
      %v2145 = vpop.f32.mrb[0].mxu0
      %v2146 = vadd.f32 %v1186, %v2145
      %v2147 = vpop.f32.mrb[0].mxu0
      %v2148 = vadd.f32 %v1190, %v2147
      %v2149 = vpop.f32.mrb[0].mxu0
      %v2150 = vadd.f32 %v1186, %v2149
      %v2151 = vpop.f32.mrb[0].mxu0
      %v2152 = vadd.f32 %v1190, %v2151
      %2153 = vmatprep.mubr.bf16.mxu0 %v1038
      %2154 = vmatmul.mubr.bf16.gmra.mrb[0].mxu0 %v1037
      %v2155 = vpop.f32.mrb[0].mxu0
      %v2156 = vadd.f32 %v1186, %v2155
      %v2157 = vpop.f32.mrb[0].mxu0
      %v2158 = vadd.f32 %v1190, %v2157
      %v2159 = vpop.f32.mrb[0].mxu0
      %v2160 = vadd.f32 %v1186, %v2159
      %v2161 = vpop.f32.mrb[0].mxu0
      %v2162 = vadd.f32 %v1190, %v2161
      %2163 = vmatprep.mubr.bf16.mxu0 %v1042
      %2164 = vmatmul.mubr.bf16.gmra.mrb[0].mxu0 %v1041
      %v2165 = vpop.f32.mrb[0].mxu0
      %v2166 = vadd.f32 %v1186, %v2165
      %v2167 = vpop.f32.mrb[0].mxu0
      %v2168 = vadd.f32 %v1190, %v2167
      %v2169 = vpop.f32.mrb[0].mxu0
      %v2170 = vadd.f32 %v1186, %v2169
      %v2171 = vpop.f32.mrb[0].mxu0
      %v2172 = vadd.f32 %v1190, %v2171
      %2173 = vdwg.mxu0
      %2174 = vmatprep.subr.bf16.mxu0 %v1646
      %2175 = vmatpush1.bf16.msra.mxu0 %v1645
      %2176 = vmatprep.subr.bf16.mxu0 %v1650
      %2177 = vmatpush1.bf16.msra.mxu0 %v1649
      %2178 = vmatprep.subr.bf16.mxu0 %v1654
      %2179 = vmatpush1.bf16.msra.mxu0 %v1653
      %2180 = vmatprep.subr.bf16.mxu0 %v1658
      %2181 = vmatpush1.bf16.msra.mxu0 %v1657
      %2182 = vmatprep.subr.bf16.mxu0 %v1662
      %2183 = vmatpush1.bf16.msra.mxu0 %v1661
      %2184 = vmatprep.subr.bf16.mxu0 %v1666
      %2185 = vmatpush1.bf16.msra.mxu0 %v1665
      %2186 = vmatprep.subr.bf16.mxu0 %v1670
      %2187 = vmatpush1.bf16.msra.mxu0 %v1669
      %2188 = vmatprep.subr.bf16.mxu0 %v1674
      %2189 = vmatpush1.bf16.msra.mxu0 %v1673
      %2190 = vmatprep.subr.bf16.mxu0 %v1678
      %2191 = vmatpush1.bf16.msra.mxu0 %v1677
      %2192 = vmatprep.subr.bf16.mxu0 %v1682
      %2193 = vmatpush1.bf16.msra.mxu0 %v1681
      %2194 = vmatprep.subr.bf16.mxu0 %v1686
      %2195 = vmatpush1.bf16.msra.mxu0 %v1685
      %2196 = vmatprep.subr.bf16.mxu0 %v1690
      %2197 = vmatpush1.bf16.msra.mxu0 %v1689
      %2198 = vmatprep.subr.bf16.mxu0 %v1694
      %2199 = vmatpush1.bf16.msra.mxu0 %v1693
      %2200 = vmatprep.subr.bf16.mxu0 %v1698
      %2201 = vmatpush1.bf16.msra.mxu0 %v1697
      %2202 = vmatprep.subr.bf16.mxu0 %v1702
      %2203 = vmatpush1.bf16.msra.mxu0 %v1701
      %2204 = vmatprep.subr.bf16.mxu0 %v1706
      %2205 = vmatpush1.bf16.msra.mxu0 %v1705
      %2206 = vmatprep.mubr.bf16.mxu0 %v1016
      %2207 = vmatmul.mubr.bf16.gmra.mrb[0].mxu0 %v1015
      %v2208 = vpop.f32.mrb[0].mxu0
      %v2209 = vadd.f32 %v2096, %v2208
      %v2210 = vpop.f32.mrb[0].mxu0
      %v2211 = vadd.f32 %v2098, %v2210
      %v2212 = vpop.f32.mrb[0].mxu0
      %v2213 = vadd.f32 %v2100, %v2212
      %v2214 = vpop.f32.mrb[0].mxu0
      %v2215 = vadd.f32 %v2102, %v2214
      %2216 = vmatprep.mubr.bf16.mxu0 %v1020
      %2217 = vmatmul.mubr.bf16.gmra.mrb[0].mxu0 %v1019
      %v2218 = vpop.f32.mrb[0].mxu0
      %v2219 = vadd.f32 %v2106, %v2218
      %v2220 = vpop.f32.mrb[0].mxu0
      %v2221 = vadd.f32 %v2108, %v2220
      %v2222 = vpop.f32.mrb[0].mxu0
      %v2223 = vadd.f32 %v2110, %v2222
      %v2224 = vpop.f32.mrb[0].mxu0
      %v2225 = vadd.f32 %v2112, %v2224
      %2226 = vmatprep.mubr.bf16.mxu0 %v1024
      %2227 = vmatmul.mubr.bf16.gmra.mrb[0].mxu0 %v1023
      %v2228 = vpop.f32.mrb[0].mxu0
      %v2229 = vadd.f32 %v2116, %v2228
      %v2230 = vpop.f32.mrb[0].mxu0
      %v2231 = vadd.f32 %v2118, %v2230
      %v2232 = vpop.f32.mrb[0].mxu0
      %v2233 = vadd.f32 %v2120, %v2232
      %v2234 = vpop.f32.mrb[0].mxu0
      %v2235 = vadd.f32 %v2122, %v2234
      %2236 = vmatprep.mubr.bf16.mxu0 %v1028
      %2237 = vmatmul.mubr.bf16.gmra.mrb[0].mxu0 %v1027
      %v2238 = vpop.f32.mrb[0].mxu0
      %v2239 = vadd.f32 %v2126, %v2238
      %v2240 = vpop.f32.mrb[0].mxu0
      %v2241 = vadd.f32 %v2128, %v2240
      %v2242 = vpop.f32.mrb[0].mxu0
      %v2243 = vadd.f32 %v2130, %v2242
      %v2244 = vpop.f32.mrb[0].mxu0
      %v2245 = vadd.f32 %v2132, %v2244
      %2246 = vmatprep.mubr.bf16.mxu0 %v1032
      %2247 = vmatmul.mubr.bf16.gmra.mrb[0].mxu0 %v1031
      %v2248 = vpop.f32.mrb[0].mxu0
      %v2249 = vadd.f32 %v2136, %v2248
      %v2250 = vpop.f32.mrb[0].mxu0
      %v2251 = vadd.f32 %v2138, %v2250
      %v2252 = vpop.f32.mrb[0].mxu0
      %v2253 = vadd.f32 %v2140, %v2252
      %v2254 = vpop.f32.mrb[0].mxu0
      %v2255 = vadd.f32 %v2142, %v2254
      %2256 = vmatprep.mubr.bf16.mxu0 %v1036
      %2257 = vmatmul.mubr.bf16.gmra.mrb[0].mxu0 %v1035
      %v2258 = vpop.f32.mrb[0].mxu0
      %v2259 = vadd.f32 %v2146, %v2258
      %v2260 = vpop.f32.mrb[0].mxu0
      %v2261 = vadd.f32 %v2148, %v2260
      %v2262 = vpop.f32.mrb[0].mxu0
      %v2263 = vadd.f32 %v2150, %v2262
      %v2264 = vpop.f32.mrb[0].mxu0
      %v2265 = vadd.f32 %v2152, %v2264
      %2266 = vmatprep.mubr.bf16.mxu0 %v1040
      %2267 = vmatmul.mubr.bf16.gmra.mrb[0].mxu0 %v1039
      %v2268 = vpop.f32.mrb[0].mxu0
      %v2269 = vadd.f32 %v2156, %v2268
      %v2270 = vpop.f32.mrb[0].mxu0
      %v2271 = vadd.f32 %v2158, %v2270
      %v2272 = vpop.f32.mrb[0].mxu0
      %v2273 = vadd.f32 %v2160, %v2272
      %v2274 = vpop.f32.mrb[0].mxu0
      %v2275 = vadd.f32 %v2162, %v2274
      %2276 = vmatprep.mubr.bf16.mxu0 %v1044
      %2277 = vmatmul.mubr.bf16.gmra.mrb[0].mxu0 %v1043
      %v2278 = vpop.f32.mrb[0].mxu0
      %v2279 = vadd.f32 %v2166, %v2278
      %v2280 = vpop.f32.mrb[0].mxu0
      %v2281 = vadd.f32 %v2168, %v2280
      %v2282 = vpop.f32.mrb[0].mxu0
      %v2283 = vadd.f32 %v2170, %v2282
      %v2284 = vpop.f32.mrb[0].mxu0
      %v2285 = vadd.f32 %v2172, %v2284
      %2286 = vdwg.mxu0
      %v2287 = vmax.f32 %v1983, 0.0
      %v2288 = vmax.f32 %v1985, 0.0
      %v2289 = vmax.f32 %v2209, 0.0
      %v2290 = vmax.f32 %v2211, 0.0
      %v2291 = vmax.f32 %v1987, 0.0
      %v2292 = vmax.f32 %v1989, 0.0
      %v2293 = vmax.f32 %v2213, 0.0
      %v2294 = vmax.f32 %v2215, 0.0
      %v2295 = vmax.f32 %v1993, 0.0
      %v2296 = vmax.f32 %v1995, 0.0
      %v2297 = vmax.f32 %v2219, 0.0
      %v2298 = vmax.f32 %v2221, 0.0
      %v2299 = vmax.f32 %v1997, 0.0
      %v2300 = vmax.f32 %v1999, 0.0
      %v2301 = vmax.f32 %v2223, 0.0
      %v2302 = vmax.f32 %v2225, 0.0
      %v2303 = vmax.f32 %v2003, 0.0
      %v2304 = vmax.f32 %v2005, 0.0
      %v2305 = vmax.f32 %v2229, 0.0
      %v2306 = vmax.f32 %v2231, 0.0
      %v2307 = vmax.f32 %v2007, 0.0
      %v2308 = vmax.f32 %v2009, 0.0
      %v2309 = vmax.f32 %v2233, 0.0
      %v2310 = vmax.f32 %v2235, 0.0
      %v2311 = vmax.f32 %v2013, 0.0
      %v2312 = vmax.f32 %v2015, 0.0
      %v2313 = vmax.f32 %v2239, 0.0
      %v2314 = vmax.f32 %v2241, 0.0
      %v2315 = vmax.f32 %v2017, 0.0
      %v2316 = vmax.f32 %v2019, 0.0
      %v2317 = vmax.f32 %v2243, 0.0
      %v2318 = vmax.f32 %v2245, 0.0
      %v2319 = vmax.f32 %v2023, 0.0
      %v2320 = vmax.f32 %v2025, 0.0
      %v2321 = vmax.f32 %v2249, 0.0
      %v2322 = vmax.f32 %v2251, 0.0
      %v2323 = vmax.f32 %v2027, 0.0
      %v2324 = vmax.f32 %v2029, 0.0
      %v2325 = vmax.f32 %v2253, 0.0
      %v2326 = vmax.f32 %v2255, 0.0
      %v2327 = vmax.f32 %v2033, 0.0
      %v2328 = vmax.f32 %v2035, 0.0
      %v2329 = vmax.f32 %v2259, 0.0
      %v2330 = vmax.f32 %v2261, 0.0
      %v2331 = vmax.f32 %v2037, 0.0
      %v2332 = vmax.f32 %v2039, 0.0
      %v2333 = vmax.f32 %v2263, 0.0
      %v2334 = vmax.f32 %v2265, 0.0
      %v2335 = vmax.f32 %v2043, 0.0
      %v2336 = vmax.f32 %v2045, 0.0
      %v2337 = vmax.f32 %v2269, 0.0
      %v2338 = vmax.f32 %v2271, 0.0
      %v2339 = vmax.f32 %v2047, 0.0
      %v2340 = vmax.f32 %v2049, 0.0
      %v2341 = vmax.f32 %v2273, 0.0
      %v2342 = vmax.f32 %v2275, 0.0
      %v2343 = vmax.f32 %v2053, 0.0
      %v2344 = vmax.f32 %v2055, 0.0
      %v2345 = vmax.f32 %v2279, 0.0
      %v2346 = vmax.f32 %v2281, 0.0
      %v2347 = vmax.f32 %v2057, 0.0
      %v2348 = vmax.f32 %v2059, 0.0
      %v2349 = vmax.f32 %v2283, 0.0
      %v2350 = vmax.f32 %v2285, 0.0
      %v2351 = vpack.c.bf16 %v2291, %v2287
      %v2352 = vpack.c.bf16 %v2292, %v2288
      %v2353 = vpack.c.bf16 %v2293, %v2289
      %v2354 = vpack.c.bf16 %v2294, %v2290
      %v2355 = vpack.c.bf16 %v2299, %v2295
      %v2356 = vpack.c.bf16 %v2300, %v2296
      %v2357 = vpack.c.bf16 %v2301, %v2297
      %v2358 = vpack.c.bf16 %v2302, %v2298
      %v2359 = vpack.c.bf16 %v2307, %v2303
      %v2360 = vpack.c.bf16 %v2308, %v2304
      %v2361 = vpack.c.bf16 %v2309, %v2305
      %v2362 = vpack.c.bf16 %v2310, %v2306
      %v2363 = vpack.c.bf16 %v2315, %v2311
      %v2364 = vpack.c.bf16 %v2316, %v2312
      %v2365 = vpack.c.bf16 %v2317, %v2313
      %v2366 = vpack.c.bf16 %v2318, %v2314
      %v2367 = vpack.c.bf16 %v2323, %v2319
      %v2368 = vpack.c.bf16 %v2324, %v2320
      %v2369 = vpack.c.bf16 %v2325, %v2321
      %v2370 = vpack.c.bf16 %v2326, %v2322
      %v2371 = vpack.c.bf16 %v2331, %v2327
      %v2372 = vpack.c.bf16 %v2332, %v2328
      %v2373 = vpack.c.bf16 %v2333, %v2329
      %v2374 = vpack.c.bf16 %v2334, %v2330
      %v2375 = vpack.c.bf16 %v2339, %v2335
      %v2376 = vpack.c.bf16 %v2340, %v2336
      %v2377 = vpack.c.bf16 %v2341, %v2337
      %v2378 = vpack.c.bf16 %v2342, %v2338
      %v2379 = vpack.c.bf16 %v2347, %v2343
      %v2380 = vpack.c.bf16 %v2348, %v2344
      %v2381 = vpack.c.bf16 %v2349, %v2345
      %v2382 = vpack.c.bf16 %v2350, %v2346
      %v2383 = vld [vmem:[%s5] sm:$0xff]
      %v2384 = vld [vmem:[%s5 + $0x8] sm:$0xff]
      %v2385 = vld [vmem:[%s5 + $0x10] sm:$0xff]
      %v2386 = vld [vmem:[%s5 + $0x18] sm:$0xff]
      %v2387 = vld [vmem:[%s5 + $0x20] sm:$0xff]
      %v2388 = vld [vmem:[%s5 + $0x28] sm:$0xff]
      %v2389 = vld [vmem:[%s5 + $0x30] sm:$0xff]
      %v2390 = vld [vmem:[%s5 + $0x38] sm:$0xff]
      %v2391 = vld [vmem:[%s5 + $0x40] sm:$0xff]
      %v2392 = vld [vmem:[%s5 + $0x48] sm:$0xff]
      %v2393 = vld [vmem:[%s5 + $0x50] sm:$0xff]
      %v2394 = vld [vmem:[%s5 + $0x58] sm:$0xff]
      %v2395 = vld [vmem:[%s5 + $0x60] sm:$0xff]
      %v2396 = vld [vmem:[%s5 + $0x68] sm:$0xff]
      %v2397 = vld [vmem:[%s5 + $0x70] sm:$0xff]
      %v2398 = vld [vmem:[%s5 + $0x78] sm:$0xff]
      %v2399 = vld [vmem:[%s5 + $0x80] sm:$0xff]
      %v2400 = vld [vmem:[%s5 + $0x88] sm:$0xff]
      %v2401 = vld [vmem:[%s5 + $0x90] sm:$0xff]
      %v2402 = vld [vmem:[%s5 + $0x98] sm:$0xff]
      %v2403 = vld [vmem:[%s5 + $0xa0] sm:$0xff]
      %v2404 = vld [vmem:[%s5 + $0xa8] sm:$0xff]
      %v2405 = vld [vmem:[%s5 + $0xb0] sm:$0xff]
      %v2406 = vld [vmem:[%s5 + $0xb8] sm:$0xff]
      %v2407 = vld [vmem:[%s5 + $0xc0] sm:$0xff]
      %v2408 = vld [vmem:[%s5 + $0xc8] sm:$0xff]
      %v2409 = vld [vmem:[%s5 + $0xd0] sm:$0xff]
      %v2410 = vld [vmem:[%s5 + $0xd8] sm:$0xff]
      %v2411 = vld [vmem:[%s5 + $0xe0] sm:$0xff]
      %v2412 = vld [vmem:[%s5 + $0xe8] sm:$0xff]
      %v2413 = vld [vmem:[%s5 + $0xf0] sm:$0xff]
      %v2414 = vld [vmem:[%s5 + $0xf8] sm:$0xff]
      %v2415 = vld [vmem:[%s5 + $0x100] sm:$0xff]
      %v2416 = vld [vmem:[%s5 + $0x108] sm:$0xff]
      %v2417 = vld [vmem:[%s5 + $0x110] sm:$0xff]
      %v2418 = vld [vmem:[%s5 + $0x118] sm:$0xff]
      %v2419 = vld [vmem:[%s5 + $0x120] sm:$0xff]
      %v2420 = vld [vmem:[%s5 + $0x128] sm:$0xff]
      %v2421 = vld [vmem:[%s5 + $0x130] sm:$0xff]
      %v2422 = vld [vmem:[%s5 + $0x138] sm:$0xff]
      %v2423 = vld [vmem:[%s5 + $0x140] sm:$0xff]
      %v2424 = vld [vmem:[%s5 + $0x148] sm:$0xff]
      %v2425 = vld [vmem:[%s5 + $0x150] sm:$0xff]
      %v2426 = vld [vmem:[%s5 + $0x158] sm:$0xff]
      %v2427 = vld [vmem:[%s5 + $0x160] sm:$0xff]
      %v2428 = vld [vmem:[%s5 + $0x168] sm:$0xff]
      %v2429 = vld [vmem:[%s5 + $0x170] sm:$0xff]
      %v2430 = vld [vmem:[%s5 + $0x178] sm:$0xff]
      %v2431 = vld [vmem:[%s5 + $0x180] sm:$0xff]
      %v2432 = vld [vmem:[%s5 + $0x188] sm:$0xff]
      %v2433 = vld [vmem:[%s5 + $0x190] sm:$0xff]
      %v2434 = vld [vmem:[%s5 + $0x198] sm:$0xff]
      %v2435 = vld [vmem:[%s5 + $0x1a0] sm:$0xff]
      %v2436 = vld [vmem:[%s5 + $0x1a8] sm:$0xff]
      %v2437 = vld [vmem:[%s5 + $0x1b0] sm:$0xff]
      %v2438 = vld [vmem:[%s5 + $0x1b8] sm:$0xff]
      %v2439 = vld [vmem:[%s5 + $0x1c0] sm:$0xff]
      %v2440 = vld [vmem:[%s5 + $0x1c8] sm:$0xff]
      %v2441 = vld [vmem:[%s5 + $0x1d0] sm:$0xff]
      %v2442 = vld [vmem:[%s5 + $0x1d8] sm:$0xff]
      %v2443 = vld [vmem:[%s5 + $0x1e0] sm:$0xff]
      %v2444 = vld [vmem:[%s5 + $0x1e8] sm:$0xff]
      %v2445 = vld [vmem:[%s5 + $0x1f0] sm:$0xff]
      %v2446 = vld [vmem:[%s5 + $0x1f8] sm:$0xff]
      %v2447 = vld [vmem:[%s6] sm:$0x3]
      %v2449 = vlaneseq
      %v2450 = vshrl.u32 %v2449, 7
      %v2451 = vsub.s32 0, %v2450
      %v2452 = vrot.slane %v2447, %v2451
      %v2453 = vlaneseq
      %v2454 = vshrl.u32 %v2453, 7
      %v2455 = vsub.s32 1, %v2454
      %v2456 = vrot.slane %v2447, %v2455
      %v2523 = vunpack.c.l.b16 %v2383
      %v2524 = vunpack.c.h.b16 %v2383
      %v2525 = vunpack.c.l.b16 %v2384
      %v2526 = vunpack.c.h.b16 %v2384
      %v2527 = vunpack.c.l.b16 %v2385
      %v2528 = vunpack.c.h.b16 %v2385
      %v2529 = vunpack.c.l.b16 %v2386
      %v2530 = vunpack.c.h.b16 %v2386
      %v2531 = vunpack.c.l.b16 %v2387
      %v2532 = vunpack.c.h.b16 %v2387
      %v2533 = vunpack.c.l.b16 %v2388
      %v2534 = vunpack.c.h.b16 %v2388
      %v2535 = vunpack.c.l.b16 %v2389
      %v2536 = vunpack.c.h.b16 %v2389
      %v2537 = vunpack.c.l.b16 %v2390
      %v2538 = vunpack.c.h.b16 %v2390
      %v2539 = vunpack.c.l.b16 %v2391
      %v2540 = vunpack.c.h.b16 %v2391
      %v2541 = vunpack.c.l.b16 %v2392
      %v2542 = vunpack.c.h.b16 %v2392
      %v2543 = vunpack.c.l.b16 %v2393
      %v2544 = vunpack.c.h.b16 %v2393
      %v2545 = vunpack.c.l.b16 %v2394
      %v2546 = vunpack.c.h.b16 %v2394
      %v2547 = vunpack.c.l.b16 %v2395
      %v2548 = vunpack.c.h.b16 %v2395
      %v2549 = vunpack.c.l.b16 %v2396
      %v2550 = vunpack.c.h.b16 %v2396
      %v2551 = vunpack.c.l.b16 %v2397
      %v2552 = vunpack.c.h.b16 %v2397
      %v2553 = vunpack.c.l.b16 %v2398
      %v2554 = vunpack.c.h.b16 %v2398
      %v2555 = vunpack.c.l.b16 %v2399
      %v2556 = vunpack.c.h.b16 %v2399
      %v2557 = vunpack.c.l.b16 %v2400
      %v2558 = vunpack.c.h.b16 %v2400
      %v2559 = vunpack.c.l.b16 %v2401
      %v2560 = vunpack.c.h.b16 %v2401
      %v2561 = vunpack.c.l.b16 %v2402
      %v2562 = vunpack.c.h.b16 %v2402
      %v2563 = vunpack.c.l.b16 %v2403
      %v2564 = vunpack.c.h.b16 %v2403
      %v2565 = vunpack.c.l.b16 %v2404
      %v2566 = vunpack.c.h.b16 %v2404
      %v2567 = vunpack.c.l.b16 %v2405
      %v2568 = vunpack.c.h.b16 %v2405
      %v2569 = vunpack.c.l.b16 %v2406
      %v2570 = vunpack.c.h.b16 %v2406
      %v2571 = vunpack.c.l.b16 %v2407
      %v2572 = vunpack.c.h.b16 %v2407
      %v2573 = vunpack.c.l.b16 %v2408
      %v2574 = vunpack.c.h.b16 %v2408
      %v2575 = vunpack.c.l.b16 %v2409
      %v2576 = vunpack.c.h.b16 %v2409
      %v2577 = vunpack.c.l.b16 %v2410
      %v2578 = vunpack.c.h.b16 %v2410
      %v2579 = vunpack.c.l.b16 %v2411
      %v2580 = vunpack.c.h.b16 %v2411
      %v2581 = vunpack.c.l.b16 %v2412
      %v2582 = vunpack.c.h.b16 %v2412
      %v2583 = vunpack.c.l.b16 %v2413
      %v2584 = vunpack.c.h.b16 %v2413
      %v2585 = vunpack.c.l.b16 %v2414
      %v2586 = vunpack.c.h.b16 %v2414
      %v2587 = vunpack.c.l.b16 %v2415
      %v2588 = vunpack.c.h.b16 %v2415
      %v2589 = vunpack.c.l.b16 %v2416
      %v2590 = vunpack.c.h.b16 %v2416
      %v2591 = vunpack.c.l.b16 %v2417
      %v2592 = vunpack.c.h.b16 %v2417
      %v2593 = vunpack.c.l.b16 %v2418
      %v2594 = vunpack.c.h.b16 %v2418
      %v2595 = vunpack.c.l.b16 %v2419
      %v2596 = vunpack.c.h.b16 %v2419
      %v2597 = vunpack.c.l.b16 %v2420
      %v2598 = vunpack.c.h.b16 %v2420
      %v2599 = vunpack.c.l.b16 %v2421
      %v2600 = vunpack.c.h.b16 %v2421
      %v2601 = vunpack.c.l.b16 %v2422
      %v2602 = vunpack.c.h.b16 %v2422
      %v2603 = vunpack.c.l.b16 %v2423
      %v2604 = vunpack.c.h.b16 %v2423
      %v2605 = vunpack.c.l.b16 %v2424
      %v2606 = vunpack.c.h.b16 %v2424
      %v2607 = vunpack.c.l.b16 %v2425
      %v2608 = vunpack.c.h.b16 %v2425
      %v2609 = vunpack.c.l.b16 %v2426
      %v2610 = vunpack.c.h.b16 %v2426
      %v2611 = vunpack.c.l.b16 %v2427
      %v2612 = vunpack.c.h.b16 %v2427
      %v2613 = vunpack.c.l.b16 %v2428
      %v2614 = vunpack.c.h.b16 %v2428
      %v2615 = vunpack.c.l.b16 %v2429
      %v2616 = vunpack.c.h.b16 %v2429
      %v2617 = vunpack.c.l.b16 %v2430
      %v2618 = vunpack.c.h.b16 %v2430
      %v2619 = vunpack.c.l.b16 %v2431
      %v2620 = vunpack.c.h.b16 %v2431
      %v2621 = vunpack.c.l.b16 %v2432
      %v2622 = vunpack.c.h.b16 %v2432
      %v2623 = vunpack.c.l.b16 %v2433
      %v2624 = vunpack.c.h.b16 %v2433
      %v2625 = vunpack.c.l.b16 %v2434
      %v2626 = vunpack.c.h.b16 %v2434
      %v2627 = vunpack.c.l.b16 %v2435
      %v2628 = vunpack.c.h.b16 %v2435
      %v2629 = vunpack.c.l.b16 %v2436
      %v2630 = vunpack.c.h.b16 %v2436
      %v2631 = vunpack.c.l.b16 %v2437
      %v2632 = vunpack.c.h.b16 %v2437
      %v2633 = vunpack.c.l.b16 %v2438
      %v2634 = vunpack.c.h.b16 %v2438
      %v2635 = vunpack.c.l.b16 %v2439
      %v2636 = vunpack.c.h.b16 %v2439
      %v2637 = vunpack.c.l.b16 %v2440
      %v2638 = vunpack.c.h.b16 %v2440
      %v2639 = vunpack.c.l.b16 %v2441
      %v2640 = vunpack.c.h.b16 %v2441
      %v2641 = vunpack.c.l.b16 %v2442
      %v2642 = vunpack.c.h.b16 %v2442
      %v2643 = vunpack.c.l.b16 %v2443
      %v2644 = vunpack.c.h.b16 %v2443
      %v2645 = vunpack.c.l.b16 %v2444
      %v2646 = vunpack.c.h.b16 %v2444
      %v2647 = vunpack.c.l.b16 %v2445
      %v2648 = vunpack.c.h.b16 %v2445
      %v2649 = vunpack.c.l.b16 %v2446
      %v2650 = vunpack.c.h.b16 %v2446
      %v2651 = vpack.c.b16 %v2525, %v2523
      %v2652 = vpack.c.b16 %v2526, %v2524
      %v2653 = vpack.c.b16 %v2529, %v2527
      %v2654 = vpack.c.b16 %v2530, %v2528
      %v2655 = vpack.c.b16 %v2533, %v2531
      %v2656 = vpack.c.b16 %v2534, %v2532
      %v2657 = vpack.c.b16 %v2537, %v2535
      %v2658 = vpack.c.b16 %v2538, %v2536
      %v2659 = vpack.c.b16 %v2541, %v2539
      %v2660 = vpack.c.b16 %v2542, %v2540
      %v2661 = vpack.c.b16 %v2545, %v2543
      %v2662 = vpack.c.b16 %v2546, %v2544
      %v2663 = vpack.c.b16 %v2549, %v2547
      %v2664 = vpack.c.b16 %v2550, %v2548
      %v2665 = vpack.c.b16 %v2553, %v2551
      %v2666 = vpack.c.b16 %v2554, %v2552
      %v2667 = vpack.c.b16 %v2557, %v2555
      %v2668 = vpack.c.b16 %v2558, %v2556
      %v2669 = vpack.c.b16 %v2561, %v2559
      %v2670 = vpack.c.b16 %v2562, %v2560
      %v2671 = vpack.c.b16 %v2565, %v2563
      %v2672 = vpack.c.b16 %v2566, %v2564
      %v2673 = vpack.c.b16 %v2569, %v2567
      %v2674 = vpack.c.b16 %v2570, %v2568
      %v2675 = vpack.c.b16 %v2573, %v2571
      %v2676 = vpack.c.b16 %v2574, %v2572
      %v2677 = vpack.c.b16 %v2577, %v2575
      %v2678 = vpack.c.b16 %v2578, %v2576
      %v2679 = vpack.c.b16 %v2581, %v2579
      %v2680 = vpack.c.b16 %v2582, %v2580
      %v2681 = vpack.c.b16 %v2585, %v2583
      %v2682 = vpack.c.b16 %v2586, %v2584
      %v2683 = vpack.c.b16 %v2589, %v2587
      %v2684 = vpack.c.b16 %v2590, %v2588
      %v2685 = vpack.c.b16 %v2593, %v2591
      %v2686 = vpack.c.b16 %v2594, %v2592
      %v2687 = vpack.c.b16 %v2597, %v2595
      %v2688 = vpack.c.b16 %v2598, %v2596
      %v2689 = vpack.c.b16 %v2601, %v2599
      %v2690 = vpack.c.b16 %v2602, %v2600
      %v2691 = vpack.c.b16 %v2605, %v2603
      %v2692 = vpack.c.b16 %v2606, %v2604
      %v2693 = vpack.c.b16 %v2609, %v2607
      %v2694 = vpack.c.b16 %v2610, %v2608
      %v2695 = vpack.c.b16 %v2613, %v2611
      %v2696 = vpack.c.b16 %v2614, %v2612
      %v2697 = vpack.c.b16 %v2617, %v2615
      %v2698 = vpack.c.b16 %v2618, %v2616
      %v2699 = vpack.c.b16 %v2621, %v2619
      %v2700 = vpack.c.b16 %v2622, %v2620
      %v2701 = vpack.c.b16 %v2625, %v2623
      %v2702 = vpack.c.b16 %v2626, %v2624
      %v2703 = vpack.c.b16 %v2629, %v2627
      %v2704 = vpack.c.b16 %v2630, %v2628
      %v2705 = vpack.c.b16 %v2633, %v2631
      %v2706 = vpack.c.b16 %v2634, %v2632
      %v2707 = vpack.c.b16 %v2637, %v2635
      %v2708 = vpack.c.b16 %v2638, %v2636
      %v2709 = vpack.c.b16 %v2641, %v2639
      %v2710 = vpack.c.b16 %v2642, %v2640
      %v2711 = vpack.c.b16 %v2645, %v2643
      %v2712 = vpack.c.b16 %v2646, %v2644
      %v2713 = vpack.c.b16 %v2649, %v2647
      %v2714 = vpack.c.b16 %v2650, %v2648
      %2779 = vmatprep.subr.bf16.mxu0 %v2652
      %2780 = vmatpush1.bf16.msra.mxu0 %v2651
      %2781 = vmatprep.subr.bf16.mxu0 %v2654
      %2782 = vmatpush1.bf16.msra.mxu0 %v2653
      %2783 = vmatprep.subr.bf16.mxu0 %v2656
      %2784 = vmatpush1.bf16.msra.mxu0 %v2655
      %2785 = vmatprep.subr.bf16.mxu0 %v2658
      %2786 = vmatpush1.bf16.msra.mxu0 %v2657
      %2787 = vmatprep.subr.bf16.mxu0 %v2660
      %2788 = vmatpush1.bf16.msra.mxu0 %v2659
      %2789 = vmatprep.subr.bf16.mxu0 %v2662
      %2790 = vmatpush1.bf16.msra.mxu0 %v2661
      %2791 = vmatprep.subr.bf16.mxu0 %v2664
      %2792 = vmatpush1.bf16.msra.mxu0 %v2663
      %2793 = vmatprep.subr.bf16.mxu0 %v2666
      %2794 = vmatpush1.bf16.msra.mxu0 %v2665
      %2795 = vmatprep.subr.bf16.mxu0 %v2668
      %2796 = vmatpush1.bf16.msra.mxu0 %v2667
      %2797 = vmatprep.subr.bf16.mxu0 %v2670
      %2798 = vmatpush1.bf16.msra.mxu0 %v2669
      %2799 = vmatprep.subr.bf16.mxu0 %v2672
      %2800 = vmatpush1.bf16.msra.mxu0 %v2671
      %2801 = vmatprep.subr.bf16.mxu0 %v2674
      %2802 = vmatpush1.bf16.msra.mxu0 %v2673
      %2803 = vmatprep.subr.bf16.mxu0 %v2676
      %2804 = vmatpush1.bf16.msra.mxu0 %v2675
      %2805 = vmatprep.subr.bf16.mxu0 %v2678
      %2806 = vmatpush1.bf16.msra.mxu0 %v2677
      %2807 = vmatprep.subr.bf16.mxu0 %v2680
      %2808 = vmatpush1.bf16.msra.mxu0 %v2679
      %2809 = vmatprep.subr.bf16.mxu0 %v2682
      %2810 = vmatpush1.bf16.msra.mxu0 %v2681
      %2811 = vmatprep.mubr.bf16.mxu0 %v2352
      %2812 = vmatmul.mubr.bf16.gmra.mrb[0].mxu0 %v2351
      %v2813 = vpop.f32.mrb[0].mxu0
      %v2814 = vadd.f32 %v2452, %v2813
      %v2815 = vpop.f32.mrb[0].mxu0
      %v2816 = vadd.f32 %v2456, %v2815
      %v2817 = vpop.f32.mrb[0].mxu0
      %v2818 = vadd.f32 %v2452, %v2817
      %v2819 = vpop.f32.mrb[0].mxu0
      %v2820 = vadd.f32 %v2456, %v2819
      %2821 = vmatprep.mubr.bf16.mxu0 %v2356
      %2822 = vmatmul.mubr.bf16.gmra.mrb[0].mxu0 %v2355
      %v2823 = vpop.f32.mrb[0].mxu0
      %v2824 = vadd.f32 %v2452, %v2823
      %v2825 = vpop.f32.mrb[0].mxu0
      %v2826 = vadd.f32 %v2456, %v2825
      %v2827 = vpop.f32.mrb[0].mxu0
      %v2828 = vadd.f32 %v2452, %v2827
      %v2829 = vpop.f32.mrb[0].mxu0
      %v2830 = vadd.f32 %v2456, %v2829
      %2831 = vmatprep.mubr.bf16.mxu0 %v2360
      %2832 = vmatmul.mubr.bf16.gmra.mrb[0].mxu0 %v2359
      %v2833 = vpop.f32.mrb[0].mxu0
      %v2834 = vadd.f32 %v2452, %v2833
      %v2835 = vpop.f32.mrb[0].mxu0
      %v2836 = vadd.f32 %v2456, %v2835
      %v2837 = vpop.f32.mrb[0].mxu0
      %v2838 = vadd.f32 %v2452, %v2837
      %v2839 = vpop.f32.mrb[0].mxu0
      %v2840 = vadd.f32 %v2456, %v2839
      %2841 = vmatprep.mubr.bf16.mxu0 %v2364
      %2842 = vmatmul.mubr.bf16.gmra.mrb[0].mxu0 %v2363
      %v2843 = vpop.f32.mrb[0].mxu0
      %v2844 = vadd.f32 %v2452, %v2843
      %v2845 = vpop.f32.mrb[0].mxu0
      %v2846 = vadd.f32 %v2456, %v2845
      %v2847 = vpop.f32.mrb[0].mxu0
      %v2848 = vadd.f32 %v2452, %v2847
      %v2849 = vpop.f32.mrb[0].mxu0
      %v2850 = vadd.f32 %v2456, %v2849
      %2851 = vmatprep.mubr.bf16.mxu0 %v2368
      %2852 = vmatmul.mubr.bf16.gmra.mrb[0].mxu0 %v2367
      %v2853 = vpop.f32.mrb[0].mxu0
      %v2854 = vadd.f32 %v2452, %v2853
      %v2855 = vpop.f32.mrb[0].mxu0
      %v2856 = vadd.f32 %v2456, %v2855
      %v2857 = vpop.f32.mrb[0].mxu0
      %v2858 = vadd.f32 %v2452, %v2857
      %v2859 = vpop.f32.mrb[0].mxu0
      %v2860 = vadd.f32 %v2456, %v2859
      %2861 = vmatprep.mubr.bf16.mxu0 %v2372
      %2862 = vmatmul.mubr.bf16.gmra.mrb[0].mxu0 %v2371
      %v2863 = vpop.f32.mrb[0].mxu0
      %v2864 = vadd.f32 %v2452, %v2863
      %v2865 = vpop.f32.mrb[0].mxu0
      %v2866 = vadd.f32 %v2456, %v2865
      %v2867 = vpop.f32.mrb[0].mxu0
      %v2868 = vadd.f32 %v2452, %v2867
      %v2869 = vpop.f32.mrb[0].mxu0
      %v2870 = vadd.f32 %v2456, %v2869
      %2871 = vmatprep.mubr.bf16.mxu0 %v2376
      %2872 = vmatmul.mubr.bf16.gmra.mrb[0].mxu0 %v2375
      %v2873 = vpop.f32.mrb[0].mxu0
      %v2874 = vadd.f32 %v2452, %v2873
      %v2875 = vpop.f32.mrb[0].mxu0
      %v2876 = vadd.f32 %v2456, %v2875
      %v2877 = vpop.f32.mrb[0].mxu0
      %v2878 = vadd.f32 %v2452, %v2877
      %v2879 = vpop.f32.mrb[0].mxu0
      %v2880 = vadd.f32 %v2456, %v2879
      %2881 = vmatprep.mubr.bf16.mxu0 %v2380
      %2882 = vmatmul.mubr.bf16.gmra.mrb[0].mxu0 %v2379
      %v2883 = vpop.f32.mrb[0].mxu0
      %v2884 = vadd.f32 %v2452, %v2883
      %v2885 = vpop.f32.mrb[0].mxu0
      %v2886 = vadd.f32 %v2456, %v2885
      %v2887 = vpop.f32.mrb[0].mxu0
      %v2888 = vadd.f32 %v2452, %v2887
      %v2889 = vpop.f32.mrb[0].mxu0
      %v2890 = vadd.f32 %v2456, %v2889
      %2891 = vdwg.mxu0
      %2892 = vmatprep.subr.bf16.mxu0 %v2684
      %2893 = vmatpush1.bf16.msra.mxu0 %v2683
      %2894 = vmatprep.subr.bf16.mxu0 %v2686
      %2895 = vmatpush1.bf16.msra.mxu0 %v2685
      %2896 = vmatprep.subr.bf16.mxu0 %v2688
      %2897 = vmatpush1.bf16.msra.mxu0 %v2687
      %2898 = vmatprep.subr.bf16.mxu0 %v2690
      %2899 = vmatpush1.bf16.msra.mxu0 %v2689
      %2900 = vmatprep.subr.bf16.mxu0 %v2692
      %2901 = vmatpush1.bf16.msra.mxu0 %v2691
      %2902 = vmatprep.subr.bf16.mxu0 %v2694
      %2903 = vmatpush1.bf16.msra.mxu0 %v2693
      %2904 = vmatprep.subr.bf16.mxu0 %v2696
      %2905 = vmatpush1.bf16.msra.mxu0 %v2695
      %2906 = vmatprep.subr.bf16.mxu0 %v2698
      %2907 = vmatpush1.bf16.msra.mxu0 %v2697
      %2908 = vmatprep.subr.bf16.mxu0 %v2700
      %2909 = vmatpush1.bf16.msra.mxu0 %v2699
      %2910 = vmatprep.subr.bf16.mxu0 %v2702
      %2911 = vmatpush1.bf16.msra.mxu0 %v2701
      %2912 = vmatprep.subr.bf16.mxu0 %v2704
      %2913 = vmatpush1.bf16.msra.mxu0 %v2703
      %2914 = vmatprep.subr.bf16.mxu0 %v2706
      %2915 = vmatpush1.bf16.msra.mxu0 %v2705
      %2916 = vmatprep.subr.bf16.mxu0 %v2708
      %2917 = vmatpush1.bf16.msra.mxu0 %v2707
      %2918 = vmatprep.subr.bf16.mxu0 %v2710
      %2919 = vmatpush1.bf16.msra.mxu0 %v2709
      %2920 = vmatprep.subr.bf16.mxu0 %v2712
      %2921 = vmatpush1.bf16.msra.mxu0 %v2711
      %2922 = vmatprep.subr.bf16.mxu0 %v2714
      %2923 = vmatpush1.bf16.msra.mxu0 %v2713
      %2924 = vmatprep.mubr.bf16.mxu0 %v2354
      %2925 = vmatmul.mubr.bf16.gmra.mrb[0].mxu0 %v2353
      %v2926 = vpop.f32.mrb[0].mxu0
      %v2927 = vadd.f32 %v2814, %v2926
      %v2928 = vpop.f32.mrb[0].mxu0
      %v2929 = vadd.f32 %v2816, %v2928
      %v2930 = vpop.f32.mrb[0].mxu0
      %v2931 = vadd.f32 %v2818, %v2930
      %v2932 = vpop.f32.mrb[0].mxu0
      %v2933 = vadd.f32 %v2820, %v2932
      %2934 = vmatprep.mubr.bf16.mxu0 %v2358
      %2935 = vmatmul.mubr.bf16.gmra.mrb[0].mxu0 %v2357
      %v2936 = vpop.f32.mrb[0].mxu0
      %v2937 = vadd.f32 %v2824, %v2936
      %v2938 = vpop.f32.mrb[0].mxu0
      %v2939 = vadd.f32 %v2826, %v2938
      %v2940 = vpop.f32.mrb[0].mxu0
      %v2941 = vadd.f32 %v2828, %v2940
      %v2942 = vpop.f32.mrb[0].mxu0
      %v2943 = vadd.f32 %v2830, %v2942
      %2944 = vmatprep.mubr.bf16.mxu0 %v2362
      %2945 = vmatmul.mubr.bf16.gmra.mrb[0].mxu0 %v2361
      %v2946 = vpop.f32.mrb[0].mxu0
      %v2947 = vadd.f32 %v2834, %v2946
      %v2948 = vpop.f32.mrb[0].mxu0
      %v2949 = vadd.f32 %v2836, %v2948
      %v2950 = vpop.f32.mrb[0].mxu0
      %v2951 = vadd.f32 %v2838, %v2950
      %v2952 = vpop.f32.mrb[0].mxu0
      %v2953 = vadd.f32 %v2840, %v2952
      %2954 = vmatprep.mubr.bf16.mxu0 %v2366
      %2955 = vmatmul.mubr.bf16.gmra.mrb[0].mxu0 %v2365
      %v2956 = vpop.f32.mrb[0].mxu0
      %v2957 = vadd.f32 %v2844, %v2956
      %v2958 = vpop.f32.mrb[0].mxu0
      %v2959 = vadd.f32 %v2846, %v2958
      %v2960 = vpop.f32.mrb[0].mxu0
      %v2961 = vadd.f32 %v2848, %v2960
      %v2962 = vpop.f32.mrb[0].mxu0
      %v2963 = vadd.f32 %v2850, %v2962
      %2964 = vmatprep.mubr.bf16.mxu0 %v2370
      %2965 = vmatmul.mubr.bf16.gmra.mrb[0].mxu0 %v2369
      %v2966 = vpop.f32.mrb[0].mxu0
      %v2967 = vadd.f32 %v2854, %v2966
      %v2968 = vpop.f32.mrb[0].mxu0
      %v2969 = vadd.f32 %v2856, %v2968
      %v2970 = vpop.f32.mrb[0].mxu0
      %v2971 = vadd.f32 %v2858, %v2970
      %v2972 = vpop.f32.mrb[0].mxu0
      %v2973 = vadd.f32 %v2860, %v2972
      %2974 = vmatprep.mubr.bf16.mxu0 %v2374
      %2975 = vmatmul.mubr.bf16.gmra.mrb[0].mxu0 %v2373
      %v2976 = vpop.f32.mrb[0].mxu0
      %v2977 = vadd.f32 %v2864, %v2976
      %v2978 = vpop.f32.mrb[0].mxu0
      %v2979 = vadd.f32 %v2866, %v2978
      %v2980 = vpop.f32.mrb[0].mxu0
      %v2981 = vadd.f32 %v2868, %v2980
      %v2982 = vpop.f32.mrb[0].mxu0
      %v2983 = vadd.f32 %v2870, %v2982
      %2984 = vmatprep.mubr.bf16.mxu0 %v2378
      %2985 = vmatmul.mubr.bf16.gmra.mrb[0].mxu0 %v2377
      %v2986 = vpop.f32.mrb[0].mxu0
      %v2987 = vadd.f32 %v2874, %v2986
      %v2988 = vpop.f32.mrb[0].mxu0
      %v2989 = vadd.f32 %v2876, %v2988
      %v2990 = vpop.f32.mrb[0].mxu0
      %v2991 = vadd.f32 %v2878, %v2990
      %v2992 = vpop.f32.mrb[0].mxu0
      %v2993 = vadd.f32 %v2880, %v2992
      %2994 = vmatprep.mubr.bf16.mxu0 %v2382
      %2995 = vmatmul.mubr.bf16.gmra.mrb[0].mxu0 %v2381
      %v2996 = vpop.f32.mrb[0].mxu0
      %v2997 = vadd.f32 %v2884, %v2996
      %v2998 = vpop.f32.mrb[0].mxu0
      %v2999 = vadd.f32 %v2886, %v2998
      %v3000 = vpop.f32.mrb[0].mxu0
      %v3001 = vadd.f32 %v2888, %v3000
      %v3002 = vpop.f32.mrb[0].mxu0
      %v3003 = vadd.f32 %v2890, %v3002
      %3004 = vdwg.mxu0
      %v3005 = vmax.f32 %v2927, 0.0
      %v3006 = vmax.f32 %v2929, 0.0
      %v3007 = vmax.f32 %v2931, 0.0
      %v3008 = vmax.f32 %v2933, 0.0
      %v3009 = vmax.f32 %v2937, 0.0
      %v3010 = vmax.f32 %v2939, 0.0
      %v3011 = vmax.f32 %v2941, 0.0
      %v3012 = vmax.f32 %v2943, 0.0
      %v3013 = vmax.f32 %v2947, 0.0
      %v3014 = vmax.f32 %v2949, 0.0
      %v3015 = vmax.f32 %v2951, 0.0
      %v3016 = vmax.f32 %v2953, 0.0
      %v3017 = vmax.f32 %v2957, 0.0
      %v3018 = vmax.f32 %v2959, 0.0
      %v3019 = vmax.f32 %v2961, 0.0
      %v3020 = vmax.f32 %v2963, 0.0
      %v3021 = vmax.f32 %v2967, 0.0
      %v3022 = vmax.f32 %v2969, 0.0
      %v3023 = vmax.f32 %v2971, 0.0
      %v3024 = vmax.f32 %v2973, 0.0
      %v3025 = vmax.f32 %v2977, 0.0
      %v3026 = vmax.f32 %v2979, 0.0
      %v3027 = vmax.f32 %v2981, 0.0
      %v3028 = vmax.f32 %v2983, 0.0
      %v3029 = vmax.f32 %v2987, 0.0
      %v3030 = vmax.f32 %v2989, 0.0
      %v3031 = vmax.f32 %v2991, 0.0
      %v3032 = vmax.f32 %v2993, 0.0
      %v3033 = vmax.f32 %v2997, 0.0
      %v3034 = vmax.f32 %v2999, 0.0
      %v3035 = vmax.f32 %v3001, 0.0
      %v3036 = vmax.f32 %v3003, 0.0
      %v3037 = vpack.c.bf16 %v3007, %v3005
      %v3038 = vpack.c.bf16 %v3008, %v3006
      %v3039 = vpack.c.bf16 %v3011, %v3009
      %v3040 = vpack.c.bf16 %v3012, %v3010
      %v3041 = vpack.c.bf16 %v3015, %v3013
      %v3042 = vpack.c.bf16 %v3016, %v3014
      %v3043 = vpack.c.bf16 %v3019, %v3017
      %v3044 = vpack.c.bf16 %v3020, %v3018
      %v3045 = vpack.c.bf16 %v3023, %v3021
      %v3046 = vpack.c.bf16 %v3024, %v3022
      %v3047 = vpack.c.bf16 %v3027, %v3025
      %v3048 = vpack.c.bf16 %v3028, %v3026
      %v3049 = vpack.c.bf16 %v3031, %v3029
      %v3050 = vpack.c.bf16 %v3032, %v3030
      %v3051 = vpack.c.bf16 %v3035, %v3033
      %v3052 = vpack.c.bf16 %v3036, %v3034
      %v3053 = vld [vmem:[%s7] sm:$0xf]
      %v3054 = vld [vmem:[%s7 + $0x4] sm:$0xf]
      %v3055 = vld [vmem:[%s7 + $0x8] sm:$0xf]
      %v3056 = vld [vmem:[%s7 + $0xc] sm:$0xf]
      %v3057 = vld [vmem:[%s7 + $0x10] sm:$0xf]
      %v3058 = vld [vmem:[%s7 + $0x14] sm:$0xf]
      %v3059 = vld [vmem:[%s7 + $0x18] sm:$0xf]
      %v3060 = vld [vmem:[%s7 + $0x1c] sm:$0xf]
      %v3061 = vld [vmem:[%s7 + $0x20] sm:$0xf]
      %v3062 = vld [vmem:[%s7 + $0x24] sm:$0xf]
      %v3063 = vld [vmem:[%s7 + $0x28] sm:$0xf]
      %v3064 = vld [vmem:[%s7 + $0x2c] sm:$0xf]
      %v3065 = vld [vmem:[%s7 + $0x30] sm:$0xf]
      %v3066 = vld [vmem:[%s7 + $0x34] sm:$0xf]
      %v3067 = vld [vmem:[%s7 + $0x38] sm:$0xf]
      %v3068 = vld [vmem:[%s7 + $0x3c] sm:$0xf]
      %v3069 = vld [vmem:[%s7 + $0x40] sm:$0xf]
      %v3070 = vld [vmem:[%s7 + $0x44] sm:$0xf]
      %v3071 = vld [vmem:[%s7 + $0x48] sm:$0xf]
      %v3072 = vld [vmem:[%s7 + $0x4c] sm:$0xf]
      %v3073 = vld [vmem:[%s7 + $0x50] sm:$0xf]
      %v3074 = vld [vmem:[%s7 + $0x54] sm:$0xf]
      %v3075 = vld [vmem:[%s7 + $0x58] sm:$0xf]
      %v3076 = vld [vmem:[%s7 + $0x5c] sm:$0xf]
      %v3077 = vld [vmem:[%s7 + $0x60] sm:$0xf]
      %v3078 = vld [vmem:[%s7 + $0x64] sm:$0xf]
      %v3079 = vld [vmem:[%s7 + $0x68] sm:$0xf]
      %v3080 = vld [vmem:[%s7 + $0x6c] sm:$0xf]
      %v3081 = vld [vmem:[%s7 + $0x70] sm:$0xf]
      %v3082 = vld [vmem:[%s7 + $0x74] sm:$0xf]
      %v3083 = vld [vmem:[%s7 + $0x78] sm:$0xf]
      %v3084 = vld [vmem:[%s7 + $0x7c] sm:$0xf]
      %v3085 = vld [vmem:[%s8] sm:$0x1]
      %v3087 = vlaneseq
      %v3088 = vshrl.u32 %v3087, 7
      %v3089 = vsub.s32 0, %v3088
      %v3090 = vrot.slane %v3085, %v3089
      %v3124 = vunpack.c.l.b16 %v3053
      %v3125 = vunpack.c.l.b16 %v3054
      %v3126 = vunpack.c.l.b16 %v3055
      %v3127 = vunpack.c.l.b16 %v3056
      %v3128 = vunpack.c.l.b16 %v3057
      %v3129 = vunpack.c.l.b16 %v3058
      %v3130 = vunpack.c.l.b16 %v3059
      %v3131 = vunpack.c.l.b16 %v3060
      %v3132 = vunpack.c.l.b16 %v3061
      %v3133 = vunpack.c.l.b16 %v3062
      %v3134 = vunpack.c.l.b16 %v3063
      %v3135 = vunpack.c.l.b16 %v3064
      %v3136 = vunpack.c.l.b16 %v3065
      %v3137 = vunpack.c.l.b16 %v3066
      %v3138 = vunpack.c.l.b16 %v3067
      %v3139 = vunpack.c.l.b16 %v3068
      %v3140 = vunpack.c.l.b16 %v3069
      %v3141 = vunpack.c.l.b16 %v3070
      %v3142 = vunpack.c.l.b16 %v3071
      %v3143 = vunpack.c.l.b16 %v3072
      %v3144 = vunpack.c.l.b16 %v3073
      %v3145 = vunpack.c.l.b16 %v3074
      %v3146 = vunpack.c.l.b16 %v3075
      %v3147 = vunpack.c.l.b16 %v3076
      %v3148 = vunpack.c.l.b16 %v3077
      %v3149 = vunpack.c.l.b16 %v3078
      %v3150 = vunpack.c.l.b16 %v3079
      %v3151 = vunpack.c.l.b16 %v3080
      %v3152 = vunpack.c.l.b16 %v3081
      %v3153 = vunpack.c.l.b16 %v3082
      %v3154 = vunpack.c.l.b16 %v3083
      %v3155 = vunpack.c.l.b16 %v3084
      %v3156 = vpack.c.b16 %v3125, %v3124
      %v3157 = vpack.c.b16 %v3127, %v3126
      %v3158 = vpack.c.b16 %v3129, %v3128
      %v3159 = vpack.c.b16 %v3131, %v3130
      %v3160 = vpack.c.b16 %v3133, %v3132
      %v3161 = vpack.c.b16 %v3135, %v3134
      %v3162 = vpack.c.b16 %v3137, %v3136
      %v3163 = vpack.c.b16 %v3139, %v3138
      %v3164 = vpack.c.b16 %v3141, %v3140
      %v3165 = vpack.c.b16 %v3143, %v3142
      %v3166 = vpack.c.b16 %v3145, %v3144
      %v3167 = vpack.c.b16 %v3147, %v3146
      %v3168 = vpack.c.b16 %v3149, %v3148
      %v3169 = vpack.c.b16 %v3151, %v3150
      %v3170 = vpack.c.b16 %v3153, %v3152
      %v3171 = vpack.c.b16 %v3155, %v3154
      %3188 = vmatprep.subr.bf16.mxu0 0
      %3189 = vmatpush1.bf16.msra.mxu0 %v3156
      %3190 = vmatprep.subr.bf16.mxu0 0
      %3191 = vmatpush1.bf16.msra.mxu0 %v3157
      %3192 = vmatprep.subr.bf16.mxu0 0
      %3193 = vmatpush1.bf16.msra.mxu0 %v3158
      %3194 = vmatprep.subr.bf16.mxu0 0
      %3195 = vmatpush1.bf16.msra.mxu0 %v3159
      %3196 = vmatprep.subr.bf16.mxu0 0
      %3197 = vmatpush1.bf16.msra.mxu0 %v3160
      %3198 = vmatprep.subr.bf16.mxu0 0
      %3199 = vmatpush1.bf16.msra.mxu0 %v3161
      %3200 = vmatprep.subr.bf16.mxu0 0
      %3201 = vmatpush1.bf16.msra.mxu0 %v3162
      %3202 = vmatprep.subr.bf16.mxu0 0
      %3203 = vmatpush1.bf16.msra.mxu0 %v3163
      %3204 = vmatprep.subr.bf16.mxu0 0
      %3205 = vmatpush1.bf16.msra.mxu0 %v3164
      %3206 = vmatprep.subr.bf16.mxu0 0
      %3207 = vmatpush1.bf16.msra.mxu0 %v3165
      %3208 = vmatprep.subr.bf16.mxu0 0
      %3209 = vmatpush1.bf16.msra.mxu0 %v3166
      %3210 = vmatprep.subr.bf16.mxu0 0
      %3211 = vmatpush1.bf16.msra.mxu0 %v3167
      %3212 = vmatprep.subr.bf16.mxu0 0
      %3213 = vmatpush1.bf16.msra.mxu0 %v3168
      %3214 = vmatprep.subr.bf16.mxu0 0
      %3215 = vmatpush1.bf16.msra.mxu0 %v3169
      %3216 = vmatprep.subr.bf16.mxu0 0
      %3217 = vmatpush1.bf16.msra.mxu0 %v3170
      %3218 = vmatprep.subr.bf16.mxu0 0
      %3219 = vmatpush1.bf16.msra.mxu0 %v3171
      %3220 = vmatprep.mubr.bf16.mxu0 %v3038
      %3221 = vmatmul.mubr.bf16.gmra.mrb[0].mxu0 %v3037
      %v3222 = vpop.f32.mrb[0].mxu0
      %v3223 = vadd.f32 %v3090, %v3222
      %v3224 = vpop.f32.mrb[0].mxu0
      %v3225 = vpop.f32.mrb[0].mxu0
      %v3226 = vadd.f32 %v3090, %v3225
      %v3227 = vpop.f32.mrb[0].mxu0
      %3228 = vmatprep.mubr.bf16.mxu0 %v3040
      %3229 = vmatmul.mubr.bf16.gmra.mrb[0].mxu0 %v3039
      %v3230 = vpop.f32.mrb[0].mxu0
      %v3231 = vadd.f32 %v3090, %v3230
      %v3232 = vpop.f32.mrb[0].mxu0
      %v3233 = vpop.f32.mrb[0].mxu0
      %v3234 = vadd.f32 %v3090, %v3233
      %v3235 = vpop.f32.mrb[0].mxu0
      %3236 = vmatprep.mubr.bf16.mxu0 %v3042
      %3237 = vmatmul.mubr.bf16.gmra.mrb[0].mxu0 %v3041
      %v3238 = vpop.f32.mrb[0].mxu0
      %v3239 = vadd.f32 %v3090, %v3238
      %v3240 = vpop.f32.mrb[0].mxu0
      %v3241 = vpop.f32.mrb[0].mxu0
      %v3242 = vadd.f32 %v3090, %v3241
      %v3243 = vpop.f32.mrb[0].mxu0
      %3244 = vmatprep.mubr.bf16.mxu0 %v3044
      %3245 = vmatmul.mubr.bf16.gmra.mrb[0].mxu0 %v3043
      %v3246 = vpop.f32.mrb[0].mxu0
      %v3247 = vadd.f32 %v3090, %v3246
      %v3248 = vpop.f32.mrb[0].mxu0
      %v3249 = vpop.f32.mrb[0].mxu0
      %v3250 = vadd.f32 %v3090, %v3249
      %v3251 = vpop.f32.mrb[0].mxu0
      %3252 = vmatprep.mubr.bf16.mxu0 %v3046
      %3253 = vmatmul.mubr.bf16.gmra.mrb[0].mxu0 %v3045
      %v3254 = vpop.f32.mrb[0].mxu0
      %v3255 = vadd.f32 %v3090, %v3254
      %v3256 = vpop.f32.mrb[0].mxu0
      %v3257 = vpop.f32.mrb[0].mxu0
      %v3258 = vadd.f32 %v3090, %v3257
      %v3259 = vpop.f32.mrb[0].mxu0
      %3260 = vmatprep.mubr.bf16.mxu0 %v3048
      %3261 = vmatmul.mubr.bf16.gmra.mrb[0].mxu0 %v3047
      %v3262 = vpop.f32.mrb[0].mxu0
      %v3263 = vadd.f32 %v3090, %v3262
      %v3264 = vpop.f32.mrb[0].mxu0
      %v3265 = vpop.f32.mrb[0].mxu0
      %v3266 = vadd.f32 %v3090, %v3265
      %v3267 = vpop.f32.mrb[0].mxu0
      %3268 = vmatprep.mubr.bf16.mxu0 %v3050
      %3269 = vmatmul.mubr.bf16.gmra.mrb[0].mxu0 %v3049
      %v3270 = vpop.f32.mrb[0].mxu0
      %v3271 = vadd.f32 %v3090, %v3270
      %v3272 = vpop.f32.mrb[0].mxu0
      %v3273 = vpop.f32.mrb[0].mxu0
      %v3274 = vadd.f32 %v3090, %v3273
      %v3275 = vpop.f32.mrb[0].mxu0
      %3276 = vmatprep.mubr.bf16.mxu0 %v3052
      %3277 = vmatmul.mubr.bf16.gmra.mrb[0].mxu0 %v3051
      %v3278 = vpop.f32.mrb[0].mxu0
      %v3279 = vadd.f32 %v3090, %v3278
      %v3280 = vpop.f32.mrb[0].mxu0
      %v3281 = vpop.f32.mrb[0].mxu0
      %v3282 = vadd.f32 %v3090, %v3281
      %v3283 = vpop.f32.mrb[0].mxu0
      %3284 = vdwg.mxu0
      %v3285 = vmax.f32 %v3223, 0.0
      %v3286 = vmax.f32 %v3226, 0.0
      %v3287 = vmax.f32 %v3231, 0.0
      %v3288 = vmax.f32 %v3234, 0.0
      %v3289 = vmax.f32 %v3239, 0.0
      %v3290 = vmax.f32 %v3242, 0.0
      %v3291 = vmax.f32 %v3247, 0.0
      %v3292 = vmax.f32 %v3250, 0.0
      %v3293 = vmax.f32 %v3255, 0.0
      %v3294 = vmax.f32 %v3258, 0.0
      %v3295 = vmax.f32 %v3263, 0.0
      %v3296 = vmax.f32 %v3266, 0.0
      %v3297 = vmax.f32 %v3271, 0.0
      %v3298 = vmax.f32 %v3274, 0.0
      %v3299 = vmax.f32 %v3279, 0.0
      %v3300 = vmax.f32 %v3282, 0.0
      %v3301 = vpack.c.bf16 %v3286, %v3285
      %v3302 = vpack.c.bf16 %v3288, %v3287
      %v3303 = vpack.c.bf16 %v3290, %v3289
      %v3304 = vpack.c.bf16 %v3292, %v3291
      %v3305 = vpack.c.bf16 %v3294, %v3293
      %v3306 = vpack.c.bf16 %v3296, %v3295
      %v3307 = vpack.c.bf16 %v3298, %v3297
      %v3308 = vpack.c.bf16 %v3300, %v3299
      %v3309 = vld [vmem:[%s9] sm:$0xf]
      %v3310 = vld [vmem:[%s9 + $0x4] sm:$0xf]
      %v3311 = vld [vmem:[%s9 + $0x8] sm:$0xf]
      %v3312 = vld [vmem:[%s9 + $0xc] sm:$0xf]
      %v3313 = vld [vmem:[%s9 + $0x10] sm:$0xf]
      %v3314 = vld [vmem:[%s9 + $0x14] sm:$0xf]
      %v3315 = vld [vmem:[%s9 + $0x18] sm:$0xf]
      %v3316 = vld [vmem:[%s9 + $0x1c] sm:$0xf]
      %v3317 = vld [vmem:[%s9 + $0x20] sm:$0xf]
      %v3318 = vld [vmem:[%s9 + $0x24] sm:$0xf]
      %v3319 = vld [vmem:[%s9 + $0x28] sm:$0xf]
      %v3320 = vld [vmem:[%s9 + $0x2c] sm:$0xf]
      %v3321 = vld [vmem:[%s9 + $0x30] sm:$0xf]
      %v3322 = vld [vmem:[%s9 + $0x34] sm:$0xf]
      %v3323 = vld [vmem:[%s9 + $0x38] sm:$0xf]
      %v3324 = vld [vmem:[%s9 + $0x3c] sm:$0xf]
      %v3325 = vld [vmem:[%s10] sm:$0x1]
      %v3327 = vlaneseq
      %v3328 = vshrl.u32 %v3327, 7
      %v3329 = vsub.s32 0, %v3328
      %v3330 = vrot.slane %v3325, %v3329
      %v3348 = vunpack.c.l.b16 %v3309
      %v3349 = vunpack.c.l.b16 %v3310
      %v3350 = vunpack.c.l.b16 %v3311
      %v3351 = vunpack.c.l.b16 %v3312
      %v3352 = vunpack.c.l.b16 %v3313
      %v3353 = vunpack.c.l.b16 %v3314
      %v3354 = vunpack.c.l.b16 %v3315
      %v3355 = vunpack.c.l.b16 %v3316
      %v3356 = vunpack.c.l.b16 %v3317
      %v3357 = vunpack.c.l.b16 %v3318
      %v3358 = vunpack.c.l.b16 %v3319
      %v3359 = vunpack.c.l.b16 %v3320
      %v3360 = vunpack.c.l.b16 %v3321
      %v3361 = vunpack.c.l.b16 %v3322
      %v3362 = vunpack.c.l.b16 %v3323
      %v3363 = vunpack.c.l.b16 %v3324
      %v3364 = vpack.c.b16 %v3349, %v3348
      %v3365 = vpack.c.b16 %v3351, %v3350
      %v3366 = vpack.c.b16 %v3353, %v3352
      %v3367 = vpack.c.b16 %v3355, %v3354
      %v3368 = vpack.c.b16 %v3357, %v3356
      %v3369 = vpack.c.b16 %v3359, %v3358
      %v3370 = vpack.c.b16 %v3361, %v3360
      %v3371 = vpack.c.b16 %v3363, %v3362
      %3380 = vmatprep.subr.bf16.mxu0 0
      %3381 = vmatpush1.bf16.msra.mxu0 %v3364
      %3382 = vmatprep.subr.bf16.mxu0 0
      %3383 = vmatpush1.bf16.msra.mxu0 %v3365
      %3384 = vmatprep.subr.bf16.mxu0 0
      %3385 = vmatpush1.bf16.msra.mxu0 %v3366
      %3386 = vmatprep.subr.bf16.mxu0 0
      %3387 = vmatpush1.bf16.msra.mxu0 %v3367
      %3388 = vmatprep.subr.bf16.mxu0 0
      %3389 = vmatpush1.bf16.msra.mxu0 %v3368
      %3390 = vmatprep.subr.bf16.mxu0 0
      %3391 = vmatpush1.bf16.msra.mxu0 %v3369
      %3392 = vmatprep.subr.bf16.mxu0 0
      %3393 = vmatpush1.bf16.msra.mxu0 %v3370
      %3394 = vmatprep.subr.bf16.mxu0 0
      %3395 = vmatpush1.bf16.msra.mxu0 %v3371
      %3396 = vmatprep.subr.bf16.mxu0 0
      %3397 = vmatpush1.bf16.msra.mxu0 0
      %3398 = vmatprep.subr.bf16.mxu0 0
      %3399 = vmatpush1.bf16.msra.mxu0 0
      %3400 = vmatprep.subr.bf16.mxu0 0
      %3401 = vmatpush1.bf16.msra.mxu0 0
      %3402 = vmatprep.subr.bf16.mxu0 0
      %3403 = vmatpush1.bf16.msra.mxu0 0
      %3404 = vmatprep.subr.bf16.mxu0 0
      %3405 = vmatpush1.bf16.msra.mxu0 0
      %3406 = vmatprep.subr.bf16.mxu0 0
      %3407 = vmatpush1.bf16.msra.mxu0 0
      %3408 = vmatprep.subr.bf16.mxu0 0
      %3409 = vmatpush1.bf16.msra.mxu0 0
      %3410 = vmatprep.subr.bf16.mxu0 0
      %3411 = vmatpush1.bf16.msra.mxu0 0
      %3412 = vmatprep.mubr.bf16.mxu0 0
      %3413 = vmatmul.mubr.bf16.gmra.mrb[0].mxu0 %v3301
      %v3414 = vpop.f32.mrb[0].mxu0
      %v3415 = vadd.f32 %v3330, %v3414
      %v3416 = vpop.f32.mrb[0].mxu0
      %v3417 = vpop.f32.mrb[0].mxu0
      %v3418 = vadd.f32 %v3330, %v3417
      %v3419 = vpop.f32.mrb[0].mxu0
      %3420 = vmatprep.mubr.bf16.mxu0 0
      %3421 = vmatmul.mubr.bf16.gmra.mrb[0].mxu0 %v3302
      %v3422 = vpop.f32.mrb[0].mxu0
      %v3423 = vadd.f32 %v3330, %v3422
      %v3424 = vpop.f32.mrb[0].mxu0
      %v3425 = vpop.f32.mrb[0].mxu0
      %v3426 = vadd.f32 %v3330, %v3425
      %v3427 = vpop.f32.mrb[0].mxu0
      %3428 = vmatprep.mubr.bf16.mxu0 0
      %3429 = vmatmul.mubr.bf16.gmra.mrb[0].mxu0 %v3303
      %v3430 = vpop.f32.mrb[0].mxu0
      %v3431 = vadd.f32 %v3330, %v3430
      %v3432 = vpop.f32.mrb[0].mxu0
      %v3433 = vpop.f32.mrb[0].mxu0
      %v3434 = vadd.f32 %v3330, %v3433
      %v3435 = vpop.f32.mrb[0].mxu0
      %3436 = vmatprep.mubr.bf16.mxu0 0
      %3437 = vmatmul.mubr.bf16.gmra.mrb[0].mxu0 %v3304
      %v3438 = vpop.f32.mrb[0].mxu0
      %v3439 = vadd.f32 %v3330, %v3438
      %v3440 = vpop.f32.mrb[0].mxu0
      %v3441 = vpop.f32.mrb[0].mxu0
      %v3442 = vadd.f32 %v3330, %v3441
      %v3443 = vpop.f32.mrb[0].mxu0
      %3444 = vmatprep.mubr.bf16.mxu0 0
      %3445 = vmatmul.mubr.bf16.gmra.mrb[0].mxu0 %v3305
      %v3446 = vpop.f32.mrb[0].mxu0
      %v3447 = vadd.f32 %v3330, %v3446
      %v3448 = vpop.f32.mrb[0].mxu0
      %v3449 = vpop.f32.mrb[0].mxu0
      %v3450 = vadd.f32 %v3330, %v3449
      %v3451 = vpop.f32.mrb[0].mxu0
      %3452 = vmatprep.mubr.bf16.mxu0 0
      %3453 = vmatmul.mubr.bf16.gmra.mrb[0].mxu0 %v3306
      %v3454 = vpop.f32.mrb[0].mxu0
      %v3455 = vadd.f32 %v3330, %v3454
      %v3456 = vpop.f32.mrb[0].mxu0
      %v3457 = vpop.f32.mrb[0].mxu0
      %v3458 = vadd.f32 %v3330, %v3457
      %v3459 = vpop.f32.mrb[0].mxu0
      %3460 = vmatprep.mubr.bf16.mxu0 0
      %3461 = vmatmul.mubr.bf16.gmra.mrb[0].mxu0 %v3307
      %v3462 = vpop.f32.mrb[0].mxu0
      %v3463 = vadd.f32 %v3330, %v3462
      %v3464 = vpop.f32.mrb[0].mxu0
      %v3465 = vpop.f32.mrb[0].mxu0
      %v3466 = vadd.f32 %v3330, %v3465
      %v3467 = vpop.f32.mrb[0].mxu0
      %3468 = vmatprep.mubr.bf16.mxu0 0
      %3469 = vmatmul.mubr.bf16.gmra.mrb[0].mxu0 %v3308
      %v3470 = vpop.f32.mrb[0].mxu0
      %v3471 = vadd.f32 %v3330, %v3470
      %v3472 = vpop.f32.mrb[0].mxu0
      %v3473 = vpop.f32.mrb[0].mxu0
      %v3474 = vadd.f32 %v3330, %v3473
      %v3475 = vpop.f32.mrb[0].mxu0
      %3476 = vdwg.mxu0
      %v3477 = vmax.f32 %v3415, 0.0
      %v3478 = vmax.f32 %v3418, 0.0
      %v3479 = vmax.f32 %v3423, 0.0
      %v3480 = vmax.f32 %v3426, 0.0
      %v3481 = vmax.f32 %v3431, 0.0
      %v3482 = vmax.f32 %v3434, 0.0
      %v3483 = vmax.f32 %v3439, 0.0
      %v3484 = vmax.f32 %v3442, 0.0
      %v3485 = vmax.f32 %v3447, 0.0
      %v3486 = vmax.f32 %v3450, 0.0
      %v3487 = vmax.f32 %v3455, 0.0
      %v3488 = vmax.f32 %v3458, 0.0
      %v3489 = vmax.f32 %v3463, 0.0
      %v3490 = vmax.f32 %v3466, 0.0
      %v3491 = vmax.f32 %v3471, 0.0
      %v3492 = vmax.f32 %v3474, 0.0
      %v3493 = vpack.c.bf16 %v3478, %v3477
      %v3494 = vpack.c.bf16 %v3480, %v3479
      %v3495 = vpack.c.bf16 %v3482, %v3481
      %v3496 = vpack.c.bf16 %v3484, %v3483
      %v3497 = vpack.c.bf16 %v3486, %v3485
      %v3498 = vpack.c.bf16 %v3488, %v3487
      %v3499 = vpack.c.bf16 %v3490, %v3489
      %v3500 = vpack.c.bf16 %v3492, %v3491
      %v3501 = vld [vmem:[%s11] sm:$0xf]
      %v3502 = vld [vmem:[%s11 + $0x4] sm:$0xf]
      %v3503 = vld [vmem:[%s11 + $0x8] sm:$0xf]
      %v3504 = vld [vmem:[%s11 + $0xc] sm:$0xf]
      %v3505 = vld [vmem:[%s11 + $0x10] sm:$0xf]
      %v3506 = vld [vmem:[%s11 + $0x14] sm:$0xf]
      %v3507 = vld [vmem:[%s11 + $0x18] sm:$0xf]
      %v3508 = vld [vmem:[%s11 + $0x1c] sm:$0xf]
      %v3509 = vld [vmem:[%s11 + $0x20] sm:$0xf]
      %v3510 = vld [vmem:[%s11 + $0x24] sm:$0xf]
      %v3511 = vld [vmem:[%s11 + $0x28] sm:$0xf]
      %v3512 = vld [vmem:[%s11 + $0x2c] sm:$0xf]
      %v3513 = vld [vmem:[%s11 + $0x30] sm:$0xf]
      %v3514 = vld [vmem:[%s11 + $0x34] sm:$0xf]
      %v3515 = vld [vmem:[%s11 + $0x38] sm:$0xf]
      %v3516 = vld [vmem:[%s11 + $0x3c] sm:$0xf]
      %v3517 = vld [vmem:[%s12] sm:$0x1]
      %v3519 = vlaneseq
      %v3520 = vshrl.u32 %v3519, 7
      %v3521 = vsub.s32 0, %v3520
      %v3522 = vrot.slane %v3517, %v3521
      %v3540 = vunpack.c.l.b16 %v3501
      %v3541 = vunpack.c.l.b16 %v3502
      %v3542 = vunpack.c.l.b16 %v3503
      %v3543 = vunpack.c.l.b16 %v3504
      %v3544 = vunpack.c.l.b16 %v3505
      %v3545 = vunpack.c.l.b16 %v3506
      %v3546 = vunpack.c.l.b16 %v3507
      %v3547 = vunpack.c.l.b16 %v3508
      %v3548 = vunpack.c.l.b16 %v3509
      %v3549 = vunpack.c.l.b16 %v3510
      %v3550 = vunpack.c.l.b16 %v3511
      %v3551 = vunpack.c.l.b16 %v3512
      %v3552 = vunpack.c.l.b16 %v3513
      %v3553 = vunpack.c.l.b16 %v3514
      %v3554 = vunpack.c.l.b16 %v3515
      %v3555 = vunpack.c.l.b16 %v3516
      %v3556 = vpack.c.b16 %v3541, %v3540
      %v3557 = vpack.c.b16 %v3543, %v3542
      %v3558 = vpack.c.b16 %v3545, %v3544
      %v3559 = vpack.c.b16 %v3547, %v3546
      %v3560 = vpack.c.b16 %v3549, %v3548
      %v3561 = vpack.c.b16 %v3551, %v3550
      %v3562 = vpack.c.b16 %v3553, %v3552
      %v3563 = vpack.c.b16 %v3555, %v3554
      %3572 = vmatprep.subr.bf16.mxu0 0
      %3573 = vmatpush1.bf16.msra.mxu0 %v3556
      %3574 = vmatprep.subr.bf16.mxu0 0
      %3575 = vmatpush1.bf16.msra.mxu0 %v3557
      %3576 = vmatprep.subr.bf16.mxu0 0
      %3577 = vmatpush1.bf16.msra.mxu0 %v3558
      %3578 = vmatprep.subr.bf16.mxu0 0
      %3579 = vmatpush1.bf16.msra.mxu0 %v3559
      %3580 = vmatprep.subr.bf16.mxu0 0
      %3581 = vmatpush1.bf16.msra.mxu0 %v3560
      %3582 = vmatprep.subr.bf16.mxu0 0
      %3583 = vmatpush1.bf16.msra.mxu0 %v3561
      %3584 = vmatprep.subr.bf16.mxu0 0
      %3585 = vmatpush1.bf16.msra.mxu0 %v3562
      %3586 = vmatprep.subr.bf16.mxu0 0
      %3587 = vmatpush1.bf16.msra.mxu0 %v3563
      %3588 = vmatprep.subr.bf16.mxu0 0
      %3589 = vmatpush1.bf16.msra.mxu0 0
      %3590 = vmatprep.subr.bf16.mxu0 0
      %3591 = vmatpush1.bf16.msra.mxu0 0
      %3592 = vmatprep.subr.bf16.mxu0 0
      %3593 = vmatpush1.bf16.msra.mxu0 0
      %3594 = vmatprep.subr.bf16.mxu0 0
      %3595 = vmatpush1.bf16.msra.mxu0 0
      %3596 = vmatprep.subr.bf16.mxu0 0
      %3597 = vmatpush1.bf16.msra.mxu0 0
      %3598 = vmatprep.subr.bf16.mxu0 0
      %3599 = vmatpush1.bf16.msra.mxu0 0
      %3600 = vmatprep.subr.bf16.mxu0 0
      %3601 = vmatpush1.bf16.msra.mxu0 0
      %3602 = vmatprep.subr.bf16.mxu0 0
      %3603 = vmatpush1.bf16.msra.mxu0 0
      %3604 = vmatprep.mubr.bf16.mxu0 0
      %3605 = vmatmul.mubr.bf16.gmra.mrb[0].mxu0 %v3493
      %v3606 = vpop.f32.mrb[0].mxu0
      %v3607 = vadd.f32 %v3522, %v3606
      %v3608 = vpop.f32.mrb[0].mxu0
      %v3609 = vpop.f32.mrb[0].mxu0
      %v3610 = vadd.f32 %v3522, %v3609
      %v3611 = vpop.f32.mrb[0].mxu0
      %3612 = vmatprep.mubr.bf16.mxu0 0
      %3613 = vmatmul.mubr.bf16.gmra.mrb[0].mxu0 %v3494
      %v3614 = vpop.f32.mrb[0].mxu0
      %v3615 = vadd.f32 %v3522, %v3614
      %v3616 = vpop.f32.mrb[0].mxu0
      %v3617 = vpop.f32.mrb[0].mxu0
      %v3618 = vadd.f32 %v3522, %v3617
      %v3619 = vpop.f32.mrb[0].mxu0
      %3620 = vmatprep.mubr.bf16.mxu0 0
      %3621 = vmatmul.mubr.bf16.gmra.mrb[0].mxu0 %v3495
      %v3622 = vpop.f32.mrb[0].mxu0
      %v3623 = vadd.f32 %v3522, %v3622
      %v3624 = vpop.f32.mrb[0].mxu0
      %v3625 = vpop.f32.mrb[0].mxu0
      %v3626 = vadd.f32 %v3522, %v3625
      %v3627 = vpop.f32.mrb[0].mxu0
      %3628 = vmatprep.mubr.bf16.mxu0 0
      %3629 = vmatmul.mubr.bf16.gmra.mrb[0].mxu0 %v3496
      %v3630 = vpop.f32.mrb[0].mxu0
      %v3631 = vadd.f32 %v3522, %v3630
      %v3632 = vpop.f32.mrb[0].mxu0
      %v3633 = vpop.f32.mrb[0].mxu0
      %v3634 = vadd.f32 %v3522, %v3633
      %v3635 = vpop.f32.mrb[0].mxu0
      %3636 = vmatprep.mubr.bf16.mxu0 0
      %3637 = vmatmul.mubr.bf16.gmra.mrb[0].mxu0 %v3497
      %v3638 = vpop.f32.mrb[0].mxu0
      %v3639 = vadd.f32 %v3522, %v3638
      %v3640 = vpop.f32.mrb[0].mxu0
      %v3641 = vpop.f32.mrb[0].mxu0
      %v3642 = vadd.f32 %v3522, %v3641
      %v3643 = vpop.f32.mrb[0].mxu0
      %3644 = vmatprep.mubr.bf16.mxu0 0
      %3645 = vmatmul.mubr.bf16.gmra.mrb[0].mxu0 %v3498
      %v3646 = vpop.f32.mrb[0].mxu0
      %v3647 = vadd.f32 %v3522, %v3646
      %v3648 = vpop.f32.mrb[0].mxu0
      %v3649 = vpop.f32.mrb[0].mxu0
      %v3650 = vadd.f32 %v3522, %v3649
      %v3651 = vpop.f32.mrb[0].mxu0
      %3652 = vmatprep.mubr.bf16.mxu0 0
      %3653 = vmatmul.mubr.bf16.gmra.mrb[0].mxu0 %v3499
      %v3654 = vpop.f32.mrb[0].mxu0
      %v3655 = vadd.f32 %v3522, %v3654
      %v3656 = vpop.f32.mrb[0].mxu0
      %v3657 = vpop.f32.mrb[0].mxu0
      %v3658 = vadd.f32 %v3522, %v3657
      %v3659 = vpop.f32.mrb[0].mxu0
      %3660 = vmatprep.mubr.bf16.mxu0 0
      %3661 = vmatmul.mubr.bf16.gmra.mrb[0].mxu0 %v3500
      %v3662 = vpop.f32.mrb[0].mxu0
      %v3663 = vadd.f32 %v3522, %v3662
      %v3664 = vpop.f32.mrb[0].mxu0
      %v3665 = vpop.f32.mrb[0].mxu0
      %v3666 = vadd.f32 %v3522, %v3665
      %v3667 = vpop.f32.mrb[0].mxu0
      %3668 = vdwg.mxu0
      %3669 = vst [vmem:[%s442] sm:$0xff] %v3607
      %3670 = vst [vmem:[%s442 + $0x8] sm:$0xff] %v3610
      %3671 = vst [vmem:[%s442 + $0x10] sm:$0xff] %v3615
      %3672 = vst [vmem:[%s442 + $0x18] sm:$0xff] %v3618
      %3673 = vst [vmem:[%s442 + $0x20] sm:$0xff] %v3623
      %3674 = vst [vmem:[%s442 + $0x28] sm:$0xff] %v3626
      %3675 = vst [vmem:[%s442 + $0x30] sm:$0xff] %v3631
      %3676 = vst [vmem:[%s442 + $0x38] sm:$0xff] %v3634
      %3677 = vst [vmem:[%s442 + $0x40] sm:$0xff] %v3639
      %3678 = vst [vmem:[%s442 + $0x48] sm:$0xff] %v3642
      %3679 = vst [vmem:[%s442 + $0x50] sm:$0xff] %v3647
      %3680 = vst [vmem:[%s442 + $0x58] sm:$0xff] %v3650
      %3681 = vst [vmem:[%s442 + $0x60] sm:$0xff] %v3655
      %3682 = vst [vmem:[%s442 + $0x68] sm:$0xff] %v3658
      %3683 = vst [vmem:[%s442 + $0x70] sm:$0xff] %v3663
      %3684 = vst [vmem:[%s442 + $0x78] sm:$0xff] %v3666
      %s3685 = smul.u32 16, %s24
      %p3686 = scmp.lt.s32.totalorder %s3685, 31
      %s3687 = scalar_select %p3686, %s3685, 31
      %s3688 = smul.addr %s3687, 8
      %s3689 = scalar_lea.vmem %s13, %s3688
      // Predicated region
      $region73: #{net2512_forward.1} parent=71 // pred_check
        %p3690 = pneg %p320
      $region74: #{net2512_forward.1} parent=71 // pred_check_branch
        %3692 = sbr.rel (%p3690) target = $region76
      $region75: #{net2512_forward.1} parent=71 // pred_region
        %s3693 = smul.u32 16, %s24
      $region76: #{net2512_forward.1} parent=71 // pred_fallthru
        _
    $region72: #{net2512_forward.1} parent=5 // pred_fallthru
      _
    %p3694 = scmp.le.s32.totalorder 2, %s19
    // Predicated region
    $region77: #{net2512_forward.1} parent=5 // pred_check
      %p3695 = pneg %p3694
    $region78: #{net2512_forward.1} parent=5 // pred_check_branch
      %3697 = sbr.rel (%p3695) target = $region80
    $region79: #{net2512_forward.1} parent=5 // pred_region
      %s3698 = ssub.s32 %s19, 2
      // Predicated region
      $region81: #{net2512_forward.1} parent=79 // pred_check
        %p3699 = pneg %p326
      $region82: #{net2512_forward.1} parent=79 // pred_check_branch
        %3701 = sbr.rel (%p3699) target = $region84
      $region83: #{net2512_forward.1} parent=79 // pred_region
        %s3702 = smul.u32 16, %s25
        %p3703 = scmp.lt.s32.totalorder %s3702, 31
        %s3704 = scalar_select %p3703, %s3702, 31
        %s3705 = smul.addr %s3704, 8
        %s3706 = scalar_lea.vmem %s13, %s3705
      $region84: #{net2512_forward.1} parent=79 // pred_fallthru
        _
    $region80: #{net2512_forward.1} parent=5 // pred_fallthru
      _
  $region6: #{net2512_forward.1} parent=0 // loop_footer
    %s23 = sadd.s32 1, %s19
  $region7: #{net2512_forward.1} parent=0 // loop_footer_branch
    %18 = sbr.rel target = $region3
  $region8: #{net2512_forward.1} parent=0 // loop_exit
    _

</llo_original>
